<compile_context>
chip_gen: v7x
topology: tpu7x:2x2x1
jax: 0.10.0
libtpu: 0.0.40
codegen_flags: <defaults>
</compile_context>

<pallas_src>
import functools

import numpy as np
import jax
import jax.numpy as jnp
from jax import lax
from jax.experimental import pallas as pl
from jax.experimental.pallas import tpu as pltpu

NUM_CLASSES = 100            # forward(): postprocess_network_output(outputs, 100, ...)
CONF_THRE = 0.001
HEAD_PAD = 112               # 5 + 100 = 105, rounded up to the 8-row sublane granule


def _round_up(x, m):
    return (x + m - 1) // m * m


def _vmem_limit_bytes():
    # v5e/v6e: 128 MiB physical -> ~96 MiB budget; v7x: 64 MiB physical -> 48 MiB budget.
    try:
        cap = int(pltpu.get_tpu_info().vmem_capacity_bytes)
    except Exception:
        cap = 64 * 1024 * 1024
    return max(32 * 1024 * 1024, min(cap * 3 // 4, 96 * 1024 * 1024))


def _pick_tile(n):
    """Largest multiple-of-128 divisor of n that is <= 2048 (n is a multiple of 128)."""
    m = n // 128
    for k in range(min(m, 16), 0, -1):
        if m % k == 0:
            return 128 * k
    return 128


# ----------------------------------------------------------------------------
# Static decomposition of conv1 (3x3 / s2) over the space-to-depth-by-4 input.
#
# The fused kernel computes the four parity groups of s2d(f1) directly:
#   xs2[(2*pr+pc)*c1 + c, a*W4 + b] = f1[c, 2a-1+pr, 2b-1+pc]   (0 outside f1)
# Each group is a sum of matmul "terms"; a term is one (block-row, block-col) offset
# (dr, dc) into the s4d image and a (c1, 16*Cin) weight matrix whose columns scatter
# the relevant 3x3 taps onto the s4d channel axis.
# ----------------------------------------------------------------------------
def _conv1_term_structure():
    groups, rows = [], []
    row = 0
    for pr in (0, 1):
        for pc in (0, 1):
            buckets = {}
            for di in range(3):
                tr = 2 * pr + di + 1
                for dj in range(3):
                    tc = 2 * pc + dj + 1
                    buckets.setdefault((tr // 4, tc // 4), []).append(
                        (di, dj, tr % 4, tc % 4))
            glist = []
            for (dr, dc) in sorted(buckets):
                glist.append((row, dr, dc))
                rows.append((dr, dc, tuple(buckets[(dr, dc)])))
                row += 1
            groups.append(tuple(glist))
    return tuple(groups), tuple(rows)


_CONV1_STRUCTURE = _conv1_term_structure()
_CONV1_GROUP_TERMS = _CONV1_STRUCTURE[0]     # 4 groups, 9 terms total


def pack_conv1_weight(w1):
    """(3,3,Cin,c1) -> (9*c1, 16*Cin) bf16: one MXU matmul per term (K = 16*Cin = 48)."""
    _, rows = _CONV1_STRUCTURE
    _, _, cin, c1 = w1.shape
    w1 = np.asarray(w1, np.float32)
    out = np.zeros((len(rows) * c1, 16 * cin), np.float32)
    for r, (_dr, _dc, taps) in enumerate(rows):
        for (di, dj, u, v) in taps:
            col0 = (u * 4 + v) * cin
            out[r * c1:(r + 1) * c1, col0:col0 + cin] = w1[di, dj].T
    return jnp.asarray(out, jnp.bfloat16)


def pack_conv2_weight(w2):
    """(3,3,c1,c2) -> (4*c2, 4*c1) bf16: 2x2/s1 (space-to-depth) taps, pre-transposed to
    (out-ch, in-ch) so conv2 accumulates directly in (c2, N) layout (no output transpose)."""
    _, _, c1, c2 = w2.shape
    w2 = np.asarray(w2, np.float32)
    out = np.zeros((4 * c2, 4 * c1), np.float32)
    for ta in range(2):
        for tb in range(2):
            tap = 2 * ta + tb
            for pr in range(2):
                for pc in range(2):
                    di, dj = 2 * ta + pr, 2 * tb + pc
                    if di > 2 or dj > 2:
                        continue            # these (ta,pr)/(tb,pc) combos do not exist in a 3x3
                    g = 2 * pr + pc
                    out[tap * c2:(tap + 1) * c2, g * c1:(g + 1) * c1] = w2[di, dj].T
    return jnp.asarray(out, jnp.bfloat16)


# ----------------------------------------------------------------------------
# Kernel 1: fused backbone (conv1 + SiLU + in-VMEM s2d repack + conv2 + SiLU).
# All activations keep channels on sublanes and a flattened block-grid on lanes, so every
# tap is a unit-stride lane-offset slice (no reshape copies) and every store is lane-dense.
# ----------------------------------------------------------------------------
def _backbone_kernel(xs4_ref, w1_ref, b1_ref, m1_ref, w2_ref, b2_ref, f2_ref, xs2_scr,
                     *, group_terms, c1, c2, w4, l2, n_out):
    # conv1: one parity group of s2d(f1) at a time, written into VMEM scratch (never HBM).
    for gidx in range(4):
        acc = None
        for (row, dr, dc) in group_terms[gidx]:
            off = dr * w4 + dc
            w = w1_ref[row * c1:(row + 1) * c1, :]                      # (c1, 16*Cin) bf16
            part = jnp.dot(w, xs4_ref[0, :, off:off + l2],
                           preferred_element_type=jnp.float32)          # (c1, l2) f32
            acc = part if acc is None else acc + part
        val = acc + b1_ref[...]                                         # (c1, 1) broadcast
        val = val * jax.nn.sigmoid(val)                                 # SiLU
        val = val * m1_ref[gidx:gidx + 1, :]                            # zero f1's 1-px pad ring
        xs2_scr[gidx * c1:(gidx + 1) * c1, :] = val.astype(xs2_scr.dtype)

    # conv2: 2x2/s1 conv over the in-VMEM s2d(f1); accumulate directly in (c2, N) layout.
    acc2 = None
    for ta in range(2):
        for tb in range(2):
            off = ta * w4 + tb
            tap = 2 * ta + tb
            w = w2_ref[tap * c2:(tap + 1) * c2, :]                      # (c2, 4*c1) bf16
            part = jnp.dot(w, xs2_scr[:, off:off + n_out],
                           preferred_element_type=jnp.float32)          # (c2, n_out) f32
            acc2 = part if acc2 is None else acc2 + part
    val2 = acc2 + b2_ref[...]
    val2 = val2 * jax.nn.sigmoid(val2)
    f2_ref[0] = val2.astype(f2_ref.dtype)


def backbone_fused(xs4, w1p, b1, mask1, w2p, b2, *, w4, l2, n_out, group_terms):
    batch, k16c, l4 = xs4.shape
    c1 = b1.shape[0]
    c2 = b2.shape[0]
    kernel = functools.partial(_backbone_kernel, group_terms=group_terms,
                               c1=c1, c2=c2, w4=w4, l2=l2, n_out=n_out)
    return pl.pallas_call(
        kernel,
        grid=(batch,),
        out_shape=jax.ShapeDtypeStruct((batch, c2, n_out), jnp.bfloat16),
        in_specs=[
            pl.BlockSpec((1, k16c, l4), lambda b: (b, 0, 0)),
            pl.BlockSpec(w1p.shape, lambda b: (0, 0)),
            pl.BlockSpec(b1.shape, lambda b: (0, 0)),
            pl.BlockSpec(mask1.shape, lambda b: (0, 0)),
            pl.BlockSpec(w2p.shape, lambda b: (0, 0)),
            pl.BlockSpec(b2.shape, lambda b: (0, 0)),
        ],
        out_specs=pl.BlockSpec((1, c2, n_out), lambda b: (b, 0, 0)),
        scratch_shapes=[pltpu.VMEM((4 * c1, l2), jnp.bfloat16)],        # s2d(f1), VMEM only
        compiler_params=pltpu.CompilerParams(
            dimension_semantics=("parallel",),
            vmem_limit_bytes=_vmem_limit_bytes()),
    )(xs4, w1p, b1, mask1, w2p, b2)


# ----------------------------------------------------------------------------
# Kernel 2: fused 1x1 head matmul + YOLOX decode + postprocess_network_output math.
# Features on sublanes, anchors on lanes; every output store is a full unmasked vst.
# ----------------------------------------------------------------------------
def _head_decode_kernel(f2_ref, whead_ref, bhead_ref, grid_ref, det_ref, aux_ref,
                        *, num_classes, conf_thre, stride):
    feats = f2_ref[0]                                                   # (c2, tn) bf16
    raw = jnp.dot(whead_ref[...], feats,
                  preferred_element_type=jnp.float32) + bhead_ref[...]  # (112, tn) f32

    gxy = grid_ref[...]                                                 # (2, tn): x-cell, y-cell
    xy = (raw[0:2, :] + gxy) * stride                                   # box centers
    box_wh = jnp.exp(raw[2:4, :]) * stride                              # box sizes
    obj = jax.nn.sigmoid(raw[4:5, :])

    cls_logits = raw[5:5 + num_classes, :]
    cls_max = jnp.max(cls_logits, axis=0, keepdims=True)
    class_conf = jax.nn.sigmoid(cls_max)             # sigmoid(max) == max(sigmoid): 1 EUP op
    cls_iota = lax.broadcasted_iota(jnp.int32, cls_logits.shape, 0)
    label = jnp.min(jnp.where(cls_logits == cls_max, cls_iota, num_classes),
                    axis=0, keepdims=True)           # first-index argmax

    # postprocess_network_output math:
    #   prediction[..., :2] -= prediction[..., 2:4] / 2 ; prediction[..., 2:4] += [..., :2]
    #   image_pred_copy[:, 4:5] *= class_conf
    #   conf_mask = image_pred_copy[:, 4] * class_conf >= conf_thre   (i.e. obj * cc^2)
    x1y1 = xy - 0.5 * box_wh
    x2y2 = x1y1 + box_wh
    score = obj * class_conf
    keep = (score * class_conf >= conf_thre).astype(jnp.int32)

    det_ref[0] = jnp.concatenate([x1y1, x2y2, score], axis=0)           # (5, tn) f32
    aux_ref[0] = jnp.concatenate([label, keep], axis=0)                 # (2, tn) i32


def head_decode(f2, whead_pad, bhead_pad, grid_xy, *, stride, num_classes, conf_thre):
    batch, c2, n = f2.shape
    tn = _pick_tile(n)
    kernel = functools.partial(_head_decode_kernel, num_classes=num_classes,
                               conf_thre=conf_thre, stride=stride)
    return pl.pallas_call(
        kernel,
        grid=(batch, n // tn),
        out_shape=(jax.ShapeDtypeStruct((batch, 5, n), jnp.float32),
                   jax.ShapeDtypeStruct((batch, 2, n), jnp.int32)),
        in_specs=[
            pl.BlockSpec((1, c2, tn), lambda b, t: (b, 0, t)),
            pl.BlockSpec(whead_pad.shape, lambda b, t: (0, 0)),
            pl.BlockSpec(bhead_pad.shape, lambda b, t: (0, 0)),
            pl.BlockSpec((2, tn), lambda b, t: (0, t)),
        ],
        out_specs=(pl.BlockSpec((1, 5, tn), lambda b, t: (b, 0, t)),
                   pl.BlockSpec((1, 2, tn), lambda b, t: (b, 0, t))),
        compiler_params=pltpu.CompilerParams(
            dimension_semantics=("parallel", "parallel"),
            vmem_limit_bytes=_vmem_limit_bytes()),
    )(f2, whead_pad, bhead_pad, grid_xy)


# ----------------------------------------------------------------------------
# Plain-JAX layout glue (runs once per call, 1x input traffic).
# ----------------------------------------------------------------------------
def _s4d_pack(x, h4, w4, l4):
    """(B, Cin, H, W) -> (B, 16*Cin, l4): pad by 4, group 4x4 pixel blocks onto the channel
    (sublane) axis, flatten the (h4, w4) block grid onto lanes, zero-pad lanes to l4."""
    batch, cin, _, _ = x.shape
    xp = jnp.pad(x, ((0, 0), (0, 0), (4, 4), (4, 4)))
    xp = xp.reshape(batch, cin, h4, 4, w4, 4)
    xp = xp.transpose(0, 3, 5, 1, 2, 4)                 # (B, u, v, cin, A, B')
    xp = xp.reshape(batch, 16 * cin, h4 * w4)
    return jnp.pad(xp, ((0, 0), (0, 0), (0, l4 - h4 * w4)))


def _f1_valid_mask(h1, w1, w4, l2):
    """(4, l2) f32 mask: 1 where the s2d(f1) lane maps inside f1, 0 on its zero-pad ring."""
    lane = jnp.arange(l2)
    a, b = lane // w4, lane % w4
    rows = []
    for pr in (0, 1):
        for pc in (0, 1):
            y, x = 2 * a - 1 + pr, 2 * b - 1 + pc
            rows.append(((y >= 0) & (y < h1) & (x >= 0) & (x < w1)).astype(jnp.float32))
    return jnp.stack(rows, axis=0)


def _anchor_grid(w4, n_out):
    """(2, n_out) f32: row 0 = x grid cell, row 1 = y grid cell of each anchor lane."""
    q = jnp.arange(n_out)
    return jnp.stack([(q % w4).astype(jnp.float32), (q // w4).astype(jnp.float32)], axis=0)


def init_params(key, c_in=3, c1=32, c2=128, num_classes=NUM_CLASSES):
    k1, k2, k3 = jax.random.split(key, 3)
    w1 = 0.5 * jax.random.normal(k1, (3, 3, c_in, c1), jnp.float32) / (9.0 * c_in) ** 0.5
    w2 = 0.5 * jax.random.normal(k2, (3, 3, c1, c2), jnp.float32) / (9.0 * c1) ** 0.5
    wh = 0.5 * jax.random.normal(k3, (5 + num_classes, c2), jnp.float32) / float(c2) ** 0.5
    wh_pad = jnp.zeros((HEAD_PAD, c2), jnp.float32).at[:5 + num_classes].set(wh)
    return {
        # unpacked f32 weights (kept for the pure-JAX reference check)
        "conv1_w": w1, "conv2_w": w2, "head_w": wh,
        # TPU-layout packed weights consumed by the kernels
        "c1_w_packed": pack_conv1_weight(w1),           # (288, 48) bf16
        "c1_b_col": jnp.zeros((c1, 1), jnp.float32),
        "c2_w_packed": pack_conv2_weight(w2),           # (512, 128) bf16
        "c2_b_col": jnp.zeros((c2, 1), jnp.float32),
        "head_w_pad": wh_pad.astype(jnp.bfloat16),      # (112, 128), rows >= 105 zero
        "head_b_pad": jnp.zeros((HEAD_PAD, 1), jnp.float32),
    }


def gnn_model_forward(x_nchw, params, conf_thre=CONF_THRE, num_classes=NUM_CLASSES):
    """Eval-mode forward of GNNModel: fixed-shape boxes/scores/labels + confidence keep mask."""
    batch, _, h, w = x_nchw.shape
    assert h % 4 == 0 and w % 4 == 0
    h1, w1 = h // 2, w // 2
    h2, w2 = h // 4, w // 4
    h4, w4 = h2 + 2, w2 + 2                       # s4d block-grid extents (incl. halo)
    n_out = _round_up(h2 * w4, 128)               # anchor slots on lanes (2 dead cols/row)
    l2 = _round_up(n_out + w4 + 1, 128)           # s2d(f1) scratch lanes (+ tap slack)
    l4 = _round_up(max(h4 * w4, l2 + w4 + 1), 128)

    xs4 = _s4d_pack(x_nchw.astype(jnp.bfloat16), h4, w4, l4)   # (B, 48, l4) bf16
    mask1 = _f1_valid_mask(h1, w1, w4, l2)                     # (4, l2) f32
    grid_xy = _anchor_grid(w4, n_out)                          # (2, n_out) f32

    # fused synthetic EAGR backbone (conv1 + conv2 + SiLU) -> (B, 128, n_out) bf16
    f2 = backbone_fused(xs4, params["c1_w_packed"], params["c1_b_col"], mask1,
                        params["c2_w_packed"], params["c2_b_col"],
                        w4=w4, l2=l2, n_out=n_out, group_terms=_CONV1_GROUP_TERMS)

    # synthetic GNNHead (1x1 conv) fused with decode / postprocess_network_output
    det, aux = head_decode(f2, params["head_w_pad"], params["head_b_pad"], grid_xy,
                           stride=float(h // h2), num_classes=num_classes,
                           conf_thre=conf_thre)

    # drop the 2 dead columns per grid row + lane-padding tail (tiny XLA op on 5/2 channels)
    def _compact(t):
        ch = t.shape[1]
        t = t[:, :, :h2 * w4].reshape(batch, ch, h2, w4)[:, :, :, :w2]
        return t.reshape(batch, ch, h2 * w2)

    det = _compact(det)
    aux = _compact(aux)
    boxes = jnp.transpose(det[:, 0:4, :], (0, 2, 1))           # (B, N, 4)
    # TODO(synk): dynamic boolean filtering (detections[conf_mask]) and torchvision.ops.nms
    # produce data-dependent shapes; returned as fixed-shape arrays + keep mask instead.
    return {"boxes": boxes,
            "scores": det[:, 4, :],
            "labels": aux[:, 0, :],
            "keep_mask": aux[:, 1, :].astype(bool)}


# ----------------------------------------------------------------------------
# Pure-JAX/XLA reference of the same synthetic network (for numeric verification).
# ----------------------------------------------------------------------------
def reference_forward(x_nchw, params, conf_thre=CONF_THRE, num_classes=NUM_CLASSES):
    rb = lambda t: t.astype(jnp.bfloat16).astype(jnp.float32)
    x = rb(x_nchw)
    wt1, wt2, wth = rb(params["conv1_w"]), rb(params["conv2_w"]), rb(params["head_w"])
    dn = ("NCHW", "HWIO", "NCHW")
    f1 = lax.conv_general_dilated(x, wt1, (2, 2), ((1, 1), (1, 1)), dimension_numbers=dn)
    f1 = f1 * jax.nn.sigmoid(f1)
    f2 = lax.conv_general_dilated(f1, wt2, (2, 2), ((1, 1), (1, 1)), dimension_numbers=dn)
    f2 = f2 * jax.nn.sigmoid(f2)
    raw = jnp.einsum("kc,bchw->bkhw", wth, f2)
    batch, _, h2, w2 = raw.shape
    stride = x.shape[2] / h2
    gx = jnp.arange(w2, dtype=jnp.float32)[None, None, :]
    gy = jnp.arange(h2, dtype=jnp.float32)[None, :, None]
    xc, yc = (raw[:, 0] + gx) * stride, (raw[:, 1] + gy) * stride
    bw, bh = jnp.exp(raw[:, 2]) * stride, jnp.exp(raw[:, 3]) * stride
    obj = jax.nn.sigmoid(raw[:, 4])
    cls = raw[:, 5:5 + num_classes]
    class_conf = jax.nn.sigmoid(jnp.max(cls, axis=1))
    labels = jnp.argmax(cls, axis=1)
    x1, y1 = xc - 0.5 * bw, yc - 0.5 * bh
    boxes = jnp.stack([x1, y1, x1 + bw, y1 + bh], axis=-1).reshape(batch, h2 * w2, 4)
    scores = (obj * class_conf).reshape(batch, -1)
    keep = scores * class_conf.reshape(batch, -1) >= conf_thre
    return {"boxes": boxes, "scores": scores,
            "labels": labels.reshape(batch, -1), "keep_mask": keep}


if __name__ == "__main__":
    key = jax.random.PRNGKey(0)
    kx, kp = jax.random.split(key)

    # small, module-consistent shapes: batch=2, 3-channel image, 32x32 spatial (NCHW)
    x = jax.random.normal(kx, (2, 3, 32, 32), jnp.float32)
    params = init_params(kp)

    fwd = jax.jit(gnn_model_forward)
    out = fwd(x, params)
    jax.block_until_ready(out)

    n_anchors = (32 // 4) * (32 // 4)
    assert out["boxes"].shape == (2, n_anchors, 4)
    assert out["scores"].shape == (2, n_anchors)
    assert out["labels"].shape == (2, n_anchors)
    assert out["keep_mask"].shape == (2, n_anchors)

    # numeric check against a pure-JAX/XLA reference of the same synthetic network
    ref = reference_forward(x, params)
    np.testing.assert_allclose(np.asarray(out["boxes"]), np.asarray(ref["boxes"]),
                               rtol=5e-2, atol=3e-1)
    np.testing.assert_allclose(np.asarray(out["scores"]), np.asarray(ref["scores"]),
                               rtol=5e-2, atol=2e-2)

    print("KERNEL_OK")
</pallas_src>

<mosaic_0001>
module attributes {stable_mosaic.version = 11 : i64} {
  func.func @_backbone_kernel(%arg0: i32, %arg1: memref<1x48x384xbf16, #tpu.memory_space<vmem>>, %arg2: memref<288x48xbf16, #tpu.memory_space<vmem>>, %arg3: memref<32x1xf32, #tpu.memory_space<vmem>>, %arg4: memref<4x256xf32, #tpu.memory_space<vmem>>, %arg5: memref<512x128xbf16, #tpu.memory_space<vmem>>, %arg6: memref<128x1xf32, #tpu.memory_space<vmem>>, %arg7: memref<1x128x128xbf16, #tpu.memory_space<vmem>>, %arg8: memref<128x256xbf16, #tpu.memory_space<vmem>>) attributes {dimension_semantics = [#tpu.dimension_semantics<parallel>], iteration_bounds = array<i64: 2>, scalar_prefetch = 0 : i64, scratch_operands = 1 : i64, tpu.core_type = #tpu.core_type<tc>, window_params = [{transform_indices = @transform_0, window_bounds = array<i64: 1, 48, 384>}, {pipeline_mode = #tpu.pipeline_mode<synchronous>, transform_indices = @transform_1, window_bounds = array<i64: 288, 48>}, {pipeline_mode = #tpu.pipeline_mode<synchronous>, transform_indices = @transform_2, window_bounds = array<i64: 32, 1>}, {pipeline_mode = #tpu.pipeline_mode<synchronous>, transform_indices = @transform_3, window_bounds = array<i64: 4, 256>}, {pipeline_mode = #tpu.pipeline_mode<synchronous>, transform_indices = @transform_4, window_bounds = array<i64: 512, 128>}, {pipeline_mode = #tpu.pipeline_mode<synchronous>, transform_indices = @transform_5, window_bounds = array<i64: 128, 1>}, {transform_indices = @transform_6, window_bounds = array<i64: 1, 128, 128>}]} {
    %c0 = arith.constant 0 : index
    %c0_0 = arith.constant 0 : index
    %0 = vector.load %arg2[%c0, %c0_0] : memref<288x48xbf16, #tpu.memory_space<vmem>>, vector<32x48xbf16>
    %c0_1 = arith.constant 0 : index
    %c0_2 = arith.constant 0 : index
    %c0_3 = arith.constant 0 : index
    %1 = vector.load %arg1[%c0_1, %c0_2, %c0_3] : memref<1x48x384xbf16, #tpu.memory_space<vmem>>, vector<1x48x256xbf16>
    %2 = vector.shape_cast %1 : vector<1x48x256xbf16> to vector<48x256xbf16>
    %cst = arith.constant dense<0.000000e+00> : vector<32x256xf32>
    %3 = tpu.matmul %0, %2, %cst {dimension_numbers = #tpu.dot_dimension_numbers<[1], [0], [0], [1], [0, 0, 1, 1], [], []>} : vector<32x48xbf16>, vector<48x256xbf16>, vector<32x256xf32> -> vector<32x256xf32>
    %c0_4 = arith.constant 0 : index
    %c0_5 = arith.constant 0 : index
    %4 = vector.load %arg3[%c0_4, %c0_5] : memref<32x1xf32, #tpu.memory_space<vmem>>, vector<32x1xf32>
    %5 = vector.broadcast %4 : vector<32x1xf32> to vector<32x256xf32>
    %6 = arith.addf %3, %5 : vector<32x256xf32>
    %7 = arith.negf %6 : vector<32x256xf32>
    %8 = math.exp %7 : vector<32x256xf32>
    %cst_6 = arith.constant 1.000000e+00 : f32
    %9 = vector.broadcast %cst_6 : f32 to vector<32x256xf32>
    %10 = arith.addf %9, %8 : vector<32x256xf32>
    %11 = arith.divf %9, %10 : vector<32x256xf32>
    %12 = arith.mulf %6, %11 : vector<32x256xf32>
    %c0_7 = arith.constant 0 : index
    %c0_8 = arith.constant 0 : index
    %13 = vector.load %arg4[%c0_7, %c0_8] : memref<4x256xf32, #tpu.memory_space<vmem>>, vector<1x256xf32>
    %14 = vector.broadcast %13 : vector<1x256xf32> to vector<32x256xf32>
    %15 = arith.mulf %12, %14 : vector<32x256xf32>
    %16 = arith.truncf %15 : vector<32x256xf32> to vector<32x256xbf16>
    %c0_9 = arith.constant 0 : index
    %c0_10 = arith.constant 0 : index
    %17 = vector.load %arg8[%c0_9, %c0_10] : memref<128x256xbf16, #tpu.memory_space<vmem>>, vector<32x256xbf16>
    tpu.vector_store %arg8[%c0_9, %c0_10], %16 {strides = array<i32>} : memref<128x256xbf16, #tpu.memory_space<vmem>>, vector<32x256xbf16>,
    %c32 = arith.constant 32 : index
    %c0_11 = arith.constant 0 : index
    %18 = vector.load %arg2[%c32, %c0_11] : memref<288x48xbf16, #tpu.memory_space<vmem>>, vector<32x48xbf16>
    %c0_12 = arith.constant 0 : index
    %c0_13 = arith.constant 0 : index
    %c0_14 = arith.constant 0 : index
    %19 = vector.load %arg1[%c0_12, %c0_13, %c0_14] : memref<1x48x384xbf16, #tpu.memory_space<vmem>>, vector<1x48x256xbf16>
    %20 = vector.shape_cast %19 : vector<1x48x256xbf16> to vector<48x256xbf16>
    %cst_15 = arith.constant dense<0.000000e+00> : vector<32x256xf32>
    %21 = tpu.matmul %18, %20, %cst_15 {dimension_numbers = #tpu.dot_dimension_numbers<[1], [0], [0], [1], [0, 0, 1, 1], [], []>} : vector<32x48xbf16>, vector<48x256xbf16>, vector<32x256xf32> -> vector<32x256xf32>
    %c64 = arith.constant 64 : index
    %c0_16 = arith.constant 0 : index
    %22 = vector.load %arg2[%c64, %c0_16] : memref<288x48xbf16, #tpu.memory_space<vmem>>, vector<32x48xbf16>
    %c0_17 = arith.constant 0 : index
    %c0_18 = arith.constant 0 : index
    %c1 = arith.constant 1 : index
    %23 = vector.load %arg1[%c0_17, %c0_18, %c1] : memref<1x48x384xbf16, #tpu.memory_space<vmem>>, vector<1x48x256xbf16>
    %24 = vector.shape_cast %23 : vector<1x48x256xbf16> to vector<48x256xbf16>
    %cst_19 = arith.constant dense<0.000000e+00> : vector<32x256xf32>
    %25 = tpu.matmul %22, %24, %cst_19 {dimension_numbers = #tpu.dot_dimension_numbers<[1], [0], [0], [1], [0, 0, 1, 1], [], []>} : vector<32x48xbf16>, vector<48x256xbf16>, vector<32x256xf32> -> vector<32x256xf32>
    %26 = arith.addf %21, %25 : vector<32x256xf32>
    %c0_20 = arith.constant 0 : index
    %c0_21 = arith.constant 0 : index
    %27 = vector.load %arg3[%c0_20, %c0_21] : memref<32x1xf32, #tpu.memory_space<vmem>>, vector<32x1xf32>
    %28 = vector.broadcast %27 : vector<32x1xf32> to vector<32x256xf32>
    %29 = arith.addf %26, %28 : vector<32x256xf32>
    %30 = arith.negf %29 : vector<32x256xf32>
    %31 = math.exp %30 : vector<32x256xf32>
    %cst_22 = arith.constant 1.000000e+00 : f32
    %32 = vector.broadcast %cst_22 : f32 to vector<32x256xf32>
    %33 = arith.addf %32, %31 : vector<32x256xf32>
    %34 = arith.divf %32, %33 : vector<32x256xf32>
    %35 = arith.mulf %29, %34 : vector<32x256xf32>
    %c1_23 = arith.constant 1 : index
    %c0_24 = arith.constant 0 : index
    %36 = vector.load %arg4[%c1_23, %c0_24] : memref<4x256xf32, #tpu.memory_space<vmem>>, vector<1x256xf32>
    %37 = vector.broadcast %36 : vector<1x256xf32> to vector<32x256xf32>
    %38 = arith.mulf %35, %37 : vector<32x256xf32>
    %39 = arith.truncf %38 : vector<32x256xf32> to vector<32x256xbf16>
    %c32_25 = arith.constant 32 : index
    %c0_26 = arith.constant 0 : index
    %40 = vector.load %arg8[%c32_25, %c0_26] : memref<128x256xbf16, #tpu.memory_space<vmem>>, vector<32x256xbf16>
    tpu.vector_store %arg8[%c32_25, %c0_26], %39 {strides = array<i32>} : memref<128x256xbf16, #tpu.memory_space<vmem>>, vector<32x256xbf16>,
    %c96 = arith.constant 96 : index
    %c0_27 = arith.constant 0 : index
    %41 = vector.load %arg2[%c96, %c0_27] : memref<288x48xbf16, #tpu.memory_space<vmem>>, vector<32x48xbf16>
    %c0_28 = arith.constant 0 : index
    %c0_29 = arith.constant 0 : index
    %c0_30 = arith.constant 0 : index
    %42 = vector.load %arg1[%c0_28, %c0_29, %c0_30] : memref<1x48x384xbf16, #tpu.memory_space<vmem>>, vector<1x48x256xbf16>
    %43 = vector.shape_cast %42 : vector<1x48x256xbf16> to vector<48x256xbf16>
    %cst_31 = arith.constant dense<0.000000e+00> : vector<32x256xf32>
    %44 = tpu.matmul %41, %43, %cst_31 {dimension_numbers = #tpu.dot_dimension_numbers<[1], [0], [0], [1], [0, 0, 1, 1], [], []>} : vector<32x48xbf16>, vector<48x256xbf16>, vector<32x256xf32> -> vector<32x256xf32>
    %c128 = arith.constant 128 : index
    %c0_32 = arith.constant 0 : index
    %45 = vector.load %arg2[%c128, %c0_32] : memref<288x48xbf16, #tpu.memory_space<vmem>>, vector<32x48xbf16>
    %c0_33 = arith.constant 0 : index
    %c0_34 = arith.constant 0 : index
    %c10 = arith.constant 10 : index
    %46 = vector.load %arg1[%c0_33, %c0_34, %c10] : memref<1x48x384xbf16, #tpu.memory_space<vmem>>, vector<1x48x256xbf16>
    %47 = vector.shape_cast %46 : vector<1x48x256xbf16> to vector<48x256xbf16>
    %cst_35 = arith.constant dense<0.000000e+00> : vector<32x256xf32>
    %48 = tpu.matmul %45, %47, %cst_35 {dimension_numbers = #tpu.dot_dimension_numbers<[1], [0], [0], [1], [0, 0, 1, 1], [], []>} : vector<32x48xbf16>, vector<48x256xbf16>, vector<32x256xf32> -> vector<32x256xf32>
    %49 = arith.addf %44, %48 : vector<32x256xf32>
    %c0_36 = arith.constant 0 : index
    %c0_37 = arith.constant 0 : index
    %50 = vector.load %arg3[%c0_36, %c0_37] : memref<32x1xf32, #tpu.memory_space<vmem>>, vector<32x1xf32>
    %51 = vector.broadcast %50 : vector<32x1xf32> to vector<32x256xf32>
    %52 = arith.addf %49, %51 : vector<32x256xf32>
    %53 = arith.negf %52 : vector<32x256xf32>
    %54 = math.exp %53 : vector<32x256xf32>
    %cst_38 = arith.constant 1.000000e+00 : f32
    %55 = vector.broadcast %cst_38 : f32 to vector<32x256xf32>
    %56 = arith.addf %55, %54 : vector<32x256xf32>
    %57 = arith.divf %55, %56 : vector<32x256xf32>
    %58 = arith.mulf %52, %57 : vector<32x256xf32>
    %c2 = arith.constant 2 : index
    %c0_39 = arith.constant 0 : index
    %59 = vector.load %arg4[%c2, %c0_39] : memref<4x256xf32, #tpu.memory_space<vmem>>, vector<1x256xf32>
    %60 = vector.broadcast %59 : vector<1x256xf32> to vector<32x256xf32>
    %61 = arith.mulf %58, %60 : vector<32x256xf32>
    %62 = arith.truncf %61 : vector<32x256xf32> to vector<32x256xbf16>
    %c64_40 = arith.constant 64 : index
    %c0_41 = arith.constant 0 : index
    %63 = vector.load %arg8[%c64_40, %c0_41] : memref<128x256xbf16, #tpu.memory_space<vmem>>, vector<32x256xbf16>
    tpu.vector_store %arg8[%c64_40, %c0_41], %62 {strides = array<i32>} : memref<128x256xbf16, #tpu.memory_space<vmem>>, vector<32x256xbf16>,
    %c160 = arith.constant 160 : index
    %c0_42 = arith.constant 0 : index
    %64 = vector.load %arg2[%c160, %c0_42] : memref<288x48xbf16, #tpu.memory_space<vmem>>, vector<32x48xbf16>
    %c0_43 = arith.constant 0 : index
    %c0_44 = arith.constant 0 : index
    %c0_45 = arith.constant 0 : index
    %65 = vector.load %arg1[%c0_43, %c0_44, %c0_45] : memref<1x48x384xbf16, #tpu.memory_space<vmem>>, vector<1x48x256xbf16>
    %66 = vector.shape_cast %65 : vector<1x48x256xbf16> to vector<48x256xbf16>
    %cst_46 = arith.constant dense<0.000000e+00> : vector<32x256xf32>
    %67 = tpu.matmul %64, %66, %cst_46 {dimension_numbers = #tpu.dot_dimension_numbers<[1], [0], [0], [1], [0, 0, 1, 1], [], []>} : vector<32x48xbf16>, vector<48x256xbf16>, vector<32x256xf32> -> vector<32x256xf32>
    %c192 = arith.constant 192 : index
    %c0_47 = arith.constant 0 : index
    %68 = vector.load %arg2[%c192, %c0_47] : memref<288x48xbf16, #tpu.memory_space<vmem>>, vector<32x48xbf16>
    %c0_48 = arith.constant 0 : index
    %c0_49 = arith.constant 0 : index
    %c1_50 = arith.constant 1 : index
    %69 = vector.load %arg1[%c0_48, %c0_49, %c1_50] : memref<1x48x384xbf16, #tpu.memory_space<vmem>>, vector<1x48x256xbf16>
    %70 = vector.shape_cast %69 : vector<1x48x256xbf16> to vector<48x256xbf16>
    %cst_51 = arith.constant dense<0.000000e+00> : vector<32x256xf32>
    %71 = tpu.matmul %68, %70, %cst_51 {dimension_numbers = #tpu.dot_dimension_numbers<[1], [0], [0], [1], [0, 0, 1, 1], [], []>} : vector<32x48xbf16>, vector<48x256xbf16>, vector<32x256xf32> -> vector<32x256xf32>
    %72 = arith.addf %67, %71 : vector<32x256xf32>
    %c224 = arith.constant 224 : index
    %c0_52 = arith.constant 0 : index
    %73 = vector.load %arg2[%c224, %c0_52] : memref<288x48xbf16, #tpu.memory_space<vmem>>, vector<32x48xbf16>
    %c0_53 = arith.constant 0 : index
    %c0_54 = arith.constant 0 : index
    %c10_55 = arith.constant 10 : index
    %74 = vector.load %arg1[%c0_53, %c0_54, %c10_55] : memref<1x48x384xbf16, #tpu.memory_space<vmem>>, vector<1x48x256xbf16>
    %75 = vector.shape_cast %74 : vector<1x48x256xbf16> to vector<48x256xbf16>
    %cst_56 = arith.constant dense<0.000000e+00> : vector<32x256xf32>
    %76 = tpu.matmul %73, %75, %cst_56 {dimension_numbers = #tpu.dot_dimension_numbers<[1], [0], [0], [1], [0, 0, 1, 1], [], []>} : vector<32x48xbf16>, vector<48x256xbf16>, vector<32x256xf32> -> vector<32x256xf32>
    %77 = arith.addf %72, %76 : vector<32x256xf32>
    %c256 = arith.constant 256 : index
    %c0_57 = arith.constant 0 : index
    %78 = vector.load %arg2[%c256, %c0_57] : memref<288x48xbf16, #tpu.memory_space<vmem>>, vector<32x48xbf16>
    %c0_58 = arith.constant 0 : index
    %c0_59 = arith.constant 0 : index
    %c11 = arith.constant 11 : index
    %79 = vector.load %arg1[%c0_58, %c0_59, %c11] : memref<1x48x384xbf16, #tpu.memory_space<vmem>>, vector<1x48x256xbf16>
    %80 = vector.shape_cast %79 : vector<1x48x256xbf16> to vector<48x256xbf16>
    %cst_60 = arith.constant dense<0.000000e+00> : vector<32x256xf32>
    %81 = tpu.matmul %78, %80, %cst_60 {dimension_numbers = #tpu.dot_dimension_numbers<[1], [0], [0], [1], [0, 0, 1, 1], [], []>} : vector<32x48xbf16>, vector<48x256xbf16>, vector<32x256xf32> -> vector<32x256xf32>
    %82 = arith.addf %77, %81 : vector<32x256xf32>
    %c0_61 = arith.constant 0 : index
    %c0_62 = arith.constant 0 : index
    %83 = vector.load %arg3[%c0_61, %c0_62] : memref<32x1xf32, #tpu.memory_space<vmem>>, vector<32x1xf32>
    %84 = vector.broadcast %83 : vector<32x1xf32> to vector<32x256xf32>
    %85 = arith.addf %82, %84 : vector<32x256xf32>
    %86 = arith.negf %85 : vector<32x256xf32>
    %87 = math.exp %86 : vector<32x256xf32>
    %cst_63 = arith.constant 1.000000e+00 : f32
    %88 = vector.broadcast %cst_63 : f32 to vector<32x256xf32>
    %89 = arith.addf %88, %87 : vector<32x256xf32>
    %90 = arith.divf %88, %89 : vector<32x256xf32>
    %91 = arith.mulf %85, %90 : vector<32x256xf32>
    %c3 = arith.constant 3 : index
    %c0_64 = arith.constant 0 : index
    %92 = vector.load %arg4[%c3, %c0_64] : memref<4x256xf32, #tpu.memory_space<vmem>>, vector<1x256xf32>
    %93 = vector.broadcast %92 : vector<1x256xf32> to vector<32x256xf32>
    %94 = arith.mulf %91, %93 : vector<32x256xf32>
    %95 = arith.truncf %94 : vector<32x256xf32> to vector<32x256xbf16>
    %c96_65 = arith.constant 96 : index
    %c0_66 = arith.constant 0 : index
    %96 = vector.load %arg8[%c96_65, %c0_66] : memref<128x256xbf16, #tpu.memory_space<vmem>>, vector<32x256xbf16>
    tpu.vector_store %arg8[%c96_65, %c0_66], %95 {strides = array<i32>} : memref<128x256xbf16, #tpu.memory_space<vmem>>, vector<32x256xbf16>,
    %c0_67 = arith.constant 0 : index
    %c0_68 = arith.constant 0 : index
    %97 = vector.load %arg5[%c0_67, %c0_68] : memref<512x128xbf16, #tpu.memory_space<vmem>>, vector<128x128xbf16>
    %c0_69 = arith.constant 0 : index
    %c0_70 = arith.constant 0 : index
    %98 = vector.load %arg8[%c0_69, %c0_70] : memref<128x256xbf16, #tpu.memory_space<vmem>>, vector<128x128xbf16>
    %cst_71 = arith.constant dense<0.000000e+00> : vector<128x128xf32>
    %99 = tpu.matmul %97, %98, %cst_71 {dimension_numbers = #tpu.dot_dimension_numbers<[1], [0], [0], [1], [0, 0, 1, 1], [], []>} : vector<128x128xbf16>, vector<128x128xbf16>, vector<128x128xf32> -> vector<128x128xf32>
    %c128_72 = arith.constant 128 : index
    %c0_73 = arith.constant 0 : index
    %100 = vector.load %arg5[%c128_72, %c0_73] : memref<512x128xbf16, #tpu.memory_space<vmem>>, vector<128x128xbf16>
    %c0_74 = arith.constant 0 : index
    %c1_75 = arith.constant 1 : index
    %101 = vector.load %arg8[%c0_74, %c1_75] : memref<128x256xbf16, #tpu.memory_space<vmem>>, vector<128x128xbf16>
    %cst_76 = arith.constant dense<0.000000e+00> : vector<128x128xf32>
    %102 = tpu.matmul %100, %101, %cst_76 {dimension_numbers = #tpu.dot_dimension_numbers<[1], [0], [0], [1], [0, 0, 1, 1], [], []>} : vector<128x128xbf16>, vector<128x128xbf16>, vector<128x128xf32> -> vector<128x128xf32>
    %103 = arith.addf %99, %102 : vector<128x128xf32>
    %c256_77 = arith.constant 256 : index
    %c0_78 = arith.constant 0 : index
    %104 = vector.load %arg5[%c256_77, %c0_78] : memref<512x128xbf16, #tpu.memory_space<vmem>>, vector<128x128xbf16>
    %c0_79 = arith.constant 0 : index
    %c10_80 = arith.constant 10 : index
    %105 = vector.load %arg8[%c0_79, %c10_80] : memref<128x256xbf16, #tpu.memory_space<vmem>>, vector<128x128xbf16>
    %cst_81 = arith.constant dense<0.000000e+00> : vector<128x128xf32>
    %106 = tpu.matmul %104, %105, %cst_81 {dimension_numbers = #tpu.dot_dimension_numbers<[1], [0], [0], [1], [0, 0, 1, 1], [], []>} : vector<128x128xbf16>, vector<128x128xbf16>, vector<128x128xf32> -> vector<128x128xf32>
    %107 = arith.addf %103, %106 : vector<128x128xf32>
    %c384 = arith.constant 384 : index
    %c0_82 = arith.constant 0 : index
    %108 = vector.load %arg5[%c384, %c0_82] : memref<512x128xbf16, #tpu.memory_space<vmem>>, vector<128x128xbf16>
    %c0_83 = arith.constant 0 : index
    %c11_84 = arith.constant 11 : index
    %109 = vector.load %arg8[%c0_83, %c11_84] : memref<128x256xbf16, #tpu.memory_space<vmem>>, vector<128x128xbf16>
    %cst_85 = arith.constant dense<0.000000e+00> : vector<128x128xf32>
    %110 = tpu.matmul %108, %109, %cst_85 {dimension_numbers = #tpu.dot_dimension_numbers<[1], [0], [0], [1], [0, 0, 1, 1], [], []>} : vector<128x128xbf16>, vector<128x128xbf16>, vector<128x128xf32> -> vector<128x128xf32>
    %111 = arith.addf %107, %110 : vector<128x128xf32>
    %c0_86 = arith.constant 0 : index
    %c0_87 = arith.constant 0 : index
    %112 = vector.load %arg6[%c0_86, %c0_87] : memref<128x1xf32, #tpu.memory_space<vmem>>, vector<128x1xf32>
    %113 = vector.broadcast %112 : vector<128x1xf32> to vector<128x128xf32>
    %114 = arith.addf %111, %113 : vector<128x128xf32>
    %115 = arith.negf %114 : vector<128x128xf32>
    %116 = math.exp %115 : vector<128x128xf32>
    %cst_88 = arith.constant 1.000000e+00 : f32
    %117 = vector.broadcast %cst_88 : f32 to vector<128x128xf32>
    %118 = arith.addf %117, %116 : vector<128x128xf32>
    %119 = arith.divf %117, %118 : vector<128x128xf32>
    %120 = arith.mulf %114, %119 : vector<128x128xf32>
    %121 = arith.truncf %120 : vector<128x128xf32> to vector<128x128xbf16>
    %c0_89 = arith.constant 0 : index
    %c0_90 = arith.constant 0 : index
    %c0_91 = arith.constant 0 : index
    %122 = vector.load %arg7[%c0_89, %c0_90, %c0_91] : memref<1x128x128xbf16, #tpu.memory_space<vmem>>, vector<1x128x128xbf16>
    %123 = vector.shape_cast %122 : vector<1x128x128xbf16> to vector<128x128xbf16>
    %124 = vector.shape_cast %121 : vector<128x128xbf16> to vector<1x128x128xbf16>
    tpu.vector_store %arg7[%c0_89, %c0_90, %c0_91], %124 {strides = array<i32>} : memref<1x128x128xbf16, #tpu.memory_space<vmem>>, vector<1x128x128xbf16>,
    return
  }
  func.func @transform_0(%arg0: i32) -> (i32, i32, i32) {
    %c0_i32 = arith.constant 0 : i32
    %c0_i32_0 = arith.constant 0 : i32
    %c0_i32_1 = arith.constant 0 : i32
    return %arg0, %c0_i32, %c0_i32_0 : i32, i32, i32
  }
  func.func @transform_1(%arg0: i32) -> (i32, i32) {
    %c0_i32 = arith.constant 0 : i32
    %c0_i32_0 = arith.constant 0 : i32
    %c0_i32_1 = arith.constant 0 : i32
    return %c0_i32, %c0_i32_0 : i32, i32
  }
  func.func @transform_2(%arg0: i32) -> (i32, i32) {
    %c0_i32 = arith.constant 0 : i32
    %c0_i32_0 = arith.constant 0 : i32
    %c0_i32_1 = arith.constant 0 : i32
    return %c0_i32, %c0_i32_0 : i32, i32
  }
  func.func @transform_3(%arg0: i32) -> (i32, i32) {
    %c0_i32 = arith.constant 0 : i32
    %c0_i32_0 = arith.constant 0 : i32
    %c0_i32_1 = arith.constant 0 : i32
    return %c0_i32, %c0_i32_0 : i32, i32
  }
  func.func @transform_4(%arg0: i32) -> (i32, i32) {
    %c0_i32 = arith.constant 0 : i32
    %c0_i32_0 = arith.constant 0 : i32
    %c0_i32_1 = arith.constant 0 : i32
    return %c0_i32, %c0_i32_0 : i32, i32
  }
  func.func @transform_5(%arg0: i32) -> (i32, i32) {
    %c0_i32 = arith.constant 0 : i32
    %c0_i32_0 = arith.constant 0 : i32
    %c0_i32_1 = arith.constant 0 : i32
    return %c0_i32, %c0_i32_0 : i32, i32
  }
  func.func @transform_6(%arg0: i32) -> (i32, i32, i32) {
    %c0_i32 = arith.constant 0 : i32
    %c0_i32_0 = arith.constant 0 : i32
    %c0_i32_1 = arith.constant 0 : i32
    return %arg0, %c0_i32, %c0_i32_0 : i32, i32, i32
  }
}

module attributes {stable_mosaic.version = 11 : i64} {
  func.func @_head_decode_kernel(%arg0: i32, %arg1: i32, %arg2: memref<1x128x128xbf16, #tpu.memory_space<vmem>>, %arg3: memref<112x128xbf16, #tpu.memory_space<vmem>>, %arg4: memref<112x1xf32, #tpu.memory_space<vmem>>, %arg5: memref<2x128xf32, #tpu.memory_space<vmem>>, %arg6: memref<1x5x128xf32, #tpu.memory_space<vmem>>, %arg7: memref<1x2x128xi32, #tpu.memory_space<vmem>>) attributes {dimension_semantics = [#tpu.dimension_semantics<parallel>, #tpu.dimension_semantics<parallel>], iteration_bounds = array<i64: 2, 1>, scalar_prefetch = 0 : i64, scratch_operands = 0 : i64, tpu.core_type = #tpu.core_type<tc>, window_params = [{transform_indices = @transform_0, window_bounds = array<i64: 1, 128, 128>}, {pipeline_mode = #tpu.pipeline_mode<synchronous>, transform_indices = @transform_1, window_bounds = array<i64: 112, 128>}, {pipeline_mode = #tpu.pipeline_mode<synchronous>, transform_indices = @transform_2, window_bounds = array<i64: 112, 1>}, {transform_indices = @transform_3, window_bounds = array<i64: 2, 128>}, {transform_indices = @transform_4, window_bounds = array<i64: 1, 5, 128>}, {transform_indices = @transform_5, window_bounds = array<i64: 1, 2, 128>}]} {
    %c0 = arith.constant 0 : index
    %c0_0 = arith.constant 0 : index
    %c0_1 = arith.constant 0 : index
    %0 = vector.load %arg2[%c0, %c0_0, %c0_1] : memref<1x128x128xbf16, #tpu.memory_space<vmem>>, vector<1x128x128xbf16>
    %1 = vector.shape_cast %0 : vector<1x128x128xbf16> to vector<128x128xbf16>
    %c0_2 = arith.constant 0 : index
    %c0_3 = arith.constant 0 : index
    %2 = vector.load %arg3[%c0_2, %c0_3] : memref<112x128xbf16, #tpu.memory_space<vmem>>, vector<112x128xbf16>
    %cst = arith.constant dense<0.000000e+00> : vector<112x128xf32>
    %3 = tpu.matmul %2, %1, %cst {dimension_numbers = #tpu.dot_dimension_numbers<[1], [0], [0], [1], [0, 0, 1, 1], [], []>} : vector<112x128xbf16>, vector<128x128xbf16>, vector<112x128xf32> -> vector<112x128xf32>
    %c0_4 = arith.constant 0 : index
    %c0_5 = arith.constant 0 : index
    %4 = vector.load %arg4[%c0_4, %c0_5] : memref<112x1xf32, #tpu.memory_space<vmem>>, vector<112x1xf32>
    %5 = vector.broadcast %4 : vector<112x1xf32> to vector<112x128xf32>
    %6 = arith.addf %3, %5 : vector<112x128xf32>
    %c0_6 = arith.constant 0 : index
    %c0_7 = arith.constant 0 : index
    %7 = vector.load %arg5[%c0_6, %c0_7] : memref<2x128xf32, #tpu.memory_space<vmem>>, vector<2x128xf32>
    %8 = vector.extract_strided_slice %6 {offsets = [0, 0], sizes = [2, 128], strides = [1, 1]} : vector<112x128xf32> to vector<2x128xf32>
    %9 = arith.addf %8, %7 : vector<2x128xf32>
    %cst_8 = arith.constant 4.000000e+00 : f32
    %10 = vector.broadcast %cst_8 : f32 to vector<2x128xf32>
    %11 = arith.mulf %9, %10 : vector<2x128xf32>
    %12 = vector.extract_strided_slice %6 {offsets = [2, 0], sizes = [2, 128], strides = [1, 1]} : vector<112x128xf32> to vector<2x128xf32>
    %13 = math.exp %12 : vector<2x128xf32>
    %cst_9 = arith.constant 4.000000e+00 : f32
    %14 = vector.broadcast %cst_9 : f32 to vector<2x128xf32>
    %15 = arith.mulf %13, %14 : vector<2x128xf32>
    %16 = vector.extract_strided_slice %6 {offsets = [4, 0], sizes = [1, 128], strides = [1, 1]} : vector<112x128xf32> to vector<1x128xf32>
    %17 = arith.negf %16 : vector<1x128xf32>
    %18 = math.exp %17 : vector<1x128xf32>
    %cst_10 = arith.constant 1.000000e+00 : f32
    %19 = vector.broadcast %cst_10 : f32 to vector<1x128xf32>
    %20 = arith.addf %19, %18 : vector<1x128xf32>
    %21 = arith.divf %19, %20 : vector<1x128xf32>
    %22 = vector.extract_strided_slice %6 {offsets = [5, 0], sizes = [100, 128], strides = [1, 1]} : vector<112x128xf32> to vector<100x128xf32>
    %cst_11 = arith.constant dense<0xFF800000> : vector<128xf32>
    %23 = vector.multi_reduction <maximumf>, %22, %cst_11 [0] : vector<100x128xf32> to vector<128xf32>
    %24 = vector.shape_cast %23 : vector<128xf32> to vector<1x128xf32>
    %25 = arith.negf %24 : vector<1x128xf32>
    %26 = math.exp %25 : vector<1x128xf32>
    %cst_12 = arith.constant 1.000000e+00 : f32
    %27 = vector.broadcast %cst_12 : f32 to vector<1x128xf32>
    %28 = arith.addf %27, %26 : vector<1x128xf32>
    %29 = arith.divf %27, %28 : vector<1x128xf32>
    %30 = tpu.iota {dimensions = array<i32: 0>} : vector<100x128xi32>
    %31 = vector.broadcast %24 : vector<1x128xf32> to vector<100x128xf32>
    %32 = arith.cmpf oeq, %22, %31 : vector<100x128xf32>
    %c100_i32 = arith.constant 100 : i32
    %33 = vector.broadcast %c100_i32 : i32 to vector<100x128xi32>
    %34 = arith.select %32, %30, %33 : vector<100x128xi1>, vector<100x128xi32>
    %cst_13 = arith.constant dense<2147483647> : vector<128xi32>
    %35 = vector.multi_reduction <minsi>, %34, %cst_13 [0] : vector<100x128xi32> to vector<128xi32>
    %36 = vector.shape_cast %35 : vector<128xi32> to vector<1x128xi32>
    %cst_14 = arith.constant 5.000000e-01 : f32
    %37 = vector.broadcast %cst_14 : f32 to vector<2x128xf32>
    %38 = arith.mulf %37, %15 : vector<2x128xf32>
    %39 = arith.subf %11, %38 : vector<2x128xf32>
    %40 = arith.addf %39, %15 : vector<2x128xf32>
    %41 = arith.mulf %21, %29 : vector<1x128xf32>
    %42 = arith.mulf %41, %29 : vector<1x128xf32>
    %cst_15 = arith.constant 1.000000e-03 : f32
    %43 = vector.broadcast %cst_15 : f32 to vector<1x128xf32>
    %44 = arith.cmpf oge, %42, %43 : vector<1x128xf32>
    %45 = arith.extui %44 : vector<1x128xi1> to vector<1x128xi32>
    %46 = tpu.concatenate %39, %40, %41 in 0 : vector<2x128xf32>, vector<2x128xf32>, vector<1x128xf32> -> vector<5x128xf32>
    %c0_16 = arith.constant 0 : index
    %c0_17 = arith.constant 0 : index
    %c0_18 = arith.constant 0 : index
    %47 = vector.load %arg6[%c0_16, %c0_17, %c0_18] : memref<1x5x128xf32, #tpu.memory_space<vmem>>, vector<1x5x128xf32>
    %48 = vector.shape_cast %47 : vector<1x5x128xf32> to vector<5x128xf32>
    %49 = vector.shape_cast %46 : vector<5x128xf32> to vector<1x5x128xf32>
    tpu.vector_store %arg6[%c0_16, %c0_17, %c0_18], %49 {strides = array<i32>} : memref<1x5x128xf32, #tpu.memory_space<vmem>>, vector<1x5x128xf32>,
    %50 = tpu.concatenate %36, %45 in 0 : vector<1x128xi32>, vector<1x128xi32> -> vector<2x128xi32>
    %c0_19 = arith.constant 0 : index
    %c0_20 = arith.constant 0 : index
    %c0_21 = arith.constant 0 : index
    %51 = vector.load %arg7[%c0_19, %c0_20, %c0_21] : memref<1x2x128xi32, #tpu.memory_space<vmem>>, vector<1x2x128xi32>
    %52 = vector.shape_cast %51 : vector<1x2x128xi32> to vector<2x128xi32>
    %53 = vector.shape_cast %50 : vector<2x128xi32> to vector<1x2x128xi32>
    tpu.vector_store %arg7[%c0_19, %c0_20, %c0_21], %53 {strides = array<i32>} : memref<1x2x128xi32, #tpu.memory_space<vmem>>, vector<1x2x128xi32>,
    return
  }
  func.func @transform_0(%arg0: i32, %arg1: i32) -> (i32, i32, i32) {
    %c0_i32 = arith.constant 0 : i32
    %c0_i32_0 = arith.constant 0 : i32
    return %arg0, %c0_i32, %arg1 : i32, i32, i32
  }
  func.func @transform_1(%arg0: i32, %arg1: i32) -> (i32, i32) {
    %c0_i32 = arith.constant 0 : i32
    %c0_i32_0 = arith.constant 0 : i32
    %c0_i32_1 = arith.constant 0 : i32
    return %c0_i32, %c0_i32_0 : i32, i32
  }
  func.func @transform_2(%arg0: i32, %arg1: i32) -> (i32, i32) {
    %c0_i32 = arith.constant 0 : i32
    %c0_i32_0 = arith.constant 0 : i32
    %c0_i32_1 = arith.constant 0 : i32
    return %c0_i32, %c0_i32_0 : i32, i32
  }
  func.func @transform_3(%arg0: i32, %arg1: i32) -> (i32, i32) {
    %c0_i32 = arith.constant 0 : i32
    %c0_i32_0 = arith.constant 0 : i32
    return %c0_i32, %arg1 : i32, i32
  }
  func.func @transform_4(%arg0: i32, %arg1: i32) -> (i32, i32, i32) {
    %c0_i32 = arith.constant 0 : i32
    %c0_i32_0 = arith.constant 0 : i32
    return %arg0, %c0_i32, %arg1 : i32, i32, i32
  }
  func.func @transform_5(%arg0: i32, %arg1: i32) -> (i32, i32, i32) {
    %c0_i32 = arith.constant 0 : i32
    %c0_i32_0 = arith.constant 0 : i32
    return %arg0, %c0_i32, %arg1 : i32, i32, i32
  }
}

</mosaic_0001>

<llo_original>
// kernel: gnn_model_forward.3
$region0: #{gnn_model_forward.3}
  #allocation0 [shape = 'u32[]', space=smem, size = 0x4, offset = 0x4, fixed_abs, tag = 'smem constant byte address 0x4 - core index']
  #allocation1 [shape = 'u32[144,128]{1,0:T(1,128)}', space=vmem, size = 0x12000, scoped, tag = 'internal scratch']
  %s0 = inlined_call_operand.vmem [shape: bf16[2,128,128], index: 0, kind: input, shape index: {}]
  %s1 = inlined_call_operand.vmem [shape: bf16[112,128], index: 1, kind: input, shape index: {}]
  %s2 = inlined_call_operand.vmem [shape: f32[112,1], index: 2, kind: input, shape index: {}]
  %s3 = inlined_call_operand.vmem [shape: f32[2,128], index: 3, kind: input, shape index: {}]
  %s4 = inlined_call_operand.vmem [shape: f32[2,5,128], index: 4, kind: output, shape index: {0}]
  %s5 = inlined_call_operand.vmem [shape: s32[2,2,128], index: 5, kind: output, shape index: {1}]
  %6 = xla_tuple %s4, %s5
  %s7 = sld [smem:[#allocation0]]
  $region57: #{gnn_model_forward.3} parent=0
    _
  %s9 = ssub.s32 1, %s7
  %s10 = scalar_select 0, %s9, %s7
  loop: start=0, step=1, limit=4
  $region2: #{gnn_model_forward.3} parent=0 // loop_pre_header
    _
  $region3: #{gnn_model_forward.3} parent=0 // loop_header
    %s12 = sphi 0, %s16
    %p13 = scmp.ge.s32.totalorder %s12, 4
    %s19 = sphi 0, %s31
    %s20 = sphi 0, %s27
    %s21 = sphi 0, %s19
    %s22 = sphi 0, %s20
    %s23 = sphi 0, %s21
    %s24 = sphi 0, %s22
    %s36 = sphi 0, %s38
    %s39 = sphi 0, %s36
    %s40 = sphi 0, %s39
    %s56 = sphi 0, %s40
    %s60 = sphi 0, %s60
    %s62 = sphi 0, %s60
    %s63 = sphi 0, %s62
    %s77 = sphi 0, %s63
    %s81 = sphi 0, %s81
    %s83 = sphi 0, %s81
    %s84 = sphi 0, %s83
    %s98 = sphi 0, %s84
    %s104 = sphi 0, %s106
    %s107 = sphi 0, %s104
    %s108 = sphi 0, %s107
    %s124 = sphi 0, %s108
    %s132 = sphi 0, %s134
    %s135 = sphi 0, %s132
    %s136 = sphi 0, %s135
    %s152 = sphi 0, %s136
    %s160 = sphi 0, %s162
    %s163 = sphi 0, %s160
    %s164 = sphi 0, %s163
    %s180 = sphi 0, %s164
  $region4: #{gnn_model_forward.3} parent=0 // loop_header_branch
    %15 = sbr.rel (%p13) target = $region8
  $region5: #{gnn_model_forward.3} parent=0 // loop_body
    %s17 = ssub.s32 %s12, 1
    %s18 = ssub.s32 %s12, 2
    %s25 = sadd.s32 1, %s20
    %p26 = scmp.ge.s32.totalorder %s25, 1
    %s27 = scalar_select %p26, 0, %s25
    %s28 = sadd.s32 1, %s19
    %s29 = scalar_select %p26, %s28, %s19
    %p30 = scmp.ge.s32.totalorder %s29, 2
    %s31 = scalar_select %p30, 0, %s29
    %s32 = ssub.s32 %s19, %s31
    %s33 = ssub.s32 %s20, %s27
    %s34 = sor.u32 %s32, %s33
    %p35 = scmp.eq.s32.totalorder %s34, 0
    %s37 = sadd.s32 %s36, 1
    %s38 = scalar_select %p35, %s36, %s37
    %p41 = pneg %p35
    %p42 = scmp.eq.s32.totalorder %s12, 1
    %p43 = por %p41, %p42
    %p44 = scmp.ne.s32.totalorder %s36, %s39
    %p45 = scmp.eq.s32.totalorder %s12, 0
    %p46 = por %p44, %p45
    %p47 = scmp.ne.s32.totalorder %s36, %s39
    %p48 = scmp.eq.s32.totalorder %s17, 1
    %p49 = por %p47, %p48
    %p50 = scmp.ne.s32.totalorder %s39, %s40
    %p51 = scmp.eq.s32.totalorder %s17, 0
    %p52 = por %p50, %p51
    %p53 = scmp.ne.s32.totalorder %s39, %s40
    %p54 = scmp.eq.s32.totalorder %s18, 1
    %p55 = por %p53, %p54
    %p57 = scmp.ne.s32.totalorder %s40, %s56
    %p58 = scmp.eq.s32.totalorder %s18, 0
    %p59 = por %p57, %p58
    %s61 = sadd.s32 %s60, 1
    %p64 = scmp.eq.s32.totalorder %s12, 1
    %p65 = scmp.ne.s32.totalorder %s60, %s62
    %p66 = scmp.eq.s32.totalorder %s12, 0
    %p67 = por %p65, %p66
    %p68 = scmp.ne.s32.totalorder %s60, %s62
    %p69 = scmp.eq.s32.totalorder %s17, 1
    %p70 = por %p68, %p69
    %p71 = scmp.ne.s32.totalorder %s62, %s63
    %p72 = scmp.eq.s32.totalorder %s17, 0
    %p73 = por %p71, %p72
    %p74 = scmp.ne.s32.totalorder %s62, %s63
    %p75 = scmp.eq.s32.totalorder %s18, 1
    %p76 = por %p74, %p75
    %p78 = scmp.ne.s32.totalorder %s63, %s77
    %p79 = scmp.eq.s32.totalorder %s18, 0
    %p80 = por %p78, %p79
    %s82 = sadd.s32 %s81, 1
    %p85 = scmp.eq.s32.totalorder %s12, 1
    %p86 = scmp.ne.s32.totalorder %s81, %s83
    %p87 = scmp.eq.s32.totalorder %s12, 0
    %p88 = por %p86, %p87
    %p89 = scmp.ne.s32.totalorder %s81, %s83
    %p90 = scmp.eq.s32.totalorder %s17, 1
    %p91 = por %p89, %p90
    %p92 = scmp.ne.s32.totalorder %s83, %s84
    %p93 = scmp.eq.s32.totalorder %s17, 0
    %p94 = por %p92, %p93
    %p95 = scmp.ne.s32.totalorder %s83, %s84
    %p96 = scmp.eq.s32.totalorder %s18, 1
    %p97 = por %p95, %p96
    %p99 = scmp.ne.s32.totalorder %s84, %s98
    %p100 = scmp.eq.s32.totalorder %s18, 0
    %p101 = por %p99, %p100
    %s102 = ssub.s32 %s20, %s27
    %p103 = scmp.eq.s32.totalorder %s102, 0
    %s105 = sadd.s32 %s104, 1
    %s106 = scalar_select %p103, %s104, %s105
    %p109 = pneg %p103
    %p110 = scmp.eq.s32.totalorder %s12, 1
    %p111 = por %p109, %p110
    %p112 = scmp.ne.s32.totalorder %s104, %s107
    %p113 = scmp.eq.s32.totalorder %s12, 0
    %p114 = por %p112, %p113
    %p115 = scmp.ne.s32.totalorder %s104, %s107
    %p116 = scmp.eq.s32.totalorder %s17, 1
    %p117 = por %p115, %p116
    %p118 = scmp.ne.s32.totalorder %s107, %s108
    %p119 = scmp.eq.s32.totalorder %s17, 0
    %p120 = por %p118, %p119
    %p121 = scmp.ne.s32.totalorder %s107, %s108
    %p122 = scmp.eq.s32.totalorder %s18, 1
    %p123 = por %p121, %p122
    %p125 = scmp.ne.s32.totalorder %s108, %s124
    %p126 = scmp.eq.s32.totalorder %s18, 0
    %p127 = por %p125, %p126
    %s128 = ssub.s32 %s19, %s31
    %s129 = ssub.s32 %s20, %s27
    %s130 = sor.u32 %s128, %s129
    %p131 = scmp.eq.s32.totalorder %s130, 0
    %s133 = sadd.s32 %s132, 1
    %s134 = scalar_select %p131, %s132, %s133
    %p137 = pneg %p131
    %p138 = scmp.eq.s32.totalorder %s12, 1
    %p139 = por %p137, %p138
    %p140 = scmp.ne.s32.totalorder %s132, %s135
    %p141 = scmp.eq.s32.totalorder %s12, 0
    %p142 = por %p140, %p141
    %p143 = scmp.ne.s32.totalorder %s132, %s135
    %p144 = scmp.eq.s32.totalorder %s17, 1
    %p145 = por %p143, %p144
    %p146 = scmp.ne.s32.totalorder %s135, %s136
    %p147 = scmp.eq.s32.totalorder %s17, 0
    %p148 = por %p146, %p147
    %p149 = scmp.ne.s32.totalorder %s135, %s136
    %p150 = scmp.eq.s32.totalorder %s18, 1
    %p151 = por %p149, %p150
    %p153 = scmp.ne.s32.totalorder %s136, %s152
    %p154 = scmp.eq.s32.totalorder %s18, 0
    %p155 = por %p153, %p154
    %s156 = ssub.s32 %s19, %s31
    %s157 = ssub.s32 %s20, %s27
    %s158 = sor.u32 %s156, %s157
    %p159 = scmp.eq.s32.totalorder %s158, 0
    %s161 = sadd.s32 %s160, 1
    %s162 = scalar_select %p159, %s160, %s161
    %p165 = pneg %p159
    %p166 = scmp.eq.s32.totalorder %s12, 1
    %p167 = por %p165, %p166
    %p168 = scmp.ne.s32.totalorder %s160, %s163
    %p169 = scmp.eq.s32.totalorder %s12, 0
    %p170 = por %p168, %p169
    %p171 = scmp.ne.s32.totalorder %s160, %s163
    %p172 = scmp.eq.s32.totalorder %s17, 1
    %p173 = por %p171, %p172
    %p174 = scmp.ne.s32.totalorder %s163, %s164
    %p175 = scmp.eq.s32.totalorder %s17, 0
    %p176 = por %p174, %p175
    %p177 = scmp.ne.s32.totalorder %s163, %s164
    %p178 = scmp.eq.s32.totalorder %s18, 1
    %p179 = por %p177, %p178
    %p181 = scmp.ne.s32.totalorder %s164, %s180
    %p182 = scmp.eq.s32.totalorder %s18, 0
    %p183 = por %p181, %p182
    %p184 = scmp.le.s32.totalorder 1, %s12
    %p185 = scmp.lt.s32.totalorder %s12, 3
    %p186 = pnand %p184, %p185
    %p187 = pneg %p186
    // Predicated region
    $region9: #{gnn_model_forward.3} parent=5 // pred_check
      _
    $region10: #{gnn_model_forward.3} parent=5 // pred_check_branch
      %189 = sbr.rel (%p186) target = $region12
    $region11: #{gnn_model_forward.3} parent=5 // pred_region
      %s190 = ssub.s32 %s12, 1
      // Predicated region
      $region13: #{gnn_model_forward.3} parent=11 // pred_check
        %p191 = pneg %p73
      $region14: #{gnn_model_forward.3} parent=11 // pred_check_branch
        %193 = sbr.rel (%p191) target = $region16
      $region15: #{gnn_model_forward.3} parent=11 // pred_region
        _
      $region16: #{gnn_model_forward.3} parent=11 // pred_fallthru
        _
      // Predicated region
      $region17: #{gnn_model_forward.3} parent=11 // pred_check
        %p194 = pneg %p94
      $region18: #{gnn_model_forward.3} parent=11 // pred_check_branch
        %196 = sbr.rel (%p194) target = $region20
      $region19: #{gnn_model_forward.3} parent=11 // pred_region
        _
      $region20: #{gnn_model_forward.3} parent=11 // pred_fallthru
        _
      // Predicated region
      $region21: #{gnn_model_forward.3} parent=11 // pred_check
        %p197 = pneg %p120
      $region22: #{gnn_model_forward.3} parent=11 // pred_check_branch
        %199 = sbr.rel (%p197) target = $region24
      $region23: #{gnn_model_forward.3} parent=11 // pred_region
        %p200 = scmp.lt.s32.totalorder %s22, 0
        %s201 = scalar_select %p200, %s22, 0
        %s202 = smul.addr %s201, 2
        %s203 = scalar_lea.vmem %s3, %s202
      $region24: #{gnn_model_forward.3} parent=11 // pred_fallthru
        _
    $region12: #{gnn_model_forward.3} parent=5 // pred_fallthru
      _
    %p204 = scmp.lt.s32.totalorder %s12, 2
    // Predicated region
    $region25: #{gnn_model_forward.3} parent=5 // pred_check
      %p205 = pneg %p204
    $region26: #{gnn_model_forward.3} parent=5 // pred_check_branch
      %207 = sbr.rel (%p205) target = $region28
    $region27: #{gnn_model_forward.3} parent=5 // pred_region
      // Predicated region
      $region29: #{gnn_model_forward.3} parent=27 // pred_check
        %p208 = pneg %p46
      $region30: #{gnn_model_forward.3} parent=27 // pred_check_branch
        %210 = sbr.rel (%p208) target = $region32
      $region31: #{gnn_model_forward.3} parent=27 // pred_region
        %p211 = scmp.lt.s32.totalorder %s19, 1
        %s212 = scalar_select %p211, %s19, 1
        %p213 = scmp.lt.s32.totalorder %s20, 0
        %s214 = scalar_select %p213, %s20, 0
        %s215 = smul.addr %s212, 16
        %s216 = sadd.s32 %s214, %s215
        %s217 = smul.addr %s216, 4
        %s218 = scalar_lea.vmem %s0, %s217
      $region32: #{gnn_model_forward.3} parent=27 // pred_fallthru
        _
    $region28: #{gnn_model_forward.3} parent=5 // pred_fallthru
      _
    %p219 = scmp.le.s32.totalorder 1, %s12
    %p220 = scmp.lt.s32.totalorder %s12, 3
    %p221 = pnand %p219, %p220
    %p222 = pneg %p221
    // Predicated region
    $region33: #{gnn_model_forward.3} parent=5 // pred_check
      _
    $region34: #{gnn_model_forward.3} parent=5 // pred_check_branch
      %224 = sbr.rel (%p221) target = $region36
    $region35: #{gnn_model_forward.3} parent=5 // pred_region
      %s225 = ssub.s32 %s12, 1
      %p226 = scmp.lt.s32.totalorder %s21, 1
      %s227 = scalar_select %p226, %s21, 1
      %p228 = scmp.lt.s32.totalorder %s22, 0
      %s229 = scalar_select %p228, %s22, 0
      %s230 = smul.addr %s227, 16
      %s231 = sadd.s32 %s229, %s230
      %s232 = smul.addr %s231, 4
      %s233 = scalar_lea.vmem %s0, %s232
      %p234 = pneg %p52
      %p235 = pneg %p49
      %p236 = pneg %p73
      %p237 = pneg %p70
      %p238 = pneg %p94
      %p239 = pneg %p91
      %p240 = scmp.lt.s32.totalorder %s22, 0
      %s241 = scalar_select %p240, %s22, 0
      %s242 = smul.addr %s241, 2
      %s243 = scalar_lea.vmem %s3, %s242
      %p244 = pneg %p120
      %p245 = pneg %p117
      %p246 = pneg %p148
      %p247 = pneg %p145
      %p248 = scmp.lt.s32.totalorder %s21, 1
      %s249 = scalar_select %p248, %s21, 1
      %p250 = scmp.lt.s32.totalorder %s22, 0
      %s251 = scalar_select %p250, %s22, 0
      %s252 = sadd.s32 %s251, %s249
      %s253 = smul.addr %s252, 8
      %s254 = scalar_lea.vmem %s4, %s253
      %p255 = pneg %p176
      %p256 = pneg %p173
      %p257 = scmp.lt.s32.totalorder %s21, 1
      %s258 = scalar_select %p257, %s21, 1
      %p259 = scmp.lt.s32.totalorder %s22, 0
      %s260 = scalar_select %p259, %s22, 0
      %s261 = sadd.s32 %s260, %s258
      %s262 = smul.addr %s261, 2
      %s263 = scalar_lea.vmem %s5, %s262
      %p264 = scmp.lt.s32.totalorder %s21, 1
      %s265 = scalar_select %p264, %s21, 1
      %p266 = scmp.lt.s32.totalorder %s22, 0
      %s267 = scalar_select %p266, %s22, 0
      %s268 = smul.addr %s265, 16
      %s269 = sadd.s32 %s267, %s268
      %s270 = smul.addr %s269, 4
      %s271 = scalar_lea.vmem %s0, %s270
      %p272 = scmp.lt.s32.totalorder %s22, 0
      %s273 = scalar_select %p272, %s22, 0
      %s274 = smul.addr %s273, 2
      %s275 = scalar_lea.vmem %s3, %s274
      %p276 = scmp.lt.s32.totalorder %s21, 1
      %s277 = scalar_select %p276, %s21, 1
      %p278 = scmp.lt.s32.totalorder %s22, 0
      %s279 = scalar_select %p278, %s22, 0
      %s280 = sadd.s32 %s279, %s277
      %s281 = smul.addr %s280, 8
      %s282 = scalar_lea.vmem %s4, %s281
      %p283 = scmp.lt.s32.totalorder %s21, 1
      %s284 = scalar_select %p283, %s21, 1
      %p285 = scmp.lt.s32.totalorder %s22, 0
      %s286 = scalar_select %p285, %s22, 0
      %s287 = sadd.s32 %s286, %s284
      %s288 = smul.addr %s287, 2
      %s289 = scalar_lea.vmem %s5, %s288
      %v291 = vld [vmem:[%s271] sm:$0xf]
      %v292 = vld [vmem:[%s271 + $0x4] sm:$0xf]
      %v293 = vld [vmem:[%s271 + $0x8] sm:$0xf]
      %v294 = vld [vmem:[%s271 + $0xc] sm:$0xf]
      %v295 = vld [vmem:[%s271 + $0x10] sm:$0xf]
      %v296 = vld [vmem:[%s271 + $0x14] sm:$0xf]
      %v297 = vld [vmem:[%s271 + $0x18] sm:$0xf]
      %v298 = vld [vmem:[%s271 + $0x1c] sm:$0xf]
      %v299 = vld [vmem:[%s271 + $0x20] sm:$0xf]
      %v300 = vld [vmem:[%s271 + $0x24] sm:$0xf]
      %v301 = vld [vmem:[%s271 + $0x28] sm:$0xf]
      %v302 = vld [vmem:[%s271 + $0x2c] sm:$0xf]
      %v303 = vld [vmem:[%s271 + $0x30] sm:$0xf]
      %v304 = vld [vmem:[%s271 + $0x34] sm:$0xf]
      %v305 = vld [vmem:[%s271 + $0x38] sm:$0xf]
      %v306 = vld [vmem:[%s271 + $0x3c] sm:$0xf]
      %v307 = vld [vmem:[%s1] sm:$0xf]
      %v308 = vld [vmem:[%s1 + $0x4] sm:$0xf]
      %v309 = vld [vmem:[%s1 + $0x8] sm:$0xf]
      %v310 = vld [vmem:[%s1 + $0xc] sm:$0xf]
      %v311 = vld [vmem:[%s1 + $0x10] sm:$0xf]
      %v312 = vld [vmem:[%s1 + $0x14] sm:$0xf]
      %v313 = vld [vmem:[%s1 + $0x18] sm:$0xf]
      %v314 = vld [vmem:[%s1 + $0x1c] sm:$0xf]
      %v315 = vld [vmem:[%s1 + $0x20] sm:$0xf]
      %v316 = vld [vmem:[%s1 + $0x24] sm:$0xf]
      %v317 = vld [vmem:[%s1 + $0x28] sm:$0xf]
      %v318 = vld [vmem:[%s1 + $0x2c] sm:$0xf]
      %v319 = vld [vmem:[%s1 + $0x30] sm:$0xf]
      %v320 = vld [vmem:[%s1 + $0x34] sm:$0xf]
      %v321 = vld [vmem:[%s2] sm:$0xff]
      %v322 = vld [vmem:[%s2 + $0x8] sm:$0xff]
      %v323 = vld [vmem:[%s2 + $0x10] sm:$0xff]
      %v324 = vld [vmem:[%s2 + $0x18] sm:$0xff]
      %v325 = vld [vmem:[%s2 + $0x20] sm:$0xff]
      %v326 = vld [vmem:[%s2 + $0x28] sm:$0xff]
      %v327 = vld [vmem:[%s2 + $0x30] sm:$0xff]
      %v328 = vld [vmem:[%s2 + $0x38] sm:$0xff]
      %v329 = vld [vmem:[%s2 + $0x40] sm:$0xff]
      %v330 = vld [vmem:[%s2 + $0x48] sm:$0xff]
      %v331 = vld [vmem:[%s2 + $0x50] sm:$0xff]
      %v332 = vld [vmem:[%s2 + $0x58] sm:$0xff]
      %v333 = vld [vmem:[%s2 + $0x60] sm:$0xff]
      %v334 = vld [vmem:[%s2 + $0x68] sm:$0xff]
      %336 = vset.pattern.permute.xlu0 0
      %337 = vperm.xlu0 %336, %v321
      %v338 = vpop.permute.xlu0 %337
      %341 = vset.pattern.permute.xlu0 0
      %342 = vperm.xlu0 %341, %v322
      %v343 = vpop.permute.xlu0 %342
      %346 = vset.pattern.permute.xlu0 0
      %347 = vperm.xlu0 %346, %v323
      %v348 = vpop.permute.xlu0 %347
      %351 = vset.pattern.permute.xlu0 0
      %352 = vperm.xlu0 %351, %v324
      %v353 = vpop.permute.xlu0 %352
      %356 = vset.pattern.permute.xlu0 0
      %357 = vperm.xlu0 %356, %v325
      %v358 = vpop.permute.xlu0 %357
      %361 = vset.pattern.permute.xlu0 0
      %362 = vperm.xlu0 %361, %v326
      %v363 = vpop.permute.xlu0 %362
      %366 = vset.pattern.permute.xlu0 0
      %367 = vperm.xlu0 %366, %v327
      %v368 = vpop.permute.xlu0 %367
      %371 = vset.pattern.permute.xlu0 0
      %372 = vperm.xlu0 %371, %v328
      %v373 = vpop.permute.xlu0 %372
      %376 = vset.pattern.permute.xlu0 0
      %377 = vperm.xlu0 %376, %v329
      %v378 = vpop.permute.xlu0 %377
      %381 = vset.pattern.permute.xlu0 0
      %382 = vperm.xlu0 %381, %v330
      %v383 = vpop.permute.xlu0 %382
      %386 = vset.pattern.permute.xlu0 0
      %387 = vperm.xlu0 %386, %v331
      %v388 = vpop.permute.xlu0 %387
      %391 = vset.pattern.permute.xlu0 0
      %392 = vperm.xlu0 %391, %v332
      %v393 = vpop.permute.xlu0 %392
      %396 = vset.pattern.permute.xlu0 0
      %397 = vperm.xlu0 %396, %v333
      %v398 = vpop.permute.xlu0 %397
      %401 = vset.pattern.permute.xlu0 0
      %402 = vperm.xlu0 %401, %v334
      %v403 = vpop.permute.xlu0 %402
      %v419 = vunpack.c.l.b16 %v307
      %v420 = vunpack.c.l.b16 %v308
      %v421 = vunpack.c.l.b16 %v309
      %v422 = vunpack.c.l.b16 %v310
      %v423 = vunpack.c.l.b16 %v311
      %v424 = vunpack.c.l.b16 %v312
      %v425 = vunpack.c.l.b16 %v313
      %v426 = vunpack.c.l.b16 %v314
      %v427 = vunpack.c.l.b16 %v315
      %v428 = vunpack.c.l.b16 %v316
      %v429 = vunpack.c.l.b16 %v317
      %v430 = vunpack.c.l.b16 %v318
      %v431 = vunpack.c.l.b16 %v319
      %v432 = vunpack.c.l.b16 %v320
      %v433 = vpack.c.b16 %v420, %v419
      %v434 = vpack.c.b16 %v422, %v421
      %v435 = vpack.c.b16 %v424, %v423
      %v436 = vpack.c.b16 %v426, %v425
      %v437 = vpack.c.b16 %v428, %v427
      %v438 = vpack.c.b16 %v430, %v429
      %v439 = vpack.c.b16 %v432, %v431
      %v463 = vunpack.c.l.b16 %v291
      %v464 = vunpack.c.l.b16 %v292
      %v465 = vunpack.c.l.b16 %v293
      %v466 = vunpack.c.l.b16 %v294
      %v467 = vunpack.c.l.b16 %v295
      %v468 = vunpack.c.l.b16 %v296
      %v469 = vunpack.c.l.b16 %v297
      %v470 = vunpack.c.l.b16 %v298
      %v471 = vunpack.c.l.b16 %v299
      %v472 = vunpack.c.l.b16 %v300
      %v473 = vunpack.c.l.b16 %v301
      %v474 = vunpack.c.l.b16 %v302
      %v475 = vunpack.c.l.b16 %v303
      %v476 = vunpack.c.l.b16 %v304
      %v477 = vunpack.c.l.b16 %v305
      %v478 = vunpack.c.l.b16 %v306
      %v479 = vpack.c.b16 %v464, %v463
      %v480 = vpack.c.b16 %v466, %v465
      %v481 = vpack.c.b16 %v468, %v467
      %v482 = vpack.c.b16 %v470, %v469
      %v483 = vpack.c.b16 %v472, %v471
      %v484 = vpack.c.b16 %v474, %v473
      %v485 = vpack.c.b16 %v476, %v475
      %v486 = vpack.c.b16 %v478, %v477
      %495 = vmatprep.subr.bf16.mxu0 0
      %496 = vmatpush1.bf16.msra.mxu0 %v479
      %497 = vmatprep.subr.bf16.mxu0 0
      %498 = vmatpush1.bf16.msra.mxu0 %v480
      %499 = vmatprep.subr.bf16.mxu0 0
      %500 = vmatpush1.bf16.msra.mxu0 %v481
      %501 = vmatprep.subr.bf16.mxu0 0
      %502 = vmatpush1.bf16.msra.mxu0 %v482
      %503 = vmatprep.subr.bf16.mxu0 0
      %504 = vmatpush1.bf16.msra.mxu0 %v483
      %505 = vmatprep.subr.bf16.mxu0 0
      %506 = vmatpush1.bf16.msra.mxu0 %v484
      %507 = vmatprep.subr.bf16.mxu0 0
      %508 = vmatpush1.bf16.msra.mxu0 %v485
      %509 = vmatprep.subr.bf16.mxu0 0
      %510 = vmatpush1.bf16.msra.mxu0 %v486
      %511 = vmatprep.subr.bf16.mxu0 0
      %512 = vmatpush1.bf16.msra.mxu0 0
      %513 = vmatprep.subr.bf16.mxu0 0
      %514 = vmatpush1.bf16.msra.mxu0 0
      %515 = vmatprep.subr.bf16.mxu0 0
      %516 = vmatpush1.bf16.msra.mxu0 0
      %517 = vmatprep.subr.bf16.mxu0 0
      %518 = vmatpush1.bf16.msra.mxu0 0
      %519 = vmatprep.subr.bf16.mxu0 0
      %520 = vmatpush1.bf16.msra.mxu0 0
      %521 = vmatprep.subr.bf16.mxu0 0
      %522 = vmatpush1.bf16.msra.mxu0 0
      %523 = vmatprep.subr.bf16.mxu0 0
      %524 = vmatpush1.bf16.msra.mxu0 0
      %525 = vmatprep.subr.bf16.mxu0 0
      %526 = vmatpush1.bf16.msra.mxu0 0
      %527 = vmatprep.mubr.bf16.mxu0 0
      %528 = vmatmul.mubr.bf16.gmra.mrb[0].mxu0 %v433
      %v529 = vpop.f32.mrb[0].mxu0
      %v530 = vadd.f32 %v338, %v529
      %v531 = vpop.f32.mrb[0].mxu0
      %v532 = vpop.f32.mrb[0].mxu0
      %v533 = vadd.f32 %v343, %v532
      %v534 = vpop.f32.mrb[0].mxu0
      %535 = vmatprep.mubr.bf16.mxu0 0
      %536 = vmatmul.mubr.bf16.gmra.mrb[0].mxu0 %v434
      %v537 = vpop.f32.mrb[0].mxu0
      %v538 = vadd.f32 %v348, %v537
      %v539 = vpop.f32.mrb[0].mxu0
      %v540 = vpop.f32.mrb[0].mxu0
      %v541 = vadd.f32 %v353, %v540
      %v542 = vpop.f32.mrb[0].mxu0
      %543 = vmatprep.mubr.bf16.mxu0 0
      %544 = vmatmul.mubr.bf16.gmra.mrb[0].mxu0 %v435
      %v545 = vpop.f32.mrb[0].mxu0
      %v546 = vadd.f32 %v358, %v545
      %v547 = vpop.f32.mrb[0].mxu0
      %v548 = vpop.f32.mrb[0].mxu0
      %v549 = vadd.f32 %v363, %v548
      %v550 = vpop.f32.mrb[0].mxu0
      %551 = vmatprep.mubr.bf16.mxu0 0
      %552 = vmatmul.mubr.bf16.gmra.mrb[0].mxu0 %v436
      %v553 = vpop.f32.mrb[0].mxu0
      %v554 = vadd.f32 %v368, %v553
      %v555 = vpop.f32.mrb[0].mxu0
      %v556 = vpop.f32.mrb[0].mxu0
      %v557 = vadd.f32 %v373, %v556
      %v558 = vpop.f32.mrb[0].mxu0
      %559 = vmatprep.mubr.bf16.mxu0 0
      %560 = vmatmul.mubr.bf16.gmra.mrb[0].mxu0 %v437
      %v561 = vpop.f32.mrb[0].mxu0
      %v562 = vadd.f32 %v378, %v561
      %v563 = vpop.f32.mrb[0].mxu0
      %v564 = vpop.f32.mrb[0].mxu0
      %v565 = vadd.f32 %v383, %v564
      %v566 = vpop.f32.mrb[0].mxu0
      %567 = vmatprep.mubr.bf16.mxu0 0
      %568 = vmatmul.mubr.bf16.gmra.mrb[0].mxu0 %v438
      %v569 = vpop.f32.mrb[0].mxu0
      %v570 = vadd.f32 %v388, %v569
      %v571 = vpop.f32.mrb[0].mxu0
      %v572 = vpop.f32.mrb[0].mxu0
      %v573 = vadd.f32 %v393, %v572
      %v574 = vpop.f32.mrb[0].mxu0
      %575 = vmatprep.mubr.bf16.mxu0 0
      %576 = vmatmul.mubr.bf16.gmra.mrb[0].mxu0 %v439
      %v577 = vpop.f32.mrb[0].mxu0
      %v578 = vadd.f32 %v398, %v577
      %v579 = vpop.f32.mrb[0].mxu0
      %v580 = vpop.f32.mrb[0].mxu0
      %v581 = vadd.f32 %v403, %v580
      %v582 = vpop.f32.mrb[0].mxu0
      %583 = vdwg.mxu0
      %v584 = vld [vmem:[%s275] sm:$0x3]
      %v585 = vadd.f32 %v530, %v584
      %v586 = vmul.f32 %v585, 4.0
      %v587 = vmul.f32 %v530, 1.442695
      %v588 = vpow.pop %v587
      %v589 = vmul.f32 %v588, 4.0
      %v590 = vxor.u32 %v530, 2147483648
      %v591 = vmul.f32 %v590, 1.442695
      %v592 = vpow.pop %v591
      %v593 = vadd.f32 %v592, 1.0
      %v594 = vrcp.pop %v593
      %v595 = vmul.f32 1.0, %v594
      %vm596 = vcmask 1047557
      %v597 = vsel %vm596, %v530, -inf
      %v598 = vmax.f32 %v597, %v546
      %v599 = vmax.f32 %v533, %v549
      %v600 = vmax.f32 %v538, %v554
      %v601 = vmax.f32 %v541, %v557
      %v602 = vmax.f32 %v598, %v562
      %v603 = vmax.f32 %v599, %v565
      %v604 = vmax.f32 %v600, %v570
      %v605 = vmax.f32 %v601, %v573
      %v606 = vmax.f32 %v602, %v578
      %vm607 = vcmask 1040384
      %v608 = vsel %vm607, %v581, -inf
      %v609 = vmax.f32 %v603, %v608
      %v610 = vmax.f32 %v606, %v609
      %v611 = vmax.f32 %v604, %v605
      %v612 = vmax.f32 %v610, %v611
      %v613 = vrot.slane %v612, 4
      %v614 = vmax.f32 %v612, %v613
      %v615 = vrot.slane %v614, 2
      %v616 = vmax.f32 %v614, %v615
      %v617 = vrot.slane %v616, 1
      %v618 = vmax.f32 %v616, %v617
      %v619 = vxor.u32 %v618, 2147483648
      %v620 = vmul.f32 %v619, 1.442695
      %v621 = vpow.pop %v620
      %v622 = vadd.f32 %v621, 1.0
      %v623 = vrcp.pop %v622
      %v624 = vmul.f32 1.0, %v623
      %v625 = vlaneseq
      %v626 = vshrl.u32 %v625, 7
      %v627 = vadd.s32 %v626, 8
      %v628 = vadd.s32 %v626, 16
      %v629 = vadd.s32 %v626, 24
      %v630 = vadd.s32 %v626, 32
      %v631 = vadd.s32 %v626, 40
      %v632 = vadd.s32 %v626, 48
      %v633 = vadd.s32 %v626, 56
      %v634 = vadd.s32 %v626, 64
      %v635 = vadd.s32 %v626, 72
      %v636 = vadd.s32 %v626, 80
      %v637 = vadd.s32 %v626, 88
      %v638 = vadd.s32 %v626, 96
      %vm639 = vcmp.eq.f32.partialorder %v530, %v618
      %vm640 = vcmp.eq.f32.partialorder %v533, %v618
      %vm641 = vcmp.eq.f32.partialorder %v538, %v618
      %vm642 = vcmp.eq.f32.partialorder %v541, %v618
      %vm643 = vcmp.eq.f32.partialorder %v546, %v618
      %vm644 = vcmp.eq.f32.partialorder %v549, %v618
      %vm645 = vcmp.eq.f32.partialorder %v554, %v618
      %vm646 = vcmp.eq.f32.partialorder %v557, %v618
      %vm647 = vcmp.eq.f32.partialorder %v562, %v618
      %vm648 = vcmp.eq.f32.partialorder %v565, %v618
      %vm649 = vcmp.eq.f32.partialorder %v570, %v618
      %vm650 = vcmp.eq.f32.partialorder %v573, %v618
      %vm651 = vcmp.eq.f32.partialorder %v578, %v618
      %vm652 = vcmp.eq.f32.partialorder %v581, %v618
      %vm653 = vcmask 1044480
      %v654 = vrot.slane %v626, 3
      %v655 = vrot.slane %v627, 3
      %v656 = vsel %vm653, %v654, %v655
      %v657 = vrot.slane %v628, 3
      %v658 = vsel %vm653, %v655, %v657
      %v659 = vrot.slane %v629, 3
      %v660 = vsel %vm653, %v657, %v659
      %v661 = vrot.slane %v630, 3
      %v662 = vsel %vm653, %v659, %v661
      %v663 = vrot.slane %v631, 3
      %v664 = vsel %vm653, %v661, %v663
      %v665 = vrot.slane %v632, 3
      %v666 = vsel %vm653, %v663, %v665
      %v667 = vrot.slane %v633, 3
      %v668 = vsel %vm653, %v665, %v667
      %v669 = vrot.slane %v634, 3
      %v670 = vsel %vm653, %v667, %v669
      %v671 = vrot.slane %v635, 3
      %v672 = vsel %vm653, %v669, %v671
      %v673 = vrot.slane %v636, 3
      %v674 = vsel %vm653, %v671, %v673
      %v675 = vrot.slane %v637, 3
      %v676 = vsel %vm653, %v673, %v675
      %v677 = vrot.slane %v638, 3
      %v678 = vsel %vm653, %v675, %v677
      %v679 = vsel %vm639, %v654, 100
      %v680 = vsel %vm640, %v656, 100
      %v681 = vsel %vm641, %v658, 100
      %v682 = vsel %vm642, %v660, 100
      %v683 = vsel %vm643, %v662, 100
      %v684 = vsel %vm644, %v664, 100
      %v685 = vsel %vm645, %v666, 100
      %v686 = vsel %vm646, %v668, 100
      %v687 = vsel %vm647, %v670, 100
      %v688 = vsel %vm648, %v672, 100
      %v689 = vsel %vm649, %v674, 100
      %v690 = vsel %vm650, %v676, 100
      %v691 = vsel %vm651, %v678, 100
      %v692 = vsel %vm652, %v677, 100
      %v693 = vsel %vm596, %v679, 2147483647
      %vm694 = vcmp.lt.s32.totalorder %v693, %v683
      %v695 = vsel %vm694, %v693, %v683
      %vm696 = vcmp.lt.s32.totalorder %v680, %v684
      %v697 = vsel %vm696, %v680, %v684
      %vm698 = vcmp.lt.s32.totalorder %v681, %v685
      %v699 = vsel %vm698, %v681, %v685
      %vm700 = vcmp.lt.s32.totalorder %v682, %v686
      %v701 = vsel %vm700, %v682, %v686
      %vm702 = vcmp.lt.s32.totalorder %v695, %v687
      %v703 = vsel %vm702, %v695, %v687
      %vm704 = vcmp.lt.s32.totalorder %v697, %v688
      %v705 = vsel %vm704, %v697, %v688
      %vm706 = vcmp.lt.s32.totalorder %v699, %v689
      %v707 = vsel %vm706, %v699, %v689
      %vm708 = vcmp.lt.s32.totalorder %v701, %v690
      %v709 = vsel %vm708, %v701, %v690
      %vm710 = vcmp.lt.s32.totalorder %v703, %v691
      %v711 = vsel %vm710, %v703, %v691
      %v712 = vsel %vm607, %v692, 2147483647
      %vm713 = vcmp.lt.s32.totalorder %v705, %v712
      %v714 = vsel %vm713, %v705, %v712
      %vm715 = vcmp.lt.s32.totalorder %v711, %v714
      %v716 = vsel %vm715, %v711, %v714
      %vm717 = vcmp.lt.s32.totalorder %v707, %v709
      %v718 = vsel %vm717, %v707, %v709
      %vm719 = vcmp.lt.s32.totalorder %v716, %v718
      %v720 = vsel %vm719, %v716, %v718
      %v721 = vrot.slane %v720, 4
      %vm722 = vcmp.lt.s32.totalorder %v720, %v721
      %v723 = vsel %vm722, %v720, %v721
      %v724 = vrot.slane %v723, 2
      %vm725 = vcmp.lt.s32.totalorder %v723, %v724
      %v726 = vsel %vm725, %v723, %v724
      %v727 = vrot.slane %v726, 1
      %vm728 = vcmp.lt.s32.totalorder %v726, %v727
      %v729 = vsel %vm728, %v726, %v727
      %v730 = vmul.f32 %v589, 0.5
      %v732 = vrot.slane %v730, 2
      %v734 = vsub.f32 %v586, %v732
      %v736 = vrot.slane %v589, 2
      %v738 = vadd.f32 %v734, %v736
      %v739 = vmul.f32 %v595, %v624
      %v740 = vmul.f32 %v739, %v624
      %vm741 = vcmp.ge.f32.partialorder %v740, 0.001
      %v742 = vsel %vm741, 1, 0
      %v744 = vrot.slane %v738, 6
      %vm746 = vcmask 1041408
      %v747 = vsel %vm746, %v734, %v744
      %vm748 = vcmask 1043456
      %v749 = vsel %vm748, %v747, %v739
      %750 = vst [vmem:[%s282] sm:$0x1f] %v749
      %v751 = vrot.slane %v742, 3
      %v752 = vsel %vm607, %v729, %v751
      %753 = vst [vmem:[%s289] sm:$0x3] %v752
      %p754 = scmp.lt.s32.totalorder %s21, 1
      %s755 = scalar_select %p754, %s21, 1
      %p756 = scmp.lt.s32.totalorder %s22, 0
      %s757 = scalar_select %p756, %s22, 0
      %s758 = sadd.s32 %s757, %s755
      %s759 = smul.addr %s758, 8
      %s760 = scalar_lea.vmem %s4, %s759
      %p761 = scmp.lt.s32.totalorder %s21, 1
      %s762 = scalar_select %p761, %s21, 1
      %p763 = scmp.lt.s32.totalorder %s22, 0
      %s764 = scalar_select %p763, %s22, 0
      %s765 = sadd.s32 %s764, %s762
      %s766 = smul.addr %s765, 2
      %s767 = scalar_lea.vmem %s5, %s766
      // Predicated region
      $region37: #{gnn_model_forward.3} parent=35 // pred_check
        %p768 = pneg %p145
      $region38: #{gnn_model_forward.3} parent=35 // pred_check_branch
        %770 = sbr.rel (%p768) target = $region40
      $region39: #{gnn_model_forward.3} parent=35 // pred_region
        _
      $region40: #{gnn_model_forward.3} parent=35 // pred_fallthru
        _
      // Predicated region
      $region41: #{gnn_model_forward.3} parent=35 // pred_check
        %p771 = pneg %p173
      $region42: #{gnn_model_forward.3} parent=35 // pred_check_branch
        %773 = sbr.rel (%p771) target = $region44
      $region43: #{gnn_model_forward.3} parent=35 // pred_region
        _
      $region44: #{gnn_model_forward.3} parent=35 // pred_fallthru
        _
    $region36: #{gnn_model_forward.3} parent=5 // pred_fallthru
      _
    %p774 = scmp.le.s32.totalorder 2, %s12
    // Predicated region
    $region45: #{gnn_model_forward.3} parent=5 // pred_check
      %p775 = pneg %p774
    $region46: #{gnn_model_forward.3} parent=5 // pred_check_branch
      %777 = sbr.rel (%p775) target = $region48
    $region47: #{gnn_model_forward.3} parent=5 // pred_region
      %s778 = ssub.s32 %s12, 2
      // Predicated region
      $region49: #{gnn_model_forward.3} parent=47 // pred_check
        %p779 = pneg %p151
      $region50: #{gnn_model_forward.3} parent=47 // pred_check_branch
        %781 = sbr.rel (%p779) target = $region52
      $region51: #{gnn_model_forward.3} parent=47 // pred_region
        %p782 = scmp.lt.s32.totalorder %s23, 1
        %s783 = scalar_select %p782, %s23, 1
        %p784 = scmp.lt.s32.totalorder %s24, 0
        %s785 = scalar_select %p784, %s24, 0
        %s786 = sadd.s32 %s785, %s783
        %s787 = smul.addr %s786, 8
        %s788 = scalar_lea.vmem %s4, %s787
      $region52: #{gnn_model_forward.3} parent=47 // pred_fallthru
        _
      // Predicated region
      $region53: #{gnn_model_forward.3} parent=47 // pred_check
        %p789 = pneg %p179
      $region54: #{gnn_model_forward.3} parent=47 // pred_check_branch
        %791 = sbr.rel (%p789) target = $region56
      $region55: #{gnn_model_forward.3} parent=47 // pred_region
        %p792 = scmp.lt.s32.totalorder %s23, 1
        %s793 = scalar_select %p792, %s23, 1
        %p794 = scmp.lt.s32.totalorder %s24, 0
        %s795 = scalar_select %p794, %s24, 0
        %s796 = sadd.s32 %s795, %s793
        %s797 = smul.addr %s796, 2
        %s798 = scalar_lea.vmem %s5, %s797
      $region56: #{gnn_model_forward.3} parent=47 // pred_fallthru
        _
    $region48: #{gnn_model_forward.3} parent=5 // pred_fallthru
      _
  $region6: #{gnn_model_forward.3} parent=0 // loop_footer
    %s16 = sadd.s32 1, %s12
  $region7: #{gnn_model_forward.3} parent=0 // loop_footer_branch
    %11 = sbr.rel target = $region3
  $region8: #{gnn_model_forward.3} parent=0 // loop_exit
    _

// kernel: gnn_model_forward.2
$region0: #{gnn_model_forward.2}
  #allocation0 [shape = 'u32[]', space=smem, size = 0x4, offset = 0x4, fixed_abs, tag = 'smem constant byte address 0x4 - core index']
  #allocation1 [shape = 'u32[144,128]{1,0:T(1,128)}', space=vmem, size = 0x12000, scoped, tag = 'internal scratch']
  #allocation2 [shape = 'bf16[128,256]{1,0:T(16,128)(2,1)}', space=vmem, size = 0x10000, scoped, tag = 'scratch operand']
  %s0 = inlined_call_operand.vmem [shape: bf16[2,48,384], index: 0, kind: input, shape index: {}]
  %s1 = inlined_call_operand.vmem [shape: bf16[288,48], index: 1, kind: input, shape index: {}]
  %s2 = inlined_call_operand.vmem [shape: f32[32,1], index: 2, kind: input, shape index: {}]
  %s3 = inlined_call_operand.vmem [shape: f32[4,256], index: 3, kind: input, shape index: {}]
  %s4 = inlined_call_operand.vmem [shape: bf16[512,128], index: 4, kind: input, shape index: {}]
  %s5 = inlined_call_operand.vmem [shape: f32[128,1], index: 5, kind: input, shape index: {}]
  %s6 = inlined_call_operand.vmem [shape: bf16[2,128,128], index: 6, kind: output, shape index: {}]
  %s7 = sld [smem:[#allocation0]]
  $region57: #{gnn_model_forward.2} parent=0
    _
  %s9 = ssub.s32 1, %s7
  %s10 = scalar_select 0, %s9, %s7
  loop: start=0, step=1, limit=4
  $region2: #{gnn_model_forward.2} parent=0 // loop_pre_header
    _
  $region3: #{gnn_model_forward.2} parent=0 // loop_header
    %s12 = sphi 0, %s16
    %p13 = scmp.ge.s32.totalorder %s12, 4
    %s22 = sphi 0, %s24
    %s25 = sphi 0, %s22
    %s26 = sphi 0, %s25
    %s42 = sphi 0, %s26
    %s46 = sphi 0, %s46
    %s48 = sphi 0, %s46
    %s49 = sphi 0, %s48
    %s63 = sphi 0, %s49
    %s67 = sphi 0, %s67
    %s69 = sphi 0, %s67
    %s70 = sphi 0, %s69
    %s84 = sphi 0, %s70
    %s88 = sphi 0, %s88
    %s90 = sphi 0, %s88
    %s91 = sphi 0, %s90
    %s105 = sphi 0, %s91
    %s109 = sphi 0, %s109
    %s111 = sphi 0, %s109
    %s112 = sphi 0, %s111
    %s126 = sphi 0, %s112
    %s130 = sphi 0, %s130
    %s132 = sphi 0, %s130
    %s133 = sphi 0, %s132
    %s147 = sphi 0, %s133
    %s153 = sphi 0, %s155
    %s156 = sphi 0, %s153
    %s157 = sphi 0, %s156
    %s173 = sphi 0, %s157
  $region4: #{gnn_model_forward.2} parent=0 // loop_header_branch
    %15 = sbr.rel (%p13) target = $region8
  $region5: #{gnn_model_forward.2} parent=0 // loop_body
    %s17 = ssub.s32 %s12, 1
    %s18 = ssub.s32 %s12, 2
    %s19 = sadd.s32 %s12, 1
    %s20 = ssub.s32 %s12, %s19
    %p21 = scmp.eq.s32.totalorder %s20, 0
    %s23 = sadd.s32 %s22, 1
    %s24 = scalar_select %p21, %s22, %s23
    %p27 = pneg %p21
    %p28 = scmp.eq.s32.totalorder %s12, 1
    %p29 = por %p27, %p28
    %p30 = scmp.ne.s32.totalorder %s22, %s25
    %p31 = scmp.eq.s32.totalorder %s12, 0
    %p32 = por %p30, %p31
    %p33 = scmp.ne.s32.totalorder %s22, %s25
    %p34 = scmp.eq.s32.totalorder %s17, 1
    %p35 = por %p33, %p34
    %p36 = scmp.ne.s32.totalorder %s25, %s26
    %p37 = scmp.eq.s32.totalorder %s17, 0
    %p38 = por %p36, %p37
    %p39 = scmp.ne.s32.totalorder %s25, %s26
    %p40 = scmp.eq.s32.totalorder %s18, 1
    %p41 = por %p39, %p40
    %p43 = scmp.ne.s32.totalorder %s26, %s42
    %p44 = scmp.eq.s32.totalorder %s18, 0
    %p45 = por %p43, %p44
    %s47 = sadd.s32 %s46, 1
    %p50 = scmp.eq.s32.totalorder %s12, 1
    %p51 = scmp.ne.s32.totalorder %s46, %s48
    %p52 = scmp.eq.s32.totalorder %s12, 0
    %p53 = por %p51, %p52
    %p54 = scmp.ne.s32.totalorder %s46, %s48
    %p55 = scmp.eq.s32.totalorder %s17, 1
    %p56 = por %p54, %p55
    %p57 = scmp.ne.s32.totalorder %s48, %s49
    %p58 = scmp.eq.s32.totalorder %s17, 0
    %p59 = por %p57, %p58
    %p60 = scmp.ne.s32.totalorder %s48, %s49
    %p61 = scmp.eq.s32.totalorder %s18, 1
    %p62 = por %p60, %p61
    %p64 = scmp.ne.s32.totalorder %s49, %s63
    %p65 = scmp.eq.s32.totalorder %s18, 0
    %p66 = por %p64, %p65
    %s68 = sadd.s32 %s67, 1
    %p71 = scmp.eq.s32.totalorder %s12, 1
    %p72 = scmp.ne.s32.totalorder %s67, %s69
    %p73 = scmp.eq.s32.totalorder %s12, 0
    %p74 = por %p72, %p73
    %p75 = scmp.ne.s32.totalorder %s67, %s69
    %p76 = scmp.eq.s32.totalorder %s17, 1
    %p77 = por %p75, %p76
    %p78 = scmp.ne.s32.totalorder %s69, %s70
    %p79 = scmp.eq.s32.totalorder %s17, 0
    %p80 = por %p78, %p79
    %p81 = scmp.ne.s32.totalorder %s69, %s70
    %p82 = scmp.eq.s32.totalorder %s18, 1
    %p83 = por %p81, %p82
    %p85 = scmp.ne.s32.totalorder %s70, %s84
    %p86 = scmp.eq.s32.totalorder %s18, 0
    %p87 = por %p85, %p86
    %s89 = sadd.s32 %s88, 1
    %p92 = scmp.eq.s32.totalorder %s12, 1
    %p93 = scmp.ne.s32.totalorder %s88, %s90
    %p94 = scmp.eq.s32.totalorder %s12, 0
    %p95 = por %p93, %p94
    %p96 = scmp.ne.s32.totalorder %s88, %s90
    %p97 = scmp.eq.s32.totalorder %s17, 1
    %p98 = por %p96, %p97
    %p99 = scmp.ne.s32.totalorder %s90, %s91
    %p100 = scmp.eq.s32.totalorder %s17, 0
    %p101 = por %p99, %p100
    %p102 = scmp.ne.s32.totalorder %s90, %s91
    %p103 = scmp.eq.s32.totalorder %s18, 1
    %p104 = por %p102, %p103
    %p106 = scmp.ne.s32.totalorder %s91, %s105
    %p107 = scmp.eq.s32.totalorder %s18, 0
    %p108 = por %p106, %p107
    %s110 = sadd.s32 %s109, 1
    %p113 = scmp.eq.s32.totalorder %s12, 1
    %p114 = scmp.ne.s32.totalorder %s109, %s111
    %p115 = scmp.eq.s32.totalorder %s12, 0
    %p116 = por %p114, %p115
    %p117 = scmp.ne.s32.totalorder %s109, %s111
    %p118 = scmp.eq.s32.totalorder %s17, 1
    %p119 = por %p117, %p118
    %p120 = scmp.ne.s32.totalorder %s111, %s112
    %p121 = scmp.eq.s32.totalorder %s17, 0
    %p122 = por %p120, %p121
    %p123 = scmp.ne.s32.totalorder %s111, %s112
    %p124 = scmp.eq.s32.totalorder %s18, 1
    %p125 = por %p123, %p124
    %p127 = scmp.ne.s32.totalorder %s112, %s126
    %p128 = scmp.eq.s32.totalorder %s18, 0
    %p129 = por %p127, %p128
    %s131 = sadd.s32 %s130, 1
    %p134 = scmp.eq.s32.totalorder %s12, 1
    %p135 = scmp.ne.s32.totalorder %s130, %s132
    %p136 = scmp.eq.s32.totalorder %s12, 0
    %p137 = por %p135, %p136
    %p138 = scmp.ne.s32.totalorder %s130, %s132
    %p139 = scmp.eq.s32.totalorder %s17, 1
    %p140 = por %p138, %p139
    %p141 = scmp.ne.s32.totalorder %s132, %s133
    %p142 = scmp.eq.s32.totalorder %s17, 0
    %p143 = por %p141, %p142
    %p144 = scmp.ne.s32.totalorder %s132, %s133
    %p145 = scmp.eq.s32.totalorder %s18, 1
    %p146 = por %p144, %p145
    %p148 = scmp.ne.s32.totalorder %s133, %s147
    %p149 = scmp.eq.s32.totalorder %s18, 0
    %p150 = por %p148, %p149
    %s151 = ssub.s32 %s12, %s19
    %p152 = scmp.eq.s32.totalorder %s151, 0
    %s154 = sadd.s32 %s153, 1
    %s155 = scalar_select %p152, %s153, %s154
    %p158 = pneg %p152
    %p159 = scmp.eq.s32.totalorder %s12, 1
    %p160 = por %p158, %p159
    %p161 = scmp.ne.s32.totalorder %s153, %s156
    %p162 = scmp.eq.s32.totalorder %s12, 0
    %p163 = por %p161, %p162
    %p164 = scmp.ne.s32.totalorder %s153, %s156
    %p165 = scmp.eq.s32.totalorder %s17, 1
    %p166 = por %p164, %p165
    %p167 = scmp.ne.s32.totalorder %s156, %s157
    %p168 = scmp.eq.s32.totalorder %s17, 0
    %p169 = por %p167, %p168
    %p170 = scmp.ne.s32.totalorder %s156, %s157
    %p171 = scmp.eq.s32.totalorder %s18, 1
    %p172 = por %p170, %p171
    %p174 = scmp.ne.s32.totalorder %s157, %s173
    %p175 = scmp.eq.s32.totalorder %s18, 0
    %p176 = por %p174, %p175
    %p177 = scmp.le.s32.totalorder 1, %s12
    %p178 = scmp.lt.s32.totalorder %s12, 3
    %p179 = pnand %p177, %p178
    %p180 = pneg %p179
    // Predicated region
    $region9: #{gnn_model_forward.2} parent=5 // pred_check
      _
    $region10: #{gnn_model_forward.2} parent=5 // pred_check_branch
      %182 = sbr.rel (%p179) target = $region12
    $region11: #{gnn_model_forward.2} parent=5 // pred_region
      %s183 = ssub.s32 %s12, 1
      // Predicated region
      $region13: #{gnn_model_forward.2} parent=11 // pred_check
        %p184 = pneg %p59
      $region14: #{gnn_model_forward.2} parent=11 // pred_check_branch
        %186 = sbr.rel (%p184) target = $region16
      $region15: #{gnn_model_forward.2} parent=11 // pred_region
        _
      $region16: #{gnn_model_forward.2} parent=11 // pred_fallthru
        _
      // Predicated region
      $region17: #{gnn_model_forward.2} parent=11 // pred_check
        %p187 = pneg %p80
      $region18: #{gnn_model_forward.2} parent=11 // pred_check_branch
        %189 = sbr.rel (%p187) target = $region20
      $region19: #{gnn_model_forward.2} parent=11 // pred_region
        _
      $region20: #{gnn_model_forward.2} parent=11 // pred_fallthru
        _
      // Predicated region
      $region21: #{gnn_model_forward.2} parent=11 // pred_check
        %p190 = pneg %p101
      $region22: #{gnn_model_forward.2} parent=11 // pred_check_branch
        %192 = sbr.rel (%p190) target = $region24
      $region23: #{gnn_model_forward.2} parent=11 // pred_region
        _
      $region24: #{gnn_model_forward.2} parent=11 // pred_fallthru
        _
      // Predicated region
      $region25: #{gnn_model_forward.2} parent=11 // pred_check
        %p193 = pneg %p122
      $region26: #{gnn_model_forward.2} parent=11 // pred_check_branch
        %195 = sbr.rel (%p193) target = $region28
      $region27: #{gnn_model_forward.2} parent=11 // pred_region
        _
      $region28: #{gnn_model_forward.2} parent=11 // pred_fallthru
        _
      // Predicated region
      $region29: #{gnn_model_forward.2} parent=11 // pred_check
        %p196 = pneg %p143
      $region30: #{gnn_model_forward.2} parent=11 // pred_check_branch
        %198 = sbr.rel (%p196) target = $region32
      $region31: #{gnn_model_forward.2} parent=11 // pred_region
        _
      $region32: #{gnn_model_forward.2} parent=11 // pred_fallthru
        _
    $region12: #{gnn_model_forward.2} parent=5 // pred_fallthru
      _
    %p199 = scmp.lt.s32.totalorder %s12, 2
    // Predicated region
    $region33: #{gnn_model_forward.2} parent=5 // pred_check
      %p200 = pneg %p199
    $region34: #{gnn_model_forward.2} parent=5 // pred_check_branch
      %202 = sbr.rel (%p200) target = $region36
    $region35: #{gnn_model_forward.2} parent=5 // pred_region
      // Predicated region
      $region37: #{gnn_model_forward.2} parent=35 // pred_check
        %p203 = pneg %p32
      $region38: #{gnn_model_forward.2} parent=35 // pred_check_branch
        %205 = sbr.rel (%p203) target = $region40
      $region39: #{gnn_model_forward.2} parent=35 // pred_region
        %p206 = scmp.lt.s32.totalorder %s12, 1
        %s207 = scalar_select %p206, %s12, 1
        %s208 = smul.addr %s207, 18
        %s209 = smul.addr %s208, 4
        %s210 = scalar_lea.vmem %s0, %s209
      $region40: #{gnn_model_forward.2} parent=35 // pred_fallthru
        _
    $region36: #{gnn_model_forward.2} parent=5 // pred_fallthru
      _
    %p211 = scmp.le.s32.totalorder 1, %s12
    %p212 = scmp.lt.s32.totalorder %s12, 3
    %p213 = pnand %p211, %p212
    %p214 = pneg %p213
    // Predicated region
    $region41: #{gnn_model_forward.2} parent=5 // pred_check
      _
    $region42: #{gnn_model_forward.2} parent=5 // pred_check_branch
      %216 = sbr.rel (%p213) target = $region44
    $region43: #{gnn_model_forward.2} parent=5 // pred_region
      %s217 = ssub.s32 %s12, 1
      %p218 = scmp.lt.s32.totalorder %s17, 1
      %s219 = scalar_select %p218, %s17, 1
      %s220 = smul.addr %s219, 18
      %s221 = smul.addr %s220, 4
      %s222 = scalar_lea.vmem %s0, %s221
      %p223 = pneg %p38
      %p224 = pneg %p35
      %p225 = pneg %p59
      %p226 = pneg %p56
      %p227 = pneg %p80
      %p228 = pneg %p77
      %p229 = pneg %p101
      %p230 = pneg %p98
      %p231 = pneg %p122
      %p232 = pneg %p119
      %p233 = pneg %p143
      %p234 = pneg %p140
      %p235 = pneg %p169
      %p236 = pneg %p166
      %p237 = scmp.lt.s32.totalorder %s17, 1
      %s238 = scalar_select %p237, %s17, 1
      %s239 = smul.addr %s238, 16
      %s240 = smul.addr %s239, 4
      %s241 = scalar_lea.vmem %s6, %s240
      %p242 = scmp.lt.s32.totalorder %s17, 1
      %s243 = scalar_select %p242, %s17, 1
      %s244 = smul.addr %s243, 18
      %s245 = smul.addr %s244, 4
      %s246 = scalar_lea.vmem %s0, %s245
      %p247 = scmp.lt.s32.totalorder %s17, 1
      %s248 = scalar_select %p247, %s17, 1
      %s249 = smul.addr %s248, 16
      %s250 = smul.addr %s249, 4
      %s251 = scalar_lea.vmem %s6, %s250
      %v253 = vld [vmem:[%s1] sm:$0xf]
      %v254 = vld [vmem:[%s1 + $0x4] sm:$0xf]
      %v255 = vld [vmem:[%s1 + $0x8] sm:$0xf]
      %v256 = vld [vmem:[%s1 + $0xc] sm:$0xf]
      %v257 = vld [vmem:[%s246] sm:$0xff]
      %v258 = vld [vmem:[%s246 + $0xc] sm:$0xff]
      %v259 = vld [vmem:[%s246 + $0x18] sm:$0xff]
      %v260 = vld [vmem:[%s246 + $0x24] sm:$0xff]
      %v261 = vld [vmem:[%s246 + $0x30] sm:$0xff]
      %v262 = vld [vmem:[%s246 + $0x3c] sm:$0xff]
      %v263 = vld [vmem:[%s2] sm:$0xff]
      %v264 = vld [vmem:[%s2 + $0x8] sm:$0xff]
      %v265 = vld [vmem:[%s2 + $0x10] sm:$0xff]
      %v266 = vld [vmem:[%s2 + $0x18] sm:$0xff]
      %268 = vset.pattern.permute.xlu0 0
      %269 = vperm.xlu0 %268, %v263
      %v270 = vpop.permute.xlu0 %269
      %273 = vset.pattern.permute.xlu0 0
      %274 = vperm.xlu0 %273, %v264
      %v275 = vpop.permute.xlu0 %274
      %278 = vset.pattern.permute.xlu0 0
      %279 = vperm.xlu0 %278, %v265
      %v280 = vpop.permute.xlu0 %279
      %283 = vset.pattern.permute.xlu0 0
      %284 = vperm.xlu0 %283, %v266
      %v285 = vpop.permute.xlu0 %284
      %v291 = vunpack.c.l.b16 %v253
      %v292 = vunpack.c.l.b16 %v254
      %v293 = vunpack.c.l.b16 %v255
      %v294 = vunpack.c.l.b16 %v256
      %v295 = vpack.c.b16 %v292, %v291
      %v296 = vpack.c.b16 %v294, %v293
      %v303 = vunpack.c.l.b16 %v257
      %v304 = vunpack.c.h.b16 %v257
      %v305 = vunpack.c.l.b16 %v258
      %v306 = vunpack.c.h.b16 %v258
      %v307 = vunpack.c.l.b16 %v259
      %v308 = vunpack.c.h.b16 %v259
      %v309 = vunpack.c.l.b16 %v260
      %v310 = vunpack.c.h.b16 %v260
      %v311 = vunpack.c.l.b16 %v261
      %v312 = vunpack.c.h.b16 %v261
      %v313 = vunpack.c.l.b16 %v262
      %v314 = vunpack.c.h.b16 %v262
      %v315 = vpack.c.b16 %v305, %v303
      %v316 = vpack.c.b16 %v306, %v304
      %v317 = vpack.c.b16 %v309, %v307
      %v318 = vpack.c.b16 %v310, %v308
      %v319 = vpack.c.b16 %v313, %v311
      %v320 = vpack.c.b16 %v314, %v312
      %vm327 = vcmask 392192
      %v329 = vsel %vm327, %v295, 0
      %v332 = vsel %vm327, %v296, 0
      %334 = vmatprep.subr.bf16.mxu0 %v316
      %335 = vmatpush1.bf16.msra.mxu0 %v315
      %336 = vmatprep.subr.bf16.mxu0 %v318
      %337 = vmatpush1.bf16.msra.mxu0 %v317
      %338 = vmatprep.subr.bf16.mxu0 %v320
      %339 = vmatpush1.bf16.msra.mxu0 %v319
      %340 = vmatprep.subr.bf16.mxu0 0
      %341 = vmatpush1.bf16.msra.mxu0 0
      %342 = vmatprep.subr.bf16.mxu0 0
      %343 = vmatpush1.bf16.msra.mxu0 0
      %344 = vmatprep.subr.bf16.mxu0 0
      %345 = vmatpush1.bf16.msra.mxu0 0
      %346 = vmatprep.subr.bf16.mxu0 0
      %347 = vmatpush1.bf16.msra.mxu0 0
      %348 = vmatprep.subr.bf16.mxu0 0
      %349 = vmatpush1.bf16.msra.mxu0 0
      %350 = vmatprep.subr.bf16.mxu0 0
      %351 = vmatpush1.bf16.msra.mxu0 0
      %352 = vmatprep.subr.bf16.mxu0 0
      %353 = vmatpush1.bf16.msra.mxu0 0
      %354 = vmatprep.subr.bf16.mxu0 0
      %355 = vmatpush1.bf16.msra.mxu0 0
      %356 = vmatprep.subr.bf16.mxu0 0
      %357 = vmatpush1.bf16.msra.mxu0 0
      %358 = vmatprep.subr.bf16.mxu0 0
      %359 = vmatpush1.bf16.msra.mxu0 0
      %360 = vmatprep.subr.bf16.mxu0 0
      %361 = vmatpush1.bf16.msra.mxu0 0
      %362 = vmatprep.subr.bf16.mxu0 0
      %363 = vmatpush1.bf16.msra.mxu0 0
      %364 = vmatprep.subr.bf16.mxu0 0
      %365 = vmatpush1.bf16.msra.mxu0 0
      %366 = vmatprep.mubr.bf16.mxu0 0
      %367 = vmatmul.mubr.bf16.gmra.mrb[0].mxu0 %v329
      %v368 = vpop.f32.mrb[0].mxu0
      %v369 = vadd.f32 %v270, %v368
      %v370 = vpop.f32.mrb[0].mxu0
      %v371 = vadd.f32 %v270, %v370
      %v372 = vpop.f32.mrb[0].mxu0
      %v373 = vadd.f32 %v275, %v372
      %v374 = vpop.f32.mrb[0].mxu0
      %v375 = vadd.f32 %v275, %v374
      %376 = vmatprep.mubr.bf16.mxu0 0
      %377 = vmatmul.mubr.bf16.gmra.mrb[0].mxu0 %v332
      %v378 = vpop.f32.mrb[0].mxu0
      %v379 = vadd.f32 %v280, %v378
      %v380 = vpop.f32.mrb[0].mxu0
      %v381 = vadd.f32 %v280, %v380
      %v382 = vpop.f32.mrb[0].mxu0
      %v383 = vadd.f32 %v285, %v382
      %v384 = vpop.f32.mrb[0].mxu0
      %v385 = vadd.f32 %v285, %v384
      %386 = vdwg.mxu0
      %v387 = vxor.u32 %v369, 2147483648
      %v388 = vxor.u32 %v371, 2147483648
      %v389 = vxor.u32 %v373, 2147483648
      %v390 = vxor.u32 %v375, 2147483648
      %v391 = vxor.u32 %v379, 2147483648
      %v392 = vxor.u32 %v381, 2147483648
      %v393 = vxor.u32 %v383, 2147483648
      %v394 = vxor.u32 %v385, 2147483648
      %v395 = vmul.f32 %v387, 1.442695
      %v396 = vpow.pop %v395
      %v397 = vmul.f32 %v388, 1.442695
      %v398 = vpow.pop %v397
      %v399 = vmul.f32 %v389, 1.442695
      %v400 = vpow.pop %v399
      %v401 = vmul.f32 %v390, 1.442695
      %v402 = vpow.pop %v401
      %v403 = vmul.f32 %v391, 1.442695
      %v404 = vpow.pop %v403
      %v405 = vmul.f32 %v392, 1.442695
      %v406 = vpow.pop %v405
      %v407 = vmul.f32 %v393, 1.442695
      %v408 = vpow.pop %v407
      %v409 = vmul.f32 %v394, 1.442695
      %v410 = vpow.pop %v409
      %v411 = vadd.f32 %v396, 1.0
      %v412 = vadd.f32 %v398, 1.0
      %v413 = vadd.f32 %v400, 1.0
      %v414 = vadd.f32 %v402, 1.0
      %v415 = vadd.f32 %v404, 1.0
      %v416 = vadd.f32 %v406, 1.0
      %v417 = vadd.f32 %v408, 1.0
      %v418 = vadd.f32 %v410, 1.0
      %v419 = vrcp.pop %v411
      %v420 = vmul.f32 1.0, %v419
      %v421 = vrcp.pop %v412
      %v422 = vmul.f32 1.0, %v421
      %v423 = vrcp.pop %v413
      %v424 = vmul.f32 1.0, %v423
      %v425 = vrcp.pop %v414
      %v426 = vmul.f32 1.0, %v425
      %v427 = vrcp.pop %v415
      %v428 = vmul.f32 1.0, %v427
      %v429 = vrcp.pop %v416
      %v430 = vmul.f32 1.0, %v429
      %v431 = vrcp.pop %v417
      %v432 = vmul.f32 1.0, %v431
      %v433 = vrcp.pop %v418
      %v434 = vmul.f32 1.0, %v433
      %v435 = vmul.f32 %v369, %v420
      %v436 = vmul.f32 %v371, %v422
      %v437 = vmul.f32 %v373, %v424
      %v438 = vmul.f32 %v375, %v426
      %v439 = vmul.f32 %v379, %v428
      %v440 = vmul.f32 %v381, %v430
      %v441 = vmul.f32 %v383, %v432
      %v442 = vmul.f32 %v385, %v434
      %v443 = vld [vmem:[%s3] ss:$4 sm:$0x3]
      %v445 = vlaneseq
      %v446 = vshrl.u32 %v445, 7
      %v447 = vsub.s32 0, %v446
      %v448 = vrot.slane %v443, %v447
      %v449 = vlaneseq
      %v450 = vshrl.u32 %v449, 7
      %v451 = vsub.s32 1, %v450
      %v452 = vrot.slane %v443, %v451
      %v455 = vmul.f32 %v435, %v448
      %v456 = vmul.f32 %v436, %v452
      %v457 = vmul.f32 %v437, %v448
      %v458 = vmul.f32 %v438, %v452
      %v459 = vmul.f32 %v439, %v448
      %v460 = vmul.f32 %v440, %v452
      %v461 = vmul.f32 %v441, %v448
      %v462 = vmul.f32 %v442, %v452
      %v463 = vpack.c.bf16 %v457, %v455
      %v464 = vpack.c.bf16 %v458, %v456
      %v465 = vpack.c.bf16 %v461, %v459
      %v466 = vpack.c.bf16 %v462, %v460
      %467 = vst [vmem:[#allocation2] sm:$0xff] %v463
      %468 = vst [vmem:[#allocation2 + $0x8] sm:$0xff] %v464
      %469 = vst [vmem:[#allocation2 + $0x10] sm:$0xff] %v465
      %470 = vst [vmem:[#allocation2 + $0x18] sm:$0xff] %v466
      %v471 = vld [vmem:[%s1 + $0x10] sm:$0xf]
      %v472 = vld [vmem:[%s1 + $0x14] sm:$0xf]
      %v473 = vld [vmem:[%s1 + $0x18] sm:$0xf]
      %v474 = vld [vmem:[%s1 + $0x1c] sm:$0xf]
      %v475 = vld [vmem:[%s246] sm:$0xff]
      %v476 = vld [vmem:[%s246 + $0xc] sm:$0xff]
      %v477 = vld [vmem:[%s246 + $0x18] sm:$0xff]
      %v478 = vld [vmem:[%s246 + $0x24] sm:$0xff]
      %v479 = vld [vmem:[%s246 + $0x30] sm:$0xff]
      %v480 = vld [vmem:[%s246 + $0x3c] sm:$0xff]
      %v481 = vld [vmem:[%s1 + $0x20] sm:$0xf]
      %v482 = vld [vmem:[%s1 + $0x24] sm:$0xf]
      %v483 = vld [vmem:[%s1 + $0x28] sm:$0xf]
      %v484 = vld [vmem:[%s1 + $0x2c] sm:$0xf]
      %v485 = vld [vmem:[%s246] sm:$0xff]
      %v486 = vld [vmem:[%s246 + $0x8] sm:$0xf]
      %v487 = vld [vmem:[%s246 + $0xc] sm:$0xff]
      %v488 = vld [vmem:[%s246 + $0x14] sm:$0xf]
      %v489 = vld [vmem:[%s246 + $0x18] sm:$0xff]
      %v490 = vld [vmem:[%s246 + $0x20] sm:$0xf]
      %v491 = vld [vmem:[%s246 + $0x24] sm:$0xff]
      %v492 = vld [vmem:[%s246 + $0x2c] sm:$0xf]
      %v493 = vld [vmem:[%s246 + $0x30] sm:$0xff]
      %v494 = vld [vmem:[%s246 + $0x38] sm:$0xf]
      %v495 = vld [vmem:[%s246 + $0x3c] sm:$0xff]
      %v496 = vld [vmem:[%s246 + $0x44] sm:$0xf]
      %v501 = vunpack.c.l.b16 %v481
      %v502 = vunpack.c.l.b16 %v482
      %v503 = vunpack.c.l.b16 %v483
      %v504 = vunpack.c.l.b16 %v484
      %v505 = vpack.c.b16 %v502, %v501
      %v506 = vpack.c.b16 %v504, %v503
      %v519 = vunpack.c.l.b16 %v485
      %v520 = vunpack.c.h.b16 %v485
      %v521 = vunpack.c.l.b16 %v486
      %v522 = vunpack.c.l.b16 %v487
      %v523 = vunpack.c.h.b16 %v487
      %v524 = vunpack.c.l.b16 %v488
      %v525 = vunpack.c.l.b16 %v489
      %v526 = vunpack.c.h.b16 %v489
      %v527 = vunpack.c.l.b16 %v490
      %v528 = vunpack.c.l.b16 %v491
      %v529 = vunpack.c.h.b16 %v491
      %v530 = vunpack.c.l.b16 %v492
      %v531 = vunpack.c.l.b16 %v493
      %v532 = vunpack.c.h.b16 %v493
      %v533 = vunpack.c.l.b16 %v494
      %v534 = vunpack.c.l.b16 %v495
      %v535 = vunpack.c.h.b16 %v495
      %v536 = vunpack.c.l.b16 %v496
      %v537 = vpack.c.b16 %v522, %v519
      %v538 = vpack.c.b16 %v523, %v520
      %v539 = vpack.c.b16 %v524, %v521
      %v540 = vpack.c.b16 %v528, %v525
      %v541 = vpack.c.b16 %v529, %v526
      %v542 = vpack.c.b16 %v530, %v527
      %v543 = vpack.c.b16 %v534, %v531
      %v544 = vpack.c.b16 %v535, %v532
      %v545 = vpack.c.b16 %v536, %v533
      %546 = vrot.lane.b32.xlu0 %v537, 127
      %v547 = vpop.permute.xlu0 %546
      %548 = vrot.lane.b32.xlu0 %v538, 127
      %v549 = vpop.permute.xlu0 %548
      %550 = vrot.lane.b32.xlu0 %v539, 127
      %v551 = vpop.permute.xlu0 %550
      %552 = vrot.lane.b32.xlu0 %v540, 127
      %v553 = vpop.permute.xlu0 %552
      %554 = vrot.lane.b32.xlu0 %v541, 127
      %v555 = vpop.permute.xlu0 %554
      %556 = vrot.lane.b32.xlu0 %v542, 127
      %v557 = vpop.permute.xlu0 %556
      %558 = vrot.lane.b32.xlu0 %v543, 127
      %v559 = vpop.permute.xlu0 %558
      %560 = vrot.lane.b32.xlu0 %v544, 127
      %v561 = vpop.permute.xlu0 %560
      %562 = vrot.lane.b32.xlu0 %v545, 127
      %v563 = vpop.permute.xlu0 %562
      %vm564 = vcmask 1039360
      %v565 = vsel %vm564, %v547, %v549
      %v566 = vsel %vm564, %v549, %v551
      %v567 = vsel %vm564, %v553, %v555
      %v568 = vsel %vm564, %v555, %v557
      %v569 = vsel %vm564, %v559, %v561
      %v570 = vsel %vm564, %v561, %v563
      %v578 = vsel %vm327, %v505, 0
      %v581 = vsel %vm327, %v506, 0
      %583 = vmatprep.subr.bf16.mxu0 %v566
      %584 = vmatpush1.bf16.msra.mxu0 %v565
      %585 = vmatprep.subr.bf16.mxu0 %v568
      %586 = vmatpush1.bf16.msra.mxu0 %v567
      %587 = vmatprep.subr.bf16.mxu0 %v570
      %588 = vmatpush1.bf16.msra.mxu0 %v569
      %589 = vmatprep.subr.bf16.mxu0 0
      %590 = vmatpush1.bf16.msra.mxu0 0
      %591 = vmatprep.subr.bf16.mxu0 0
      %592 = vmatpush1.bf16.msra.mxu0 0
      %593 = vmatprep.subr.bf16.mxu0 0
      %594 = vmatpush1.bf16.msra.mxu0 0
      %595 = vmatprep.subr.bf16.mxu0 0
      %596 = vmatpush1.bf16.msra.mxu0 0
      %597 = vmatprep.subr.bf16.mxu0 0
      %598 = vmatpush1.bf16.msra.mxu0 0
      %599 = vmatprep.subr.bf16.mxu0 0
      %600 = vmatpush1.bf16.msra.mxu0 0
      %601 = vmatprep.subr.bf16.mxu0 0
      %602 = vmatpush1.bf16.msra.mxu0 0
      %603 = vmatprep.subr.bf16.mxu0 0
      %604 = vmatpush1.bf16.msra.mxu0 0
      %605 = vmatprep.subr.bf16.mxu0 0
      %606 = vmatpush1.bf16.msra.mxu0 0
      %607 = vmatprep.subr.bf16.mxu0 0
      %608 = vmatpush1.bf16.msra.mxu0 0
      %609 = vmatprep.subr.bf16.mxu0 0
      %610 = vmatpush1.bf16.msra.mxu0 0
      %611 = vmatprep.subr.bf16.mxu0 0
      %612 = vmatpush1.bf16.msra.mxu0 0
      %613 = vmatprep.subr.bf16.mxu0 0
      %614 = vmatpush1.bf16.msra.mxu0 0
      %615 = vmatprep.mubr.bf16.mxu0 0
      %616 = vmatmul.mubr.bf16.gmra.mrb[0].mxu0 %v578
      %v617 = vpop.f32.mrb[0].mxu0
      %v618 = vadd.f32 0.0, %v617
      %v619 = vpop.f32.mrb[0].mxu0
      %v620 = vadd.f32 0.0, %v619
      %v621 = vpop.f32.mrb[0].mxu0
      %v622 = vadd.f32 0.0, %v621
      %v623 = vpop.f32.mrb[0].mxu0
      %v624 = vadd.f32 0.0, %v623
      %625 = vmatprep.mubr.bf16.mxu0 0
      %626 = vmatmul.mubr.bf16.gmra.mrb[0].mxu0 %v581
      %v627 = vpop.f32.mrb[0].mxu0
      %v628 = vadd.f32 0.0, %v627
      %v629 = vpop.f32.mrb[0].mxu0
      %v630 = vadd.f32 0.0, %v629
      %v631 = vpop.f32.mrb[0].mxu0
      %v632 = vadd.f32 0.0, %v631
      %v633 = vpop.f32.mrb[0].mxu0
      %v634 = vadd.f32 0.0, %v633
      %635 = vdwg.mxu0
      %v640 = vunpack.c.l.b16 %v471
      %v641 = vunpack.c.l.b16 %v472
      %v642 = vunpack.c.l.b16 %v473
      %v643 = vunpack.c.l.b16 %v474
      %v644 = vpack.c.b16 %v641, %v640
      %v645 = vpack.c.b16 %v643, %v642
      %v652 = vunpack.c.l.b16 %v475
      %v653 = vunpack.c.h.b16 %v475
      %v654 = vunpack.c.l.b16 %v476
      %v655 = vunpack.c.h.b16 %v476
      %v656 = vunpack.c.l.b16 %v477
      %v657 = vunpack.c.h.b16 %v477
      %v658 = vunpack.c.l.b16 %v478
      %v659 = vunpack.c.h.b16 %v478
      %v660 = vunpack.c.l.b16 %v479
      %v661 = vunpack.c.h.b16 %v479
      %v662 = vunpack.c.l.b16 %v480
      %v663 = vunpack.c.h.b16 %v480
      %v664 = vpack.c.b16 %v654, %v652
      %v665 = vpack.c.b16 %v655, %v653
      %v666 = vpack.c.b16 %v658, %v656
      %v667 = vpack.c.b16 %v659, %v657
      %v668 = vpack.c.b16 %v662, %v660
      %v669 = vpack.c.b16 %v663, %v661
      %v677 = vsel %vm327, %v644, 0
      %v680 = vsel %vm327, %v645, 0
      %682 = vmatprep.subr.bf16.mxu0 %v665
      %683 = vmatpush1.bf16.msra.mxu0 %v664
      %684 = vmatprep.subr.bf16.mxu0 %v667
      %685 = vmatpush1.bf16.msra.mxu0 %v666
      %686 = vmatprep.subr.bf16.mxu0 %v669
      %687 = vmatpush1.bf16.msra.mxu0 %v668
      %688 = vmatprep.subr.bf16.mxu0 0
      %689 = vmatpush1.bf16.msra.mxu0 0
      %690 = vmatprep.subr.bf16.mxu0 0
      %691 = vmatpush1.bf16.msra.mxu0 0
      %692 = vmatprep.subr.bf16.mxu0 0
      %693 = vmatpush1.bf16.msra.mxu0 0
      %694 = vmatprep.subr.bf16.mxu0 0
      %695 = vmatpush1.bf16.msra.mxu0 0
      %696 = vmatprep.subr.bf16.mxu0 0
      %697 = vmatpush1.bf16.msra.mxu0 0
      %698 = vmatprep.subr.bf16.mxu0 0
      %699 = vmatpush1.bf16.msra.mxu0 0
      %700 = vmatprep.subr.bf16.mxu0 0
      %701 = vmatpush1.bf16.msra.mxu0 0
      %702 = vmatprep.subr.bf16.mxu0 0
      %703 = vmatpush1.bf16.msra.mxu0 0
      %704 = vmatprep.subr.bf16.mxu0 0
      %705 = vmatpush1.bf16.msra.mxu0 0
      %706 = vmatprep.subr.bf16.mxu0 0
      %707 = vmatpush1.bf16.msra.mxu0 0
      %708 = vmatprep.subr.bf16.mxu0 0
      %709 = vmatpush1.bf16.msra.mxu0 0
      %710 = vmatprep.subr.bf16.mxu0 0
      %711 = vmatpush1.bf16.msra.mxu0 0
      %712 = vmatprep.subr.bf16.mxu0 0
      %713 = vmatpush1.bf16.msra.mxu0 0
      %714 = vmatprep.mubr.bf16.mxu0 0
      %715 = vmatmul.mubr.bf16.gmra.mrb[0].mxu0 %v677
      %v716 = vpop.f32.mrb[0].mxu0
      %v717 = vadd.f32 %v618, %v716
      %v718 = vpop.f32.mrb[0].mxu0
      %v719 = vadd.f32 %v620, %v718
      %v720 = vpop.f32.mrb[0].mxu0
      %v721 = vadd.f32 %v622, %v720
      %v722 = vpop.f32.mrb[0].mxu0
      %v723 = vadd.f32 %v624, %v722
      %724 = vmatprep.mubr.bf16.mxu0 0
      %725 = vmatmul.mubr.bf16.gmra.mrb[0].mxu0 %v680
      %v726 = vpop.f32.mrb[0].mxu0
      %v727 = vadd.f32 %v628, %v726
      %v728 = vpop.f32.mrb[0].mxu0
      %v729 = vadd.f32 %v630, %v728
      %v730 = vpop.f32.mrb[0].mxu0
      %v731 = vadd.f32 %v632, %v730
      %v732 = vpop.f32.mrb[0].mxu0
      %v733 = vadd.f32 %v634, %v732
      %734 = vdwg.mxu0
      %v735 = vld [vmem:[%s2] sm:$0xff]
      %v736 = vld [vmem:[%s2 + $0x8] sm:$0xff]
      %v737 = vld [vmem:[%s2 + $0x10] sm:$0xff]
      %v738 = vld [vmem:[%s2 + $0x18] sm:$0xff]
      %740 = vset.pattern.permute.xlu0 0
      %741 = vperm.xlu0 %740, %v735
      %v742 = vpop.permute.xlu0 %741
      %745 = vset.pattern.permute.xlu0 0
      %746 = vperm.xlu0 %745, %v736
      %v747 = vpop.permute.xlu0 %746
      %750 = vset.pattern.permute.xlu0 0
      %751 = vperm.xlu0 %750, %v737
      %v752 = vpop.permute.xlu0 %751
      %755 = vset.pattern.permute.xlu0 0
      %756 = vperm.xlu0 %755, %v738
      %v757 = vpop.permute.xlu0 %756
      %v759 = vadd.f32 %v717, %v742
      %v760 = vadd.f32 %v719, %v742
      %v761 = vadd.f32 %v721, %v747
      %v762 = vadd.f32 %v723, %v747
      %v763 = vadd.f32 %v727, %v752
      %v764 = vadd.f32 %v729, %v752
      %v765 = vadd.f32 %v731, %v757
      %v766 = vadd.f32 %v733, %v757
      %v767 = vxor.u32 %v759, 2147483648
      %v768 = vxor.u32 %v760, 2147483648
      %v769 = vxor.u32 %v761, 2147483648
      %v770 = vxor.u32 %v762, 2147483648
      %v771 = vxor.u32 %v763, 2147483648
      %v772 = vxor.u32 %v764, 2147483648
      %v773 = vxor.u32 %v765, 2147483648
      %v774 = vxor.u32 %v766, 2147483648
      %v775 = vmul.f32 %v767, 1.442695
      %v776 = vpow.pop %v775
      %v777 = vmul.f32 %v768, 1.442695
      %v778 = vpow.pop %v777
      %v779 = vmul.f32 %v769, 1.442695
      %v780 = vpow.pop %v779
      %v781 = vmul.f32 %v770, 1.442695
      %v782 = vpow.pop %v781
      %v783 = vmul.f32 %v771, 1.442695
      %v784 = vpow.pop %v783
      %v785 = vmul.f32 %v772, 1.442695
      %v786 = vpow.pop %v785
      %v787 = vmul.f32 %v773, 1.442695
      %v788 = vpow.pop %v787
      %v789 = vmul.f32 %v774, 1.442695
      %v790 = vpow.pop %v789
      %v791 = vadd.f32 %v776, 1.0
      %v792 = vadd.f32 %v778, 1.0
      %v793 = vadd.f32 %v780, 1.0
      %v794 = vadd.f32 %v782, 1.0
      %v795 = vadd.f32 %v784, 1.0
      %v796 = vadd.f32 %v786, 1.0
      %v797 = vadd.f32 %v788, 1.0
      %v798 = vadd.f32 %v790, 1.0
      %v799 = vrcp.pop %v791
      %v800 = vmul.f32 1.0, %v799
      %v801 = vrcp.pop %v792
      %v802 = vmul.f32 1.0, %v801
      %v803 = vrcp.pop %v793
      %v804 = vmul.f32 1.0, %v803
      %v805 = vrcp.pop %v794
      %v806 = vmul.f32 1.0, %v805
      %v807 = vrcp.pop %v795
      %v808 = vmul.f32 1.0, %v807
      %v809 = vrcp.pop %v796
      %v810 = vmul.f32 1.0, %v809
      %v811 = vrcp.pop %v797
      %v812 = vmul.f32 1.0, %v811
      %v813 = vrcp.pop %v798
      %v814 = vmul.f32 1.0, %v813
      %v815 = vmul.f32 %v759, %v800
      %v816 = vmul.f32 %v760, %v802
      %v817 = vmul.f32 %v761, %v804
      %v818 = vmul.f32 %v762, %v806
      %v819 = vmul.f32 %v763, %v808
      %v820 = vmul.f32 %v764, %v810
      %v821 = vmul.f32 %v765, %v812
      %v822 = vmul.f32 %v766, %v814
      %s823 = scalar_lea.vmem %s3, 1
      %v824 = vld [vmem:[%s823] ss:$4 sm:$0x3]
      %v826 = vlaneseq
      %v827 = vshrl.u32 %v826, 7
      %v828 = vsub.s32 0, %v827
      %v829 = vrot.slane %v824, %v828
      %v830 = vlaneseq
      %v831 = vshrl.u32 %v830, 7
      %v832 = vsub.s32 1, %v831
      %v833 = vrot.slane %v824, %v832
      %v836 = vmul.f32 %v815, %v829
      %v837 = vmul.f32 %v816, %v833
      %v838 = vmul.f32 %v817, %v829
      %v839 = vmul.f32 %v818, %v833
      %v840 = vmul.f32 %v819, %v829
      %v841 = vmul.f32 %v820, %v833
      %v842 = vmul.f32 %v821, %v829
      %v843 = vmul.f32 %v822, %v833
      %v844 = vpack.c.bf16 %v838, %v836
      %v845 = vpack.c.bf16 %v839, %v837
      %v846 = vpack.c.bf16 %v842, %v840
      %v847 = vpack.c.bf16 %v843, %v841
      %848 = vst [vmem:[#allocation2 + $0x20] sm:$0xff] %v844
      %849 = vst [vmem:[#allocation2 + $0x28] sm:$0xff] %v845
      %850 = vst [vmem:[#allocation2 + $0x30] sm:$0xff] %v846
      %851 = vst [vmem:[#allocation2 + $0x38] sm:$0xff] %v847
      %v852 = vld [vmem:[%s1 + $0x30] sm:$0xf]
      %v853 = vld [vmem:[%s1 + $0x34] sm:$0xf]
      %v854 = vld [vmem:[%s1 + $0x38] sm:$0xf]
      %v855 = vld [vmem:[%s1 + $0x3c] sm:$0xf]
      %v856 = vld [vmem:[%s246] sm:$0xff]
      %v857 = vld [vmem:[%s246 + $0xc] sm:$0xff]
      %v858 = vld [vmem:[%s246 + $0x18] sm:$0xff]
      %v859 = vld [vmem:[%s246 + $0x24] sm:$0xff]
      %v860 = vld [vmem:[%s246 + $0x30] sm:$0xff]
      %v861 = vld [vmem:[%s246 + $0x3c] sm:$0xff]
      %v862 = vld [vmem:[%s1 + $0x40] sm:$0xf]
      %v863 = vld [vmem:[%s1 + $0x44] sm:$0xf]
      %v864 = vld [vmem:[%s1 + $0x48] sm:$0xf]
      %v865 = vld [vmem:[%s1 + $0x4c] sm:$0xf]
      %v866 = vld [vmem:[%s246] sm:$0xff]
      %v867 = vld [vmem:[%s246 + $0x8] sm:$0xf]
      %v868 = vld [vmem:[%s246 + $0xc] sm:$0xff]
      %v869 = vld [vmem:[%s246 + $0x14] sm:$0xf]
      %v870 = vld [vmem:[%s246 + $0x18] sm:$0xff]
      %v871 = vld [vmem:[%s246 + $0x20] sm:$0xf]
      %v872 = vld [vmem:[%s246 + $0x24] sm:$0xff]
      %v873 = vld [vmem:[%s246 + $0x2c] sm:$0xf]
      %v874 = vld [vmem:[%s246 + $0x30] sm:$0xff]
      %v875 = vld [vmem:[%s246 + $0x38] sm:$0xf]
      %v876 = vld [vmem:[%s246 + $0x3c] sm:$0xff]
      %v877 = vld [vmem:[%s246 + $0x44] sm:$0xf]
      %v882 = vunpack.c.l.b16 %v862
      %v883 = vunpack.c.l.b16 %v863
      %v884 = vunpack.c.l.b16 %v864
      %v885 = vunpack.c.l.b16 %v865
      %v886 = vpack.c.b16 %v883, %v882
      %v887 = vpack.c.b16 %v885, %v884
      %v900 = vunpack.c.l.b16 %v866
      %v901 = vunpack.c.h.b16 %v866
      %v902 = vunpack.c.l.b16 %v867
      %v903 = vunpack.c.l.b16 %v868
      %v904 = vunpack.c.h.b16 %v868
      %v905 = vunpack.c.l.b16 %v869
      %v906 = vunpack.c.l.b16 %v870
      %v907 = vunpack.c.h.b16 %v870
      %v908 = vunpack.c.l.b16 %v871
      %v909 = vunpack.c.l.b16 %v872
      %v910 = vunpack.c.h.b16 %v872
      %v911 = vunpack.c.l.b16 %v873
      %v912 = vunpack.c.l.b16 %v874
      %v913 = vunpack.c.h.b16 %v874
      %v914 = vunpack.c.l.b16 %v875
      %v915 = vunpack.c.l.b16 %v876
      %v916 = vunpack.c.h.b16 %v876
      %v917 = vunpack.c.l.b16 %v877
      %v918 = vpack.c.b16 %v903, %v900
      %v919 = vpack.c.b16 %v904, %v901
      %v920 = vpack.c.b16 %v905, %v902
      %v921 = vpack.c.b16 %v909, %v906
      %v922 = vpack.c.b16 %v910, %v907
      %v923 = vpack.c.b16 %v911, %v908
      %v924 = vpack.c.b16 %v915, %v912
      %v925 = vpack.c.b16 %v916, %v913
      %v926 = vpack.c.b16 %v917, %v914
      %927 = vrot.lane.b32.xlu0 %v918, 118
      %v928 = vpop.permute.xlu0 %927
      %929 = vrot.lane.b32.xlu0 %v919, 118
      %v930 = vpop.permute.xlu0 %929
      %931 = vrot.lane.b32.xlu0 %v920, 118
      %v932 = vpop.permute.xlu0 %931
      %933 = vrot.lane.b32.xlu0 %v921, 118
      %v934 = vpop.permute.xlu0 %933
      %935 = vrot.lane.b32.xlu0 %v922, 118
      %v936 = vpop.permute.xlu0 %935
      %937 = vrot.lane.b32.xlu0 %v923, 118
      %v938 = vpop.permute.xlu0 %937
      %939 = vrot.lane.b32.xlu0 %v924, 118
      %v940 = vpop.permute.xlu0 %939
      %941 = vrot.lane.b32.xlu0 %v925, 118
      %v942 = vpop.permute.xlu0 %941
      %943 = vrot.lane.b32.xlu0 %v926, 118
      %v944 = vpop.permute.xlu0 %943
      %vm945 = vcmask 965632
      %v946 = vsel %vm945, %v928, %v930
      %v947 = vsel %vm945, %v930, %v932
      %v948 = vsel %vm945, %v934, %v936
      %v949 = vsel %vm945, %v936, %v938
      %v950 = vsel %vm945, %v940, %v942
      %v951 = vsel %vm945, %v942, %v944
      %v959 = vsel %vm327, %v886, 0
      %v962 = vsel %vm327, %v887, 0
      %964 = vmatprep.subr.bf16.mxu0 %v947
      %965 = vmatpush1.bf16.msra.mxu0 %v946
      %966 = vmatprep.subr.bf16.mxu0 %v949
      %967 = vmatpush1.bf16.msra.mxu0 %v948
      %968 = vmatprep.subr.bf16.mxu0 %v951
      %969 = vmatpush1.bf16.msra.mxu0 %v950
      %970 = vmatprep.subr.bf16.mxu0 0
      %971 = vmatpush1.bf16.msra.mxu0 0
      %972 = vmatprep.subr.bf16.mxu0 0
      %973 = vmatpush1.bf16.msra.mxu0 0
      %974 = vmatprep.subr.bf16.mxu0 0
      %975 = vmatpush1.bf16.msra.mxu0 0
      %976 = vmatprep.subr.bf16.mxu0 0
      %977 = vmatpush1.bf16.msra.mxu0 0
      %978 = vmatprep.subr.bf16.mxu0 0
      %979 = vmatpush1.bf16.msra.mxu0 0
      %980 = vmatprep.subr.bf16.mxu0 0
      %981 = vmatpush1.bf16.msra.mxu0 0
      %982 = vmatprep.subr.bf16.mxu0 0
      %983 = vmatpush1.bf16.msra.mxu0 0
      %984 = vmatprep.subr.bf16.mxu0 0
      %985 = vmatpush1.bf16.msra.mxu0 0
      %986 = vmatprep.subr.bf16.mxu0 0
      %987 = vmatpush1.bf16.msra.mxu0 0
      %988 = vmatprep.subr.bf16.mxu0 0
      %989 = vmatpush1.bf16.msra.mxu0 0
      %990 = vmatprep.subr.bf16.mxu0 0
      %991 = vmatpush1.bf16.msra.mxu0 0
      %992 = vmatprep.subr.bf16.mxu0 0
      %993 = vmatpush1.bf16.msra.mxu0 0
      %994 = vmatprep.subr.bf16.mxu0 0
      %995 = vmatpush1.bf16.msra.mxu0 0
      %996 = vmatprep.mubr.bf16.mxu0 0
      %997 = vmatmul.mubr.bf16.gmra.mrb[0].mxu0 %v959
      %v998 = vpop.f32.mrb[0].mxu0
      %v999 = vadd.f32 0.0, %v998
      %v1000 = vpop.f32.mrb[0].mxu0
      %v1001 = vadd.f32 0.0, %v1000
      %v1002 = vpop.f32.mrb[0].mxu0
      %v1003 = vadd.f32 0.0, %v1002
      %v1004 = vpop.f32.mrb[0].mxu0
      %v1005 = vadd.f32 0.0, %v1004
      %1006 = vmatprep.mubr.bf16.mxu0 0
      %1007 = vmatmul.mubr.bf16.gmra.mrb[0].mxu0 %v962
      %v1008 = vpop.f32.mrb[0].mxu0
      %v1009 = vadd.f32 0.0, %v1008
      %v1010 = vpop.f32.mrb[0].mxu0
      %v1011 = vadd.f32 0.0, %v1010
      %v1012 = vpop.f32.mrb[0].mxu0
      %v1013 = vadd.f32 0.0, %v1012
      %v1014 = vpop.f32.mrb[0].mxu0
      %v1015 = vadd.f32 0.0, %v1014
      %1016 = vdwg.mxu0
      %v1021 = vunpack.c.l.b16 %v852
      %v1022 = vunpack.c.l.b16 %v853
      %v1023 = vunpack.c.l.b16 %v854
      %v1024 = vunpack.c.l.b16 %v855
      %v1025 = vpack.c.b16 %v1022, %v1021
      %v1026 = vpack.c.b16 %v1024, %v1023
      %v1033 = vunpack.c.l.b16 %v856
      %v1034 = vunpack.c.h.b16 %v856
      %v1035 = vunpack.c.l.b16 %v857
      %v1036 = vunpack.c.h.b16 %v857
      %v1037 = vunpack.c.l.b16 %v858
      %v1038 = vunpack.c.h.b16 %v858
      %v1039 = vunpack.c.l.b16 %v859
      %v1040 = vunpack.c.h.b16 %v859
      %v1041 = vunpack.c.l.b16 %v860
      %v1042 = vunpack.c.h.b16 %v860
      %v1043 = vunpack.c.l.b16 %v861
      %v1044 = vunpack.c.h.b16 %v861
      %v1045 = vpack.c.b16 %v1035, %v1033
      %v1046 = vpack.c.b16 %v1036, %v1034
      %v1047 = vpack.c.b16 %v1039, %v1037
      %v1048 = vpack.c.b16 %v1040, %v1038
      %v1049 = vpack.c.b16 %v1043, %v1041
      %v1050 = vpack.c.b16 %v1044, %v1042
      %v1058 = vsel %vm327, %v1025, 0
      %v1061 = vsel %vm327, %v1026, 0
      %1063 = vmatprep.subr.bf16.mxu0 %v1046
      %1064 = vmatpush1.bf16.msra.mxu0 %v1045
      %1065 = vmatprep.subr.bf16.mxu0 %v1048
      %1066 = vmatpush1.bf16.msra.mxu0 %v1047
      %1067 = vmatprep.subr.bf16.mxu0 %v1050
      %1068 = vmatpush1.bf16.msra.mxu0 %v1049
      %1069 = vmatprep.subr.bf16.mxu0 0
      %1070 = vmatpush1.bf16.msra.mxu0 0
      %1071 = vmatprep.subr.bf16.mxu0 0
      %1072 = vmatpush1.bf16.msra.mxu0 0
      %1073 = vmatprep.subr.bf16.mxu0 0
      %1074 = vmatpush1.bf16.msra.mxu0 0
      %1075 = vmatprep.subr.bf16.mxu0 0
      %1076 = vmatpush1.bf16.msra.mxu0 0
      %1077 = vmatprep.subr.bf16.mxu0 0
      %1078 = vmatpush1.bf16.msra.mxu0 0
      %1079 = vmatprep.subr.bf16.mxu0 0
      %1080 = vmatpush1.bf16.msra.mxu0 0
      %1081 = vmatprep.subr.bf16.mxu0 0
      %1082 = vmatpush1.bf16.msra.mxu0 0
      %1083 = vmatprep.subr.bf16.mxu0 0
      %1084 = vmatpush1.bf16.msra.mxu0 0
      %1085 = vmatprep.subr.bf16.mxu0 0
      %1086 = vmatpush1.bf16.msra.mxu0 0
      %1087 = vmatprep.subr.bf16.mxu0 0
      %1088 = vmatpush1.bf16.msra.mxu0 0
      %1089 = vmatprep.subr.bf16.mxu0 0
      %1090 = vmatpush1.bf16.msra.mxu0 0
      %1091 = vmatprep.subr.bf16.mxu0 0
      %1092 = vmatpush1.bf16.msra.mxu0 0
      %1093 = vmatprep.subr.bf16.mxu0 0
      %1094 = vmatpush1.bf16.msra.mxu0 0
      %1095 = vmatprep.mubr.bf16.mxu0 0
      %1096 = vmatmul.mubr.bf16.gmra.mrb[0].mxu0 %v1058
      %v1097 = vpop.f32.mrb[0].mxu0
      %v1098 = vadd.f32 %v999, %v1097
      %v1099 = vpop.f32.mrb[0].mxu0
      %v1100 = vadd.f32 %v1001, %v1099
      %v1101 = vpop.f32.mrb[0].mxu0
      %v1102 = vadd.f32 %v1003, %v1101
      %v1103 = vpop.f32.mrb[0].mxu0
      %v1104 = vadd.f32 %v1005, %v1103
      %1105 = vmatprep.mubr.bf16.mxu0 0
      %1106 = vmatmul.mubr.bf16.gmra.mrb[0].mxu0 %v1061
      %v1107 = vpop.f32.mrb[0].mxu0
      %v1108 = vadd.f32 %v1009, %v1107
      %v1109 = vpop.f32.mrb[0].mxu0
      %v1110 = vadd.f32 %v1011, %v1109
      %v1111 = vpop.f32.mrb[0].mxu0
      %v1112 = vadd.f32 %v1013, %v1111
      %v1113 = vpop.f32.mrb[0].mxu0
      %v1114 = vadd.f32 %v1015, %v1113
      %1115 = vdwg.mxu0
      %v1116 = vld [vmem:[%s2] sm:$0xff]
      %v1117 = vld [vmem:[%s2 + $0x8] sm:$0xff]
      %v1118 = vld [vmem:[%s2 + $0x10] sm:$0xff]
      %v1119 = vld [vmem:[%s2 + $0x18] sm:$0xff]
      %1121 = vset.pattern.permute.xlu0 0
      %1122 = vperm.xlu0 %1121, %v1116
      %v1123 = vpop.permute.xlu0 %1122
      %1126 = vset.pattern.permute.xlu0 0
      %1127 = vperm.xlu0 %1126, %v1117
      %v1128 = vpop.permute.xlu0 %1127
      %1131 = vset.pattern.permute.xlu0 0
      %1132 = vperm.xlu0 %1131, %v1118
      %v1133 = vpop.permute.xlu0 %1132
      %1136 = vset.pattern.permute.xlu0 0
      %1137 = vperm.xlu0 %1136, %v1119
      %v1138 = vpop.permute.xlu0 %1137
      %v1140 = vadd.f32 %v1098, %v1123
      %v1141 = vadd.f32 %v1100, %v1123
      %v1142 = vadd.f32 %v1102, %v1128
      %v1143 = vadd.f32 %v1104, %v1128
      %v1144 = vadd.f32 %v1108, %v1133
      %v1145 = vadd.f32 %v1110, %v1133
      %v1146 = vadd.f32 %v1112, %v1138
      %v1147 = vadd.f32 %v1114, %v1138
      %v1148 = vxor.u32 %v1140, 2147483648
      %v1149 = vxor.u32 %v1141, 2147483648
      %v1150 = vxor.u32 %v1142, 2147483648
      %v1151 = vxor.u32 %v1143, 2147483648
      %v1152 = vxor.u32 %v1144, 2147483648
      %v1153 = vxor.u32 %v1145, 2147483648
      %v1154 = vxor.u32 %v1146, 2147483648
      %v1155 = vxor.u32 %v1147, 2147483648
      %v1156 = vmul.f32 %v1148, 1.442695
      %v1157 = vpow.pop %v1156
      %v1158 = vmul.f32 %v1149, 1.442695
      %v1159 = vpow.pop %v1158
      %v1160 = vmul.f32 %v1150, 1.442695
      %v1161 = vpow.pop %v1160
      %v1162 = vmul.f32 %v1151, 1.442695
      %v1163 = vpow.pop %v1162
      %v1164 = vmul.f32 %v1152, 1.442695
      %v1165 = vpow.pop %v1164
      %v1166 = vmul.f32 %v1153, 1.442695
      %v1167 = vpow.pop %v1166
      %v1168 = vmul.f32 %v1154, 1.442695
      %v1169 = vpow.pop %v1168
      %v1170 = vmul.f32 %v1155, 1.442695
      %v1171 = vpow.pop %v1170
      %v1172 = vadd.f32 %v1157, 1.0
      %v1173 = vadd.f32 %v1159, 1.0
      %v1174 = vadd.f32 %v1161, 1.0
      %v1175 = vadd.f32 %v1163, 1.0
      %v1176 = vadd.f32 %v1165, 1.0
      %v1177 = vadd.f32 %v1167, 1.0
      %v1178 = vadd.f32 %v1169, 1.0
      %v1179 = vadd.f32 %v1171, 1.0
      %v1180 = vrcp.pop %v1172
      %v1181 = vmul.f32 1.0, %v1180
      %v1182 = vrcp.pop %v1173
      %v1183 = vmul.f32 1.0, %v1182
      %v1184 = vrcp.pop %v1174
      %v1185 = vmul.f32 1.0, %v1184
      %v1186 = vrcp.pop %v1175
      %v1187 = vmul.f32 1.0, %v1186
      %v1188 = vrcp.pop %v1176
      %v1189 = vmul.f32 1.0, %v1188
      %v1190 = vrcp.pop %v1177
      %v1191 = vmul.f32 1.0, %v1190
      %v1192 = vrcp.pop %v1178
      %v1193 = vmul.f32 1.0, %v1192
      %v1194 = vrcp.pop %v1179
      %v1195 = vmul.f32 1.0, %v1194
      %v1196 = vmul.f32 %v1140, %v1181
      %v1197 = vmul.f32 %v1141, %v1183
      %v1198 = vmul.f32 %v1142, %v1185
      %v1199 = vmul.f32 %v1143, %v1187
      %v1200 = vmul.f32 %v1144, %v1189
      %v1201 = vmul.f32 %v1145, %v1191
      %v1202 = vmul.f32 %v1146, %v1193
      %v1203 = vmul.f32 %v1147, %v1195
      %s1204 = scalar_lea.vmem %s3, 2
      %v1205 = vld [vmem:[%s1204] ss:$4 sm:$0x3]
      %v1207 = vlaneseq
      %v1208 = vshrl.u32 %v1207, 7
      %v1209 = vsub.s32 0, %v1208
      %v1210 = vrot.slane %v1205, %v1209
      %v1211 = vlaneseq
      %v1212 = vshrl.u32 %v1211, 7
      %v1213 = vsub.s32 1, %v1212
      %v1214 = vrot.slane %v1205, %v1213
      %v1217 = vmul.f32 %v1196, %v1210
      %v1218 = vmul.f32 %v1197, %v1214
      %v1219 = vmul.f32 %v1198, %v1210
      %v1220 = vmul.f32 %v1199, %v1214
      %v1221 = vmul.f32 %v1200, %v1210
      %v1222 = vmul.f32 %v1201, %v1214
      %v1223 = vmul.f32 %v1202, %v1210
      %v1224 = vmul.f32 %v1203, %v1214
      %v1225 = vpack.c.bf16 %v1219, %v1217
      %v1226 = vpack.c.bf16 %v1220, %v1218
      %v1227 = vpack.c.bf16 %v1223, %v1221
      %v1228 = vpack.c.bf16 %v1224, %v1222
      %1229 = vst [vmem:[#allocation2 + $0x40] sm:$0xff] %v1225
      %1230 = vst [vmem:[#allocation2 + $0x48] sm:$0xff] %v1226
      %1231 = vst [vmem:[#allocation2 + $0x50] sm:$0xff] %v1227
      %1232 = vst [vmem:[#allocation2 + $0x58] sm:$0xff] %v1228
      %v1233 = vld [vmem:[%s1 + $0x50] sm:$0xf]
      %v1234 = vld [vmem:[%s1 + $0x54] sm:$0xf]
      %v1235 = vld [vmem:[%s1 + $0x58] sm:$0xf]
      %v1236 = vld [vmem:[%s1 + $0x5c] sm:$0xf]
      %v1237 = vld [vmem:[%s246] sm:$0xff]
      %v1238 = vld [vmem:[%s246 + $0xc] sm:$0xff]
      %v1239 = vld [vmem:[%s246 + $0x18] sm:$0xff]
      %v1240 = vld [vmem:[%s246 + $0x24] sm:$0xff]
      %v1241 = vld [vmem:[%s246 + $0x30] sm:$0xff]
      %v1242 = vld [vmem:[%s246 + $0x3c] sm:$0xff]
      %v1243 = vld [vmem:[%s1 + $0x60] sm:$0xf]
      %v1244 = vld [vmem:[%s1 + $0x64] sm:$0xf]
      %v1245 = vld [vmem:[%s1 + $0x68] sm:$0xf]
      %v1246 = vld [vmem:[%s1 + $0x6c] sm:$0xf]
      %v1247 = vld [vmem:[%s246] sm:$0xff]
      %v1248 = vld [vmem:[%s246 + $0x8] sm:$0xf]
      %v1249 = vld [vmem:[%s246 + $0xc] sm:$0xff]
      %v1250 = vld [vmem:[%s246 + $0x14] sm:$0xf]
      %v1251 = vld [vmem:[%s246 + $0x18] sm:$0xff]
      %v1252 = vld [vmem:[%s246 + $0x20] sm:$0xf]
      %v1253 = vld [vmem:[%s246 + $0x24] sm:$0xff]
      %v1254 = vld [vmem:[%s246 + $0x2c] sm:$0xf]
      %v1255 = vld [vmem:[%s246 + $0x30] sm:$0xff]
      %v1256 = vld [vmem:[%s246 + $0x38] sm:$0xf]
      %v1257 = vld [vmem:[%s246 + $0x3c] sm:$0xff]
      %v1258 = vld [vmem:[%s246 + $0x44] sm:$0xf]
      %v1263 = vunpack.c.l.b16 %v1243
      %v1264 = vunpack.c.l.b16 %v1244
      %v1265 = vunpack.c.l.b16 %v1245
      %v1266 = vunpack.c.l.b16 %v1246
      %v1267 = vpack.c.b16 %v1264, %v1263
      %v1268 = vpack.c.b16 %v1266, %v1265
      %v1281 = vunpack.c.l.b16 %v1247
      %v1282 = vunpack.c.h.b16 %v1247
      %v1283 = vunpack.c.l.b16 %v1248
      %v1284 = vunpack.c.l.b16 %v1249
      %v1285 = vunpack.c.h.b16 %v1249
      %v1286 = vunpack.c.l.b16 %v1250
      %v1287 = vunpack.c.l.b16 %v1251
      %v1288 = vunpack.c.h.b16 %v1251
      %v1289 = vunpack.c.l.b16 %v1252
      %v1290 = vunpack.c.l.b16 %v1253
      %v1291 = vunpack.c.h.b16 %v1253
      %v1292 = vunpack.c.l.b16 %v1254
      %v1293 = vunpack.c.l.b16 %v1255
      %v1294 = vunpack.c.h.b16 %v1255
      %v1295 = vunpack.c.l.b16 %v1256
      %v1296 = vunpack.c.l.b16 %v1257
      %v1297 = vunpack.c.h.b16 %v1257
      %v1298 = vunpack.c.l.b16 %v1258
      %v1299 = vpack.c.b16 %v1284, %v1281
      %v1300 = vpack.c.b16 %v1285, %v1282
      %v1301 = vpack.c.b16 %v1286, %v1283
      %v1302 = vpack.c.b16 %v1290, %v1287
      %v1303 = vpack.c.b16 %v1291, %v1288
      %v1304 = vpack.c.b16 %v1292, %v1289
      %v1305 = vpack.c.b16 %v1296, %v1293
      %v1306 = vpack.c.b16 %v1297, %v1294
      %v1307 = vpack.c.b16 %v1298, %v1295
      %1308 = vrot.lane.b32.xlu0 %v1299, 127
      %v1309 = vpop.permute.xlu0 %1308
      %1310 = vrot.lane.b32.xlu0 %v1300, 127
      %v1311 = vpop.permute.xlu0 %1310
      %1312 = vrot.lane.b32.xlu0 %v1301, 127
      %v1313 = vpop.permute.xlu0 %1312
      %1314 = vrot.lane.b32.xlu0 %v1302, 127
      %v1315 = vpop.permute.xlu0 %1314
      %1316 = vrot.lane.b32.xlu0 %v1303, 127
      %v1317 = vpop.permute.xlu0 %1316
      %1318 = vrot.lane.b32.xlu0 %v1304, 127
      %v1319 = vpop.permute.xlu0 %1318
      %1320 = vrot.lane.b32.xlu0 %v1305, 127
      %v1321 = vpop.permute.xlu0 %1320
      %1322 = vrot.lane.b32.xlu0 %v1306, 127
      %v1323 = vpop.permute.xlu0 %1322
      %1324 = vrot.lane.b32.xlu0 %v1307, 127
      %v1325 = vpop.permute.xlu0 %1324
      %v1326 = vsel %vm564, %v1309, %v1311
      %v1327 = vsel %vm564, %v1311, %v1313
      %v1328 = vsel %vm564, %v1315, %v1317
      %v1329 = vsel %vm564, %v1317, %v1319
      %v1330 = vsel %vm564, %v1321, %v1323
      %v1331 = vsel %vm564, %v1323, %v1325
      %v1339 = vsel %vm327, %v1267, 0
      %v1342 = vsel %vm327, %v1268, 0
      %1344 = vmatprep.subr.bf16.mxu0 %v1327
      %1345 = vmatpush1.bf16.msra.mxu0 %v1326
      %1346 = vmatprep.subr.bf16.mxu0 %v1329
      %1347 = vmatpush1.bf16.msra.mxu0 %v1328
      %1348 = vmatprep.subr.bf16.mxu0 %v1331
      %1349 = vmatpush1.bf16.msra.mxu0 %v1330
      %1350 = vmatprep.subr.bf16.mxu0 0
      %1351 = vmatpush1.bf16.msra.mxu0 0
      %1352 = vmatprep.subr.bf16.mxu0 0
      %1353 = vmatpush1.bf16.msra.mxu0 0
      %1354 = vmatprep.subr.bf16.mxu0 0
      %1355 = vmatpush1.bf16.msra.mxu0 0
      %1356 = vmatprep.subr.bf16.mxu0 0
      %1357 = vmatpush1.bf16.msra.mxu0 0
      %1358 = vmatprep.subr.bf16.mxu0 0
      %1359 = vmatpush1.bf16.msra.mxu0 0
      %1360 = vmatprep.subr.bf16.mxu0 0
      %1361 = vmatpush1.bf16.msra.mxu0 0
      %1362 = vmatprep.subr.bf16.mxu0 0
      %1363 = vmatpush1.bf16.msra.mxu0 0
      %1364 = vmatprep.subr.bf16.mxu0 0
      %1365 = vmatpush1.bf16.msra.mxu0 0
      %1366 = vmatprep.subr.bf16.mxu0 0
      %1367 = vmatpush1.bf16.msra.mxu0 0
      %1368 = vmatprep.subr.bf16.mxu0 0
      %1369 = vmatpush1.bf16.msra.mxu0 0
      %1370 = vmatprep.subr.bf16.mxu0 0
      %1371 = vmatpush1.bf16.msra.mxu0 0
      %1372 = vmatprep.subr.bf16.mxu0 0
      %1373 = vmatpush1.bf16.msra.mxu0 0
      %1374 = vmatprep.subr.bf16.mxu0 0
      %1375 = vmatpush1.bf16.msra.mxu0 0
      %1376 = vmatprep.mubr.bf16.mxu0 0
      %1377 = vmatmul.mubr.bf16.gmra.mrb[0].mxu0 %v1339
      %v1378 = vpop.f32.mrb[0].mxu0
      %v1379 = vadd.f32 0.0, %v1378
      %v1380 = vpop.f32.mrb[0].mxu0
      %v1381 = vadd.f32 0.0, %v1380
      %v1382 = vpop.f32.mrb[0].mxu0
      %v1383 = vadd.f32 0.0, %v1382
      %v1384 = vpop.f32.mrb[0].mxu0
      %v1385 = vadd.f32 0.0, %v1384
      %1386 = vmatprep.mubr.bf16.mxu0 0
      %1387 = vmatmul.mubr.bf16.gmra.mrb[0].mxu0 %v1342
      %v1388 = vpop.f32.mrb[0].mxu0
      %v1389 = vadd.f32 0.0, %v1388
      %v1390 = vpop.f32.mrb[0].mxu0
      %v1391 = vadd.f32 0.0, %v1390
      %v1392 = vpop.f32.mrb[0].mxu0
      %v1393 = vadd.f32 0.0, %v1392
      %v1394 = vpop.f32.mrb[0].mxu0
      %v1395 = vadd.f32 0.0, %v1394
      %1396 = vdwg.mxu0
      %v1401 = vunpack.c.l.b16 %v1233
      %v1402 = vunpack.c.l.b16 %v1234
      %v1403 = vunpack.c.l.b16 %v1235
      %v1404 = vunpack.c.l.b16 %v1236
      %v1405 = vpack.c.b16 %v1402, %v1401
      %v1406 = vpack.c.b16 %v1404, %v1403
      %v1413 = vunpack.c.l.b16 %v1237
      %v1414 = vunpack.c.h.b16 %v1237
      %v1415 = vunpack.c.l.b16 %v1238
      %v1416 = vunpack.c.h.b16 %v1238
      %v1417 = vunpack.c.l.b16 %v1239
      %v1418 = vunpack.c.h.b16 %v1239
      %v1419 = vunpack.c.l.b16 %v1240
      %v1420 = vunpack.c.h.b16 %v1240
      %v1421 = vunpack.c.l.b16 %v1241
      %v1422 = vunpack.c.h.b16 %v1241
      %v1423 = vunpack.c.l.b16 %v1242
      %v1424 = vunpack.c.h.b16 %v1242
      %v1425 = vpack.c.b16 %v1415, %v1413
      %v1426 = vpack.c.b16 %v1416, %v1414
      %v1427 = vpack.c.b16 %v1419, %v1417
      %v1428 = vpack.c.b16 %v1420, %v1418
      %v1429 = vpack.c.b16 %v1423, %v1421
      %v1430 = vpack.c.b16 %v1424, %v1422
      %v1438 = vsel %vm327, %v1405, 0
      %v1441 = vsel %vm327, %v1406, 0
      %1443 = vmatprep.subr.bf16.mxu0 %v1426
      %1444 = vmatpush1.bf16.msra.mxu0 %v1425
      %1445 = vmatprep.subr.bf16.mxu0 %v1428
      %1446 = vmatpush1.bf16.msra.mxu0 %v1427
      %1447 = vmatprep.subr.bf16.mxu0 %v1430
      %1448 = vmatpush1.bf16.msra.mxu0 %v1429
      %1449 = vmatprep.subr.bf16.mxu0 0
      %1450 = vmatpush1.bf16.msra.mxu0 0
      %1451 = vmatprep.subr.bf16.mxu0 0
      %1452 = vmatpush1.bf16.msra.mxu0 0
      %1453 = vmatprep.subr.bf16.mxu0 0
      %1454 = vmatpush1.bf16.msra.mxu0 0
      %1455 = vmatprep.subr.bf16.mxu0 0
      %1456 = vmatpush1.bf16.msra.mxu0 0
      %1457 = vmatprep.subr.bf16.mxu0 0
      %1458 = vmatpush1.bf16.msra.mxu0 0
      %1459 = vmatprep.subr.bf16.mxu0 0
      %1460 = vmatpush1.bf16.msra.mxu0 0
      %1461 = vmatprep.subr.bf16.mxu0 0
      %1462 = vmatpush1.bf16.msra.mxu0 0
      %1463 = vmatprep.subr.bf16.mxu0 0
      %1464 = vmatpush1.bf16.msra.mxu0 0
      %1465 = vmatprep.subr.bf16.mxu0 0
      %1466 = vmatpush1.bf16.msra.mxu0 0
      %1467 = vmatprep.subr.bf16.mxu0 0
      %1468 = vmatpush1.bf16.msra.mxu0 0
      %1469 = vmatprep.subr.bf16.mxu0 0
      %1470 = vmatpush1.bf16.msra.mxu0 0
      %1471 = vmatprep.subr.bf16.mxu0 0
      %1472 = vmatpush1.bf16.msra.mxu0 0
      %1473 = vmatprep.subr.bf16.mxu0 0
      %1474 = vmatpush1.bf16.msra.mxu0 0
      %1475 = vmatprep.mubr.bf16.mxu0 0
      %1476 = vmatmul.mubr.bf16.gmra.mrb[0].mxu0 %v1438
      %v1477 = vpop.f32.mrb[0].mxu0
      %v1478 = vadd.f32 %v1379, %v1477
      %v1479 = vpop.f32.mrb[0].mxu0
      %v1480 = vadd.f32 %v1381, %v1479
      %v1481 = vpop.f32.mrb[0].mxu0
      %v1482 = vadd.f32 %v1383, %v1481
      %v1483 = vpop.f32.mrb[0].mxu0
      %v1484 = vadd.f32 %v1385, %v1483
      %1485 = vmatprep.mubr.bf16.mxu0 0
      %1486 = vmatmul.mubr.bf16.gmra.mrb[0].mxu0 %v1441
      %v1487 = vpop.f32.mrb[0].mxu0
      %v1488 = vadd.f32 %v1389, %v1487
      %v1489 = vpop.f32.mrb[0].mxu0
      %v1490 = vadd.f32 %v1391, %v1489
      %v1491 = vpop.f32.mrb[0].mxu0
      %v1492 = vadd.f32 %v1393, %v1491
      %v1493 = vpop.f32.mrb[0].mxu0
      %v1494 = vadd.f32 %v1395, %v1493
      %1495 = vdwg.mxu0
      %v1496 = vld [vmem:[%s1 + $0x70] sm:$0xf]
      %v1497 = vld [vmem:[%s1 + $0x74] sm:$0xf]
      %v1498 = vld [vmem:[%s1 + $0x78] sm:$0xf]
      %v1499 = vld [vmem:[%s1 + $0x7c] sm:$0xf]
      %v1504 = vunpack.c.l.b16 %v1496
      %v1505 = vunpack.c.l.b16 %v1497
      %v1506 = vunpack.c.l.b16 %v1498
      %v1507 = vunpack.c.l.b16 %v1499
      %v1508 = vpack.c.b16 %v1505, %v1504
      %v1509 = vpack.c.b16 %v1507, %v1506
      %1510 = vrot.lane.b32.xlu0 %v1299, 118
      %v1511 = vpop.permute.xlu0 %1510
      %1512 = vrot.lane.b32.xlu0 %v1300, 118
      %v1513 = vpop.permute.xlu0 %1512
      %1514 = vrot.lane.b32.xlu0 %v1301, 118
      %v1515 = vpop.permute.xlu0 %1514
      %1516 = vrot.lane.b32.xlu0 %v1302, 118
      %v1517 = vpop.permute.xlu0 %1516
      %1518 = vrot.lane.b32.xlu0 %v1303, 118
      %v1519 = vpop.permute.xlu0 %1518
      %1520 = vrot.lane.b32.xlu0 %v1304, 118
      %v1521 = vpop.permute.xlu0 %1520
      %1522 = vrot.lane.b32.xlu0 %v1305, 118
      %v1523 = vpop.permute.xlu0 %1522
      %1524 = vrot.lane.b32.xlu0 %v1306, 118
      %v1525 = vpop.permute.xlu0 %1524
      %1526 = vrot.lane.b32.xlu0 %v1307, 118
      %v1527 = vpop.permute.xlu0 %1526
      %v1528 = vsel %vm945, %v1511, %v1513
      %v1529 = vsel %vm945, %v1513, %v1515
      %v1530 = vsel %vm945, %v1517, %v1519
      %v1531 = vsel %vm945, %v1519, %v1521
      %v1532 = vsel %vm945, %v1523, %v1525
      %v1533 = vsel %vm945, %v1525, %v1527
      %v1541 = vsel %vm327, %v1508, 0
      %v1544 = vsel %vm327, %v1509, 0
      %1546 = vmatprep.subr.bf16.mxu0 %v1529
      %1547 = vmatpush1.bf16.msra.mxu0 %v1528
      %1548 = vmatprep.subr.bf16.mxu0 %v1531
      %1549 = vmatpush1.bf16.msra.mxu0 %v1530
      %1550 = vmatprep.subr.bf16.mxu0 %v1533
      %1551 = vmatpush1.bf16.msra.mxu0 %v1532
      %1552 = vmatprep.subr.bf16.mxu0 0
      %1553 = vmatpush1.bf16.msra.mxu0 0
      %1554 = vmatprep.subr.bf16.mxu0 0
      %1555 = vmatpush1.bf16.msra.mxu0 0
      %1556 = vmatprep.subr.bf16.mxu0 0
      %1557 = vmatpush1.bf16.msra.mxu0 0
      %1558 = vmatprep.subr.bf16.mxu0 0
      %1559 = vmatpush1.bf16.msra.mxu0 0
      %1560 = vmatprep.subr.bf16.mxu0 0
      %1561 = vmatpush1.bf16.msra.mxu0 0
      %1562 = vmatprep.subr.bf16.mxu0 0
      %1563 = vmatpush1.bf16.msra.mxu0 0
      %1564 = vmatprep.subr.bf16.mxu0 0
      %1565 = vmatpush1.bf16.msra.mxu0 0
      %1566 = vmatprep.subr.bf16.mxu0 0
      %1567 = vmatpush1.bf16.msra.mxu0 0
      %1568 = vmatprep.subr.bf16.mxu0 0
      %1569 = vmatpush1.bf16.msra.mxu0 0
      %1570 = vmatprep.subr.bf16.mxu0 0
      %1571 = vmatpush1.bf16.msra.mxu0 0
      %1572 = vmatprep.subr.bf16.mxu0 0
      %1573 = vmatpush1.bf16.msra.mxu0 0
      %1574 = vmatprep.subr.bf16.mxu0 0
      %1575 = vmatpush1.bf16.msra.mxu0 0
      %1576 = vmatprep.subr.bf16.mxu0 0
      %1577 = vmatpush1.bf16.msra.mxu0 0
      %1578 = vmatprep.mubr.bf16.mxu0 0
      %1579 = vmatmul.mubr.bf16.gmra.mrb[0].mxu0 %v1541
      %v1580 = vpop.f32.mrb[0].mxu0
      %v1581 = vadd.f32 0.0, %v1580
      %v1582 = vpop.f32.mrb[0].mxu0
      %v1583 = vadd.f32 0.0, %v1582
      %v1584 = vpop.f32.mrb[0].mxu0
      %v1585 = vadd.f32 0.0, %v1584
      %v1586 = vpop.f32.mrb[0].mxu0
      %v1587 = vadd.f32 0.0, %v1586
      %1588 = vmatprep.mubr.bf16.mxu0 0
      %1589 = vmatmul.mubr.bf16.gmra.mrb[0].mxu0 %v1544
      %v1590 = vpop.f32.mrb[0].mxu0
      %v1591 = vadd.f32 0.0, %v1590
      %v1592 = vpop.f32.mrb[0].mxu0
      %v1593 = vadd.f32 0.0, %v1592
      %v1594 = vpop.f32.mrb[0].mxu0
      %v1595 = vadd.f32 0.0, %v1594
      %v1596 = vpop.f32.mrb[0].mxu0
      %v1597 = vadd.f32 0.0, %v1596
      %1598 = vdwg.mxu0
      %v1599 = vadd.f32 %v1478, %v1581
      %v1600 = vadd.f32 %v1480, %v1583
      %v1601 = vadd.f32 %v1482, %v1585
      %v1602 = vadd.f32 %v1484, %v1587
      %v1603 = vadd.f32 %v1488, %v1591
      %v1604 = vadd.f32 %v1490, %v1593
      %v1605 = vadd.f32 %v1492, %v1595
      %v1606 = vadd.f32 %v1494, %v1597
      %v1607 = vld [vmem:[%s1 + $0x80] sm:$0xf]
      %v1608 = vld [vmem:[%s1 + $0x84] sm:$0xf]
      %v1609 = vld [vmem:[%s1 + $0x88] sm:$0xf]
      %v1610 = vld [vmem:[%s1 + $0x8c] sm:$0xf]
      %v1615 = vunpack.c.l.b16 %v1607
      %v1616 = vunpack.c.l.b16 %v1608
      %v1617 = vunpack.c.l.b16 %v1609
      %v1618 = vunpack.c.l.b16 %v1610
      %v1619 = vpack.c.b16 %v1616, %v1615
      %v1620 = vpack.c.b16 %v1618, %v1617
      %1621 = vrot.lane.b32.xlu0 %v1299, 117
      %v1622 = vpop.permute.xlu0 %1621
      %1623 = vrot.lane.b32.xlu0 %v1300, 117
      %v1624 = vpop.permute.xlu0 %1623
      %1625 = vrot.lane.b32.xlu0 %v1301, 117
      %v1626 = vpop.permute.xlu0 %1625
      %1627 = vrot.lane.b32.xlu0 %v1302, 117
      %v1628 = vpop.permute.xlu0 %1627
      %1629 = vrot.lane.b32.xlu0 %v1303, 117
      %v1630 = vpop.permute.xlu0 %1629
      %1631 = vrot.lane.b32.xlu0 %v1304, 117
      %v1632 = vpop.permute.xlu0 %1631
      %1633 = vrot.lane.b32.xlu0 %v1305, 117
      %v1634 = vpop.permute.xlu0 %1633
      %1635 = vrot.lane.b32.xlu0 %v1306, 117
      %v1636 = vpop.permute.xlu0 %1635
      %1637 = vrot.lane.b32.xlu0 %v1307, 117
      %v1638 = vpop.permute.xlu0 %1637
      %vm1639 = vcmask 957440
      %v1640 = vsel %vm1639, %v1622, %v1624
      %v1641 = vsel %vm1639, %v1624, %v1626
      %v1642 = vsel %vm1639, %v1628, %v1630
      %v1643 = vsel %vm1639, %v1630, %v1632
      %v1644 = vsel %vm1639, %v1634, %v1636
      %v1645 = vsel %vm1639, %v1636, %v1638
      %v1653 = vsel %vm327, %v1619, 0
      %v1656 = vsel %vm327, %v1620, 0
      %1658 = vmatprep.subr.bf16.mxu0 %v1641
      %1659 = vmatpush1.bf16.msra.mxu0 %v1640
      %1660 = vmatprep.subr.bf16.mxu0 %v1643
      %1661 = vmatpush1.bf16.msra.mxu0 %v1642
      %1662 = vmatprep.subr.bf16.mxu0 %v1645
      %1663 = vmatpush1.bf16.msra.mxu0 %v1644
      %1664 = vmatprep.subr.bf16.mxu0 0
      %1665 = vmatpush1.bf16.msra.mxu0 0
      %1666 = vmatprep.subr.bf16.mxu0 0
      %1667 = vmatpush1.bf16.msra.mxu0 0
      %1668 = vmatprep.subr.bf16.mxu0 0
      %1669 = vmatpush1.bf16.msra.mxu0 0
      %1670 = vmatprep.subr.bf16.mxu0 0
      %1671 = vmatpush1.bf16.msra.mxu0 0
      %1672 = vmatprep.subr.bf16.mxu0 0
      %1673 = vmatpush1.bf16.msra.mxu0 0
      %1674 = vmatprep.subr.bf16.mxu0 0
      %1675 = vmatpush1.bf16.msra.mxu0 0
      %1676 = vmatprep.subr.bf16.mxu0 0
      %1677 = vmatpush1.bf16.msra.mxu0 0
      %1678 = vmatprep.subr.bf16.mxu0 0
      %1679 = vmatpush1.bf16.msra.mxu0 0
      %1680 = vmatprep.subr.bf16.mxu0 0
      %1681 = vmatpush1.bf16.msra.mxu0 0
      %1682 = vmatprep.subr.bf16.mxu0 0
      %1683 = vmatpush1.bf16.msra.mxu0 0
      %1684 = vmatprep.subr.bf16.mxu0 0
      %1685 = vmatpush1.bf16.msra.mxu0 0
      %1686 = vmatprep.subr.bf16.mxu0 0
      %1687 = vmatpush1.bf16.msra.mxu0 0
      %1688 = vmatprep.subr.bf16.mxu0 0
      %1689 = vmatpush1.bf16.msra.mxu0 0
      %1690 = vmatprep.mubr.bf16.mxu0 0
      %1691 = vmatmul.mubr.bf16.gmra.mrb[0].mxu0 %v1653
      %v1692 = vpop.f32.mrb[0].mxu0
      %v1693 = vadd.f32 0.0, %v1692
      %v1694 = vpop.f32.mrb[0].mxu0
      %v1695 = vadd.f32 0.0, %v1694
      %v1696 = vpop.f32.mrb[0].mxu0
      %v1697 = vadd.f32 0.0, %v1696
      %v1698 = vpop.f32.mrb[0].mxu0
      %v1699 = vadd.f32 0.0, %v1698
      %1700 = vmatprep.mubr.bf16.mxu0 0
      %1701 = vmatmul.mubr.bf16.gmra.mrb[0].mxu0 %v1656
      %v1702 = vpop.f32.mrb[0].mxu0
      %v1703 = vadd.f32 0.0, %v1702
      %v1704 = vpop.f32.mrb[0].mxu0
      %v1705 = vadd.f32 0.0, %v1704
      %v1706 = vpop.f32.mrb[0].mxu0
      %v1707 = vadd.f32 0.0, %v1706
      %v1708 = vpop.f32.mrb[0].mxu0
      %v1709 = vadd.f32 0.0, %v1708
      %1710 = vdwg.mxu0
      %v1711 = vadd.f32 %v1599, %v1693
      %v1712 = vadd.f32 %v1600, %v1695
      %v1713 = vadd.f32 %v1601, %v1697
      %v1714 = vadd.f32 %v1602, %v1699
      %v1715 = vadd.f32 %v1603, %v1703
      %v1716 = vadd.f32 %v1604, %v1705
      %v1717 = vadd.f32 %v1605, %v1707
      %v1718 = vadd.f32 %v1606, %v1709
      %v1719 = vld [vmem:[%s2] sm:$0xff]
      %v1720 = vld [vmem:[%s2 + $0x8] sm:$0xff]
      %v1721 = vld [vmem:[%s2 + $0x10] sm:$0xff]
      %v1722 = vld [vmem:[%s2 + $0x18] sm:$0xff]
      %1724 = vset.pattern.permute.xlu0 0
      %1725 = vperm.xlu0 %1724, %v1719
      %v1726 = vpop.permute.xlu0 %1725
      %1729 = vset.pattern.permute.xlu0 0
      %1730 = vperm.xlu0 %1729, %v1720
      %v1731 = vpop.permute.xlu0 %1730
      %1734 = vset.pattern.permute.xlu0 0
      %1735 = vperm.xlu0 %1734, %v1721
      %v1736 = vpop.permute.xlu0 %1735
      %1739 = vset.pattern.permute.xlu0 0
      %1740 = vperm.xlu0 %1739, %v1722
      %v1741 = vpop.permute.xlu0 %1740
      %v1743 = vadd.f32 %v1711, %v1726
      %v1744 = vadd.f32 %v1712, %v1726
      %v1745 = vadd.f32 %v1713, %v1731
      %v1746 = vadd.f32 %v1714, %v1731
      %v1747 = vadd.f32 %v1715, %v1736
      %v1748 = vadd.f32 %v1716, %v1736
      %v1749 = vadd.f32 %v1717, %v1741
      %v1750 = vadd.f32 %v1718, %v1741
      %v1751 = vxor.u32 %v1743, 2147483648
      %v1752 = vxor.u32 %v1744, 2147483648
      %v1753 = vxor.u32 %v1745, 2147483648
      %v1754 = vxor.u32 %v1746, 2147483648
      %v1755 = vxor.u32 %v1747, 2147483648
      %v1756 = vxor.u32 %v1748, 2147483648
      %v1757 = vxor.u32 %v1749, 2147483648
      %v1758 = vxor.u32 %v1750, 2147483648
      %v1759 = vmul.f32 %v1751, 1.442695
      %v1760 = vpow.pop %v1759
      %v1761 = vmul.f32 %v1752, 1.442695
      %v1762 = vpow.pop %v1761
      %v1763 = vmul.f32 %v1753, 1.442695
      %v1764 = vpow.pop %v1763
      %v1765 = vmul.f32 %v1754, 1.442695
      %v1766 = vpow.pop %v1765
      %v1767 = vmul.f32 %v1755, 1.442695
      %v1768 = vpow.pop %v1767
      %v1769 = vmul.f32 %v1756, 1.442695
      %v1770 = vpow.pop %v1769
      %v1771 = vmul.f32 %v1757, 1.442695
      %v1772 = vpow.pop %v1771
      %v1773 = vmul.f32 %v1758, 1.442695
      %v1774 = vpow.pop %v1773
      %v1775 = vadd.f32 %v1760, 1.0
      %v1776 = vadd.f32 %v1762, 1.0
      %v1777 = vadd.f32 %v1764, 1.0
      %v1778 = vadd.f32 %v1766, 1.0
      %v1779 = vadd.f32 %v1768, 1.0
      %v1780 = vadd.f32 %v1770, 1.0
      %v1781 = vadd.f32 %v1772, 1.0
      %v1782 = vadd.f32 %v1774, 1.0
      %v1783 = vrcp.pop %v1775
      %v1784 = vmul.f32 1.0, %v1783
      %v1785 = vrcp.pop %v1776
      %v1786 = vmul.f32 1.0, %v1785
      %v1787 = vrcp.pop %v1777
      %v1788 = vmul.f32 1.0, %v1787
      %v1789 = vrcp.pop %v1778
      %v1790 = vmul.f32 1.0, %v1789
      %v1791 = vrcp.pop %v1779
      %v1792 = vmul.f32 1.0, %v1791
      %v1793 = vrcp.pop %v1780
      %v1794 = vmul.f32 1.0, %v1793
      %v1795 = vrcp.pop %v1781
      %v1796 = vmul.f32 1.0, %v1795
      %v1797 = vrcp.pop %v1782
      %v1798 = vmul.f32 1.0, %v1797
      %v1799 = vmul.f32 %v1743, %v1784
      %v1800 = vmul.f32 %v1744, %v1786
      %v1801 = vmul.f32 %v1745, %v1788
      %v1802 = vmul.f32 %v1746, %v1790
      %v1803 = vmul.f32 %v1747, %v1792
      %v1804 = vmul.f32 %v1748, %v1794
      %v1805 = vmul.f32 %v1749, %v1796
      %v1806 = vmul.f32 %v1750, %v1798
      %s1807 = scalar_lea.vmem %s3, 3
      %v1808 = vld [vmem:[%s1807] ss:$4 sm:$0x3]
      %v1810 = vlaneseq
      %v1811 = vshrl.u32 %v1810, 7
      %v1812 = vsub.s32 0, %v1811
      %v1813 = vrot.slane %v1808, %v1812
      %v1814 = vlaneseq
      %v1815 = vshrl.u32 %v1814, 7
      %v1816 = vsub.s32 1, %v1815
      %v1817 = vrot.slane %v1808, %v1816
      %v1820 = vmul.f32 %v1799, %v1813
      %v1821 = vmul.f32 %v1800, %v1817
      %v1822 = vmul.f32 %v1801, %v1813
      %v1823 = vmul.f32 %v1802, %v1817
      %v1824 = vmul.f32 %v1803, %v1813
      %v1825 = vmul.f32 %v1804, %v1817
      %v1826 = vmul.f32 %v1805, %v1813
      %v1827 = vmul.f32 %v1806, %v1817
      %v1828 = vpack.c.bf16 %v1822, %v1820
      %v1829 = vpack.c.bf16 %v1823, %v1821
      %v1830 = vpack.c.bf16 %v1826, %v1824
      %v1831 = vpack.c.bf16 %v1827, %v1825
      %1832 = vst [vmem:[#allocation2 + $0x60] sm:$0xff] %v1828
      %1833 = vst [vmem:[#allocation2 + $0x68] sm:$0xff] %v1829
      %1834 = vst [vmem:[#allocation2 + $0x70] sm:$0xff] %v1830
      %1835 = vst [vmem:[#allocation2 + $0x78] sm:$0xff] %v1831
      %v1836 = vld [vmem:[%s4] sm:$0xf]
      %v1837 = vld [vmem:[%s4 + $0x4] sm:$0xf]
      %v1838 = vld [vmem:[%s4 + $0x8] sm:$0xf]
      %v1839 = vld [vmem:[%s4 + $0xc] sm:$0xf]
      %v1840 = vld [vmem:[%s4 + $0x10] sm:$0xf]
      %v1841 = vld [vmem:[%s4 + $0x14] sm:$0xf]
      %v1842 = vld [vmem:[%s4 + $0x18] sm:$0xf]
      %v1843 = vld [vmem:[%s4 + $0x1c] sm:$0xf]
      %v1844 = vld [vmem:[%s4 + $0x20] sm:$0xf]
      %v1845 = vld [vmem:[%s4 + $0x24] sm:$0xf]
      %v1846 = vld [vmem:[%s4 + $0x28] sm:$0xf]
      %v1847 = vld [vmem:[%s4 + $0x2c] sm:$0xf]
      %v1848 = vld [vmem:[%s4 + $0x30] sm:$0xf]
      %v1849 = vld [vmem:[%s4 + $0x34] sm:$0xf]
      %v1850 = vld [vmem:[%s4 + $0x38] sm:$0xf]
      %v1851 = vld [vmem:[%s4 + $0x3c] sm:$0xf]
      %v1852 = vld [vmem:[#allocation2] sm:$0xff]
      %v1853 = vld [vmem:[#allocation2 + $0x10] sm:$0xff]
      %v1854 = vld [vmem:[#allocation2 + $0x20] sm:$0xff]
      %v1855 = vld [vmem:[#allocation2 + $0x30] sm:$0xff]
      %v1856 = vld [vmem:[#allocation2 + $0x40] sm:$0xff]
      %v1857 = vld [vmem:[#allocation2 + $0x50] sm:$0xff]
      %v1858 = vld [vmem:[#allocation2 + $0x60] sm:$0xff]
      %v1859 = vld [vmem:[#allocation2 + $0x70] sm:$0xff]
      %v1860 = vld [vmem:[%s4 + $0x40] sm:$0xf]
      %v1861 = vld [vmem:[%s4 + $0x44] sm:$0xf]
      %v1862 = vld [vmem:[%s4 + $0x48] sm:$0xf]
      %v1863 = vld [vmem:[%s4 + $0x4c] sm:$0xf]
      %v1864 = vld [vmem:[%s4 + $0x50] sm:$0xf]
      %v1865 = vld [vmem:[%s4 + $0x54] sm:$0xf]
      %v1866 = vld [vmem:[%s4 + $0x58] sm:$0xf]
      %v1867 = vld [vmem:[%s4 + $0x5c] sm:$0xf]
      %v1868 = vld [vmem:[%s4 + $0x60] sm:$0xf]
      %v1869 = vld [vmem:[%s4 + $0x64] sm:$0xf]
      %v1870 = vld [vmem:[%s4 + $0x68] sm:$0xf]
      %v1871 = vld [vmem:[%s4 + $0x6c] sm:$0xf]
      %v1872 = vld [vmem:[%s4 + $0x70] sm:$0xf]
      %v1873 = vld [vmem:[%s4 + $0x74] sm:$0xf]
      %v1874 = vld [vmem:[%s4 + $0x78] sm:$0xf]
      %v1875 = vld [vmem:[%s4 + $0x7c] sm:$0xf]
      %v1876 = vld [vmem:[#allocation2] sm:$0xff]
      %v1877 = vld [vmem:[#allocation2 + $0x8] sm:$0xff]
      %v1878 = vld [vmem:[#allocation2 + $0x10] sm:$0xff]
      %v1879 = vld [vmem:[#allocation2 + $0x18] sm:$0xff]
      %v1880 = vld [vmem:[#allocation2 + $0x20] sm:$0xff]
      %v1881 = vld [vmem:[#allocation2 + $0x28] sm:$0xff]
      %v1882 = vld [vmem:[#allocation2 + $0x30] sm:$0xff]
      %v1883 = vld [vmem:[#allocation2 + $0x38] sm:$0xff]
      %v1884 = vld [vmem:[#allocation2 + $0x40] sm:$0xff]
      %v1885 = vld [vmem:[#allocation2 + $0x48] sm:$0xff]
      %v1886 = vld [vmem:[#allocation2 + $0x50] sm:$0xff]
      %v1887 = vld [vmem:[#allocation2 + $0x58] sm:$0xff]
      %v1888 = vld [vmem:[#allocation2 + $0x60] sm:$0xff]
      %v1889 = vld [vmem:[#allocation2 + $0x68] sm:$0xff]
      %v1890 = vld [vmem:[#allocation2 + $0x70] sm:$0xff]
      %v1891 = vld [vmem:[#allocation2 + $0x78] sm:$0xff]
      %v1908 = vunpack.c.l.b16 %v1860
      %v1909 = vunpack.c.l.b16 %v1861
      %v1910 = vunpack.c.l.b16 %v1862
      %v1911 = vunpack.c.l.b16 %v1863
      %v1912 = vunpack.c.l.b16 %v1864
      %v1913 = vunpack.c.l.b16 %v1865
      %v1914 = vunpack.c.l.b16 %v1866
      %v1915 = vunpack.c.l.b16 %v1867
      %v1916 = vunpack.c.l.b16 %v1868
      %v1917 = vunpack.c.l.b16 %v1869
      %v1918 = vunpack.c.l.b16 %v1870
      %v1919 = vunpack.c.l.b16 %v1871
      %v1920 = vunpack.c.l.b16 %v1872
      %v1921 = vunpack.c.l.b16 %v1873
      %v1922 = vunpack.c.l.b16 %v1874
      %v1923 = vunpack.c.l.b16 %v1875
      %v1924 = vpack.c.b16 %v1909, %v1908
      %v1925 = vpack.c.b16 %v1911, %v1910
      %v1926 = vpack.c.b16 %v1913, %v1912
      %v1927 = vpack.c.b16 %v1915, %v1914
      %v1928 = vpack.c.b16 %v1917, %v1916
      %v1929 = vpack.c.b16 %v1919, %v1918
      %v1930 = vpack.c.b16 %v1921, %v1920
      %v1931 = vpack.c.b16 %v1923, %v1922
      %1956 = vrot.lane.b32.xlu0 %v1876, 127
      %v1957 = vpop.permute.xlu0 %1956
      %1958 = vrot.lane.b32.xlu0 %v1877, 127
      %v1959 = vpop.permute.xlu0 %1958
      %1960 = vrot.lane.b32.xlu0 %v1878, 127
      %v1961 = vpop.permute.xlu0 %1960
      %1962 = vrot.lane.b32.xlu0 %v1879, 127
      %v1963 = vpop.permute.xlu0 %1962
      %1964 = vrot.lane.b32.xlu0 %v1880, 127
      %v1965 = vpop.permute.xlu0 %1964
      %1966 = vrot.lane.b32.xlu0 %v1881, 127
      %v1967 = vpop.permute.xlu0 %1966
      %1968 = vrot.lane.b32.xlu0 %v1882, 127
      %v1969 = vpop.permute.xlu0 %1968
      %1970 = vrot.lane.b32.xlu0 %v1883, 127
      %v1971 = vpop.permute.xlu0 %1970
      %1972 = vrot.lane.b32.xlu0 %v1884, 127
      %v1973 = vpop.permute.xlu0 %1972
      %1974 = vrot.lane.b32.xlu0 %v1885, 127
      %v1975 = vpop.permute.xlu0 %1974
      %1976 = vrot.lane.b32.xlu0 %v1886, 127
      %v1977 = vpop.permute.xlu0 %1976
      %1978 = vrot.lane.b32.xlu0 %v1887, 127
      %v1979 = vpop.permute.xlu0 %1978
      %1980 = vrot.lane.b32.xlu0 %v1888, 127
      %v1981 = vpop.permute.xlu0 %1980
      %1982 = vrot.lane.b32.xlu0 %v1889, 127
      %v1983 = vpop.permute.xlu0 %1982
      %1984 = vrot.lane.b32.xlu0 %v1890, 127
      %v1985 = vpop.permute.xlu0 %1984
      %1986 = vrot.lane.b32.xlu0 %v1891, 127
      %v1987 = vpop.permute.xlu0 %1986
      %v1988 = vsel %vm564, %v1957, %v1959
      %v1989 = vsel %vm564, %v1961, %v1963
      %v1990 = vsel %vm564, %v1965, %v1967
      %v1991 = vsel %vm564, %v1969, %v1971
      %v1992 = vsel %vm564, %v1973, %v1975
      %v1993 = vsel %vm564, %v1977, %v1979
      %v1994 = vsel %vm564, %v1981, %v1983
      %v1995 = vsel %vm564, %v1985, %v1987
      %2004 = vmatprep.subr.bf16.mxu0 0
      %2005 = vmatpush1.bf16.msra.mxu0 %v1988
      %2006 = vmatprep.subr.bf16.mxu0 0
      %2007 = vmatpush1.bf16.msra.mxu0 %v1989
      %2008 = vmatprep.subr.bf16.mxu0 0
      %2009 = vmatpush1.bf16.msra.mxu0 %v1990
      %2010 = vmatprep.subr.bf16.mxu0 0
      %2011 = vmatpush1.bf16.msra.mxu0 %v1991
      %2012 = vmatprep.subr.bf16.mxu0 0
      %2013 = vmatpush1.bf16.msra.mxu0 %v1992
      %2014 = vmatprep.subr.bf16.mxu0 0
      %2015 = vmatpush1.bf16.msra.mxu0 %v1993
      %2016 = vmatprep.subr.bf16.mxu0 0
      %2017 = vmatpush1.bf16.msra.mxu0 %v1994
      %2018 = vmatprep.subr.bf16.mxu0 0
      %2019 = vmatpush1.bf16.msra.mxu0 %v1995
      %2020 = vmatprep.subr.bf16.mxu0 0
      %2021 = vmatpush1.bf16.msra.mxu0 0
      %2022 = vmatprep.subr.bf16.mxu0 0
      %2023 = vmatpush1.bf16.msra.mxu0 0
      %2024 = vmatprep.subr.bf16.mxu0 0
      %2025 = vmatpush1.bf16.msra.mxu0 0
      %2026 = vmatprep.subr.bf16.mxu0 0
      %2027 = vmatpush1.bf16.msra.mxu0 0
      %2028 = vmatprep.subr.bf16.mxu0 0
      %2029 = vmatpush1.bf16.msra.mxu0 0
      %2030 = vmatprep.subr.bf16.mxu0 0
      %2031 = vmatpush1.bf16.msra.mxu0 0
      %2032 = vmatprep.subr.bf16.mxu0 0
      %2033 = vmatpush1.bf16.msra.mxu0 0
      %2034 = vmatprep.subr.bf16.mxu0 0
      %2035 = vmatpush1.bf16.msra.mxu0 0
      %2036 = vmatprep.mubr.bf16.mxu0 0
      %2037 = vmatmul.mubr.bf16.gmra.mrb[0].mxu0 %v1924
      %v2038 = vpop.f32.mrb[0].mxu0
      %v2039 = vadd.f32 0.0, %v2038
      %v2040 = vpop.f32.mrb[0].mxu0
      %v2041 = vpop.f32.mrb[0].mxu0
      %v2042 = vadd.f32 0.0, %v2041
      %v2043 = vpop.f32.mrb[0].mxu0
      %2044 = vmatprep.mubr.bf16.mxu0 0
      %2045 = vmatmul.mubr.bf16.gmra.mrb[0].mxu0 %v1925
      %v2046 = vpop.f32.mrb[0].mxu0
      %v2047 = vadd.f32 0.0, %v2046
      %v2048 = vpop.f32.mrb[0].mxu0
      %v2049 = vpop.f32.mrb[0].mxu0
      %v2050 = vadd.f32 0.0, %v2049
      %v2051 = vpop.f32.mrb[0].mxu0
      %2052 = vmatprep.mubr.bf16.mxu0 0
      %2053 = vmatmul.mubr.bf16.gmra.mrb[0].mxu0 %v1926
      %v2054 = vpop.f32.mrb[0].mxu0
      %v2055 = vadd.f32 0.0, %v2054
      %v2056 = vpop.f32.mrb[0].mxu0
      %v2057 = vpop.f32.mrb[0].mxu0
      %v2058 = vadd.f32 0.0, %v2057
      %v2059 = vpop.f32.mrb[0].mxu0
      %2060 = vmatprep.mubr.bf16.mxu0 0
      %2061 = vmatmul.mubr.bf16.gmra.mrb[0].mxu0 %v1927
      %v2062 = vpop.f32.mrb[0].mxu0
      %v2063 = vadd.f32 0.0, %v2062
      %v2064 = vpop.f32.mrb[0].mxu0
      %v2065 = vpop.f32.mrb[0].mxu0
      %v2066 = vadd.f32 0.0, %v2065
      %v2067 = vpop.f32.mrb[0].mxu0
      %2068 = vmatprep.mubr.bf16.mxu0 0
      %2069 = vmatmul.mubr.bf16.gmra.mrb[0].mxu0 %v1928
      %v2070 = vpop.f32.mrb[0].mxu0
      %v2071 = vadd.f32 0.0, %v2070
      %v2072 = vpop.f32.mrb[0].mxu0
      %v2073 = vpop.f32.mrb[0].mxu0
      %v2074 = vadd.f32 0.0, %v2073
      %v2075 = vpop.f32.mrb[0].mxu0
      %2076 = vmatprep.mubr.bf16.mxu0 0
      %2077 = vmatmul.mubr.bf16.gmra.mrb[0].mxu0 %v1929
      %v2078 = vpop.f32.mrb[0].mxu0
      %v2079 = vadd.f32 0.0, %v2078
      %v2080 = vpop.f32.mrb[0].mxu0
      %v2081 = vpop.f32.mrb[0].mxu0
      %v2082 = vadd.f32 0.0, %v2081
      %v2083 = vpop.f32.mrb[0].mxu0
      %2084 = vmatprep.mubr.bf16.mxu0 0
      %2085 = vmatmul.mubr.bf16.gmra.mrb[0].mxu0 %v1930
      %v2086 = vpop.f32.mrb[0].mxu0
      %v2087 = vadd.f32 0.0, %v2086
      %v2088 = vpop.f32.mrb[0].mxu0
      %v2089 = vpop.f32.mrb[0].mxu0
      %v2090 = vadd.f32 0.0, %v2089
      %v2091 = vpop.f32.mrb[0].mxu0
      %2092 = vmatprep.mubr.bf16.mxu0 0
      %2093 = vmatmul.mubr.bf16.gmra.mrb[0].mxu0 %v1931
      %v2094 = vpop.f32.mrb[0].mxu0
      %v2095 = vadd.f32 0.0, %v2094
      %v2096 = vpop.f32.mrb[0].mxu0
      %v2097 = vpop.f32.mrb[0].mxu0
      %v2098 = vadd.f32 0.0, %v2097
      %v2099 = vpop.f32.mrb[0].mxu0
      %2100 = vdwg.mxu0
      %v2117 = vunpack.c.l.b16 %v1836
      %v2118 = vunpack.c.l.b16 %v1837
      %v2119 = vunpack.c.l.b16 %v1838
      %v2120 = vunpack.c.l.b16 %v1839
      %v2121 = vunpack.c.l.b16 %v1840
      %v2122 = vunpack.c.l.b16 %v1841
      %v2123 = vunpack.c.l.b16 %v1842
      %v2124 = vunpack.c.l.b16 %v1843
      %v2125 = vunpack.c.l.b16 %v1844
      %v2126 = vunpack.c.l.b16 %v1845
      %v2127 = vunpack.c.l.b16 %v1846
      %v2128 = vunpack.c.l.b16 %v1847
      %v2129 = vunpack.c.l.b16 %v1848
      %v2130 = vunpack.c.l.b16 %v1849
      %v2131 = vunpack.c.l.b16 %v1850
      %v2132 = vunpack.c.l.b16 %v1851
      %v2133 = vpack.c.b16 %v2118, %v2117
      %v2134 = vpack.c.b16 %v2120, %v2119
      %v2135 = vpack.c.b16 %v2122, %v2121
      %v2136 = vpack.c.b16 %v2124, %v2123
      %v2137 = vpack.c.b16 %v2126, %v2125
      %v2138 = vpack.c.b16 %v2128, %v2127
      %v2139 = vpack.c.b16 %v2130, %v2129
      %v2140 = vpack.c.b16 %v2132, %v2131
      %2149 = vmatprep.subr.bf16.mxu0 0
      %2150 = vmatpush1.bf16.msra.mxu0 %v1852
      %2151 = vmatprep.subr.bf16.mxu0 0
      %2152 = vmatpush1.bf16.msra.mxu0 %v1853
      %2153 = vmatprep.subr.bf16.mxu0 0
      %2154 = vmatpush1.bf16.msra.mxu0 %v1854
      %2155 = vmatprep.subr.bf16.mxu0 0
      %2156 = vmatpush1.bf16.msra.mxu0 %v1855
      %2157 = vmatprep.subr.bf16.mxu0 0
      %2158 = vmatpush1.bf16.msra.mxu0 %v1856
      %2159 = vmatprep.subr.bf16.mxu0 0
      %2160 = vmatpush1.bf16.msra.mxu0 %v1857
      %2161 = vmatprep.subr.bf16.mxu0 0
      %2162 = vmatpush1.bf16.msra.mxu0 %v1858
      %2163 = vmatprep.subr.bf16.mxu0 0
      %2164 = vmatpush1.bf16.msra.mxu0 %v1859
      %2165 = vmatprep.subr.bf16.mxu0 0
      %2166 = vmatpush1.bf16.msra.mxu0 0
      %2167 = vmatprep.subr.bf16.mxu0 0
      %2168 = vmatpush1.bf16.msra.mxu0 0
      %2169 = vmatprep.subr.bf16.mxu0 0
      %2170 = vmatpush1.bf16.msra.mxu0 0
      %2171 = vmatprep.subr.bf16.mxu0 0
      %2172 = vmatpush1.bf16.msra.mxu0 0
      %2173 = vmatprep.subr.bf16.mxu0 0
      %2174 = vmatpush1.bf16.msra.mxu0 0
      %2175 = vmatprep.subr.bf16.mxu0 0
      %2176 = vmatpush1.bf16.msra.mxu0 0
      %2177 = vmatprep.subr.bf16.mxu0 0
      %2178 = vmatpush1.bf16.msra.mxu0 0
      %2179 = vmatprep.subr.bf16.mxu0 0
      %2180 = vmatpush1.bf16.msra.mxu0 0
      %2181 = vmatprep.mubr.bf16.mxu0 0
      %2182 = vmatmul.mubr.bf16.gmra.mrb[0].mxu0 %v2133
      %v2183 = vpop.f32.mrb[0].mxu0
      %v2184 = vadd.f32 %v2039, %v2183
      %v2185 = vpop.f32.mrb[0].mxu0
      %v2186 = vpop.f32.mrb[0].mxu0
      %v2187 = vadd.f32 %v2042, %v2186
      %v2188 = vpop.f32.mrb[0].mxu0
      %2189 = vmatprep.mubr.bf16.mxu0 0
      %2190 = vmatmul.mubr.bf16.gmra.mrb[0].mxu0 %v2134
      %v2191 = vpop.f32.mrb[0].mxu0
      %v2192 = vadd.f32 %v2047, %v2191
      %v2193 = vpop.f32.mrb[0].mxu0
      %v2194 = vpop.f32.mrb[0].mxu0
      %v2195 = vadd.f32 %v2050, %v2194
      %v2196 = vpop.f32.mrb[0].mxu0
      %2197 = vmatprep.mubr.bf16.mxu0 0
      %2198 = vmatmul.mubr.bf16.gmra.mrb[0].mxu0 %v2135
      %v2199 = vpop.f32.mrb[0].mxu0
      %v2200 = vadd.f32 %v2055, %v2199
      %v2201 = vpop.f32.mrb[0].mxu0
      %v2202 = vpop.f32.mrb[0].mxu0
      %v2203 = vadd.f32 %v2058, %v2202
      %v2204 = vpop.f32.mrb[0].mxu0
      %2205 = vmatprep.mubr.bf16.mxu0 0
      %2206 = vmatmul.mubr.bf16.gmra.mrb[0].mxu0 %v2136
      %v2207 = vpop.f32.mrb[0].mxu0
      %v2208 = vadd.f32 %v2063, %v2207
      %v2209 = vpop.f32.mrb[0].mxu0
      %v2210 = vpop.f32.mrb[0].mxu0
      %v2211 = vadd.f32 %v2066, %v2210
      %v2212 = vpop.f32.mrb[0].mxu0
      %2213 = vmatprep.mubr.bf16.mxu0 0
      %2214 = vmatmul.mubr.bf16.gmra.mrb[0].mxu0 %v2137
      %v2215 = vpop.f32.mrb[0].mxu0
      %v2216 = vadd.f32 %v2071, %v2215
      %v2217 = vpop.f32.mrb[0].mxu0
      %v2218 = vpop.f32.mrb[0].mxu0
      %v2219 = vadd.f32 %v2074, %v2218
      %v2220 = vpop.f32.mrb[0].mxu0
      %2221 = vmatprep.mubr.bf16.mxu0 0
      %2222 = vmatmul.mubr.bf16.gmra.mrb[0].mxu0 %v2138
      %v2223 = vpop.f32.mrb[0].mxu0
      %v2224 = vadd.f32 %v2079, %v2223
      %v2225 = vpop.f32.mrb[0].mxu0
      %v2226 = vpop.f32.mrb[0].mxu0
      %v2227 = vadd.f32 %v2082, %v2226
      %v2228 = vpop.f32.mrb[0].mxu0
      %2229 = vmatprep.mubr.bf16.mxu0 0
      %2230 = vmatmul.mubr.bf16.gmra.mrb[0].mxu0 %v2139
      %v2231 = vpop.f32.mrb[0].mxu0
      %v2232 = vadd.f32 %v2087, %v2231
      %v2233 = vpop.f32.mrb[0].mxu0
      %v2234 = vpop.f32.mrb[0].mxu0
      %v2235 = vadd.f32 %v2090, %v2234
      %v2236 = vpop.f32.mrb[0].mxu0
      %2237 = vmatprep.mubr.bf16.mxu0 0
      %2238 = vmatmul.mubr.bf16.gmra.mrb[0].mxu0 %v2140
      %v2239 = vpop.f32.mrb[0].mxu0
      %v2240 = vadd.f32 %v2095, %v2239
      %v2241 = vpop.f32.mrb[0].mxu0
      %v2242 = vpop.f32.mrb[0].mxu0
      %v2243 = vadd.f32 %v2098, %v2242
      %v2244 = vpop.f32.mrb[0].mxu0
      %2245 = vdwg.mxu0
      %v2246 = vld [vmem:[%s4 + $0x80] sm:$0xf]
      %v2247 = vld [vmem:[%s4 + $0x84] sm:$0xf]
      %v2248 = vld [vmem:[%s4 + $0x88] sm:$0xf]
      %v2249 = vld [vmem:[%s4 + $0x8c] sm:$0xf]
      %v2250 = vld [vmem:[%s4 + $0x90] sm:$0xf]
      %v2251 = vld [vmem:[%s4 + $0x94] sm:$0xf]
      %v2252 = vld [vmem:[%s4 + $0x98] sm:$0xf]
      %v2253 = vld [vmem:[%s4 + $0x9c] sm:$0xf]
      %v2254 = vld [vmem:[%s4 + $0xa0] sm:$0xf]
      %v2255 = vld [vmem:[%s4 + $0xa4] sm:$0xf]
      %v2256 = vld [vmem:[%s4 + $0xa8] sm:$0xf]
      %v2257 = vld [vmem:[%s4 + $0xac] sm:$0xf]
      %v2258 = vld [vmem:[%s4 + $0xb0] sm:$0xf]
      %v2259 = vld [vmem:[%s4 + $0xb4] sm:$0xf]
      %v2260 = vld [vmem:[%s4 + $0xb8] sm:$0xf]
      %v2261 = vld [vmem:[%s4 + $0xbc] sm:$0xf]
      %v2278 = vunpack.c.l.b16 %v2246
      %v2279 = vunpack.c.l.b16 %v2247
      %v2280 = vunpack.c.l.b16 %v2248
      %v2281 = vunpack.c.l.b16 %v2249
      %v2282 = vunpack.c.l.b16 %v2250
      %v2283 = vunpack.c.l.b16 %v2251
      %v2284 = vunpack.c.l.b16 %v2252
      %v2285 = vunpack.c.l.b16 %v2253
      %v2286 = vunpack.c.l.b16 %v2254
      %v2287 = vunpack.c.l.b16 %v2255
      %v2288 = vunpack.c.l.b16 %v2256
      %v2289 = vunpack.c.l.b16 %v2257
      %v2290 = vunpack.c.l.b16 %v2258
      %v2291 = vunpack.c.l.b16 %v2259
      %v2292 = vunpack.c.l.b16 %v2260
      %v2293 = vunpack.c.l.b16 %v2261
      %v2294 = vpack.c.b16 %v2279, %v2278
      %v2295 = vpack.c.b16 %v2281, %v2280
      %v2296 = vpack.c.b16 %v2283, %v2282
      %v2297 = vpack.c.b16 %v2285, %v2284
      %v2298 = vpack.c.b16 %v2287, %v2286
      %v2299 = vpack.c.b16 %v2289, %v2288
      %v2300 = vpack.c.b16 %v2291, %v2290
      %v2301 = vpack.c.b16 %v2293, %v2292
      %2310 = vrot.lane.b32.xlu0 %v1876, 118
      %v2311 = vpop.permute.xlu0 %2310
      %2312 = vrot.lane.b32.xlu0 %v1877, 118
      %v2313 = vpop.permute.xlu0 %2312
      %2314 = vrot.lane.b32.xlu0 %v1878, 118
      %v2315 = vpop.permute.xlu0 %2314
      %2316 = vrot.lane.b32.xlu0 %v1879, 118
      %v2317 = vpop.permute.xlu0 %2316
      %2318 = vrot.lane.b32.xlu0 %v1880, 118
      %v2319 = vpop.permute.xlu0 %2318
      %2320 = vrot.lane.b32.xlu0 %v1881, 118
      %v2321 = vpop.permute.xlu0 %2320
      %2322 = vrot.lane.b32.xlu0 %v1882, 118
      %v2323 = vpop.permute.xlu0 %2322
      %2324 = vrot.lane.b32.xlu0 %v1883, 118
      %v2325 = vpop.permute.xlu0 %2324
      %2326 = vrot.lane.b32.xlu0 %v1884, 118
      %v2327 = vpop.permute.xlu0 %2326
      %2328 = vrot.lane.b32.xlu0 %v1885, 118
      %v2329 = vpop.permute.xlu0 %2328
      %2330 = vrot.lane.b32.xlu0 %v1886, 118
      %v2331 = vpop.permute.xlu0 %2330
      %2332 = vrot.lane.b32.xlu0 %v1887, 118
      %v2333 = vpop.permute.xlu0 %2332
      %2334 = vrot.lane.b32.xlu0 %v1888, 118
      %v2335 = vpop.permute.xlu0 %2334
      %2336 = vrot.lane.b32.xlu0 %v1889, 118
      %v2337 = vpop.permute.xlu0 %2336
      %2338 = vrot.lane.b32.xlu0 %v1890, 118
      %v2339 = vpop.permute.xlu0 %2338
      %2340 = vrot.lane.b32.xlu0 %v1891, 118
      %v2341 = vpop.permute.xlu0 %2340
      %v2342 = vsel %vm945, %v2311, %v2313
      %v2343 = vsel %vm945, %v2315, %v2317
      %v2344 = vsel %vm945, %v2319, %v2321
      %v2345 = vsel %vm945, %v2323, %v2325
      %v2346 = vsel %vm945, %v2327, %v2329
      %v2347 = vsel %vm945, %v2331, %v2333
      %v2348 = vsel %vm945, %v2335, %v2337
      %v2349 = vsel %vm945, %v2339, %v2341
      %2358 = vmatprep.subr.bf16.mxu0 0
      %2359 = vmatpush1.bf16.msra.mxu0 %v2342
      %2360 = vmatprep.subr.bf16.mxu0 0
      %2361 = vmatpush1.bf16.msra.mxu0 %v2343
      %2362 = vmatprep.subr.bf16.mxu0 0
      %2363 = vmatpush1.bf16.msra.mxu0 %v2344
      %2364 = vmatprep.subr.bf16.mxu0 0
      %2365 = vmatpush1.bf16.msra.mxu0 %v2345
      %2366 = vmatprep.subr.bf16.mxu0 0
      %2367 = vmatpush1.bf16.msra.mxu0 %v2346
      %2368 = vmatprep.subr.bf16.mxu0 0
      %2369 = vmatpush1.bf16.msra.mxu0 %v2347
      %2370 = vmatprep.subr.bf16.mxu0 0
      %2371 = vmatpush1.bf16.msra.mxu0 %v2348
      %2372 = vmatprep.subr.bf16.mxu0 0
      %2373 = vmatpush1.bf16.msra.mxu0 %v2349
      %2374 = vmatprep.subr.bf16.mxu0 0
      %2375 = vmatpush1.bf16.msra.mxu0 0
      %2376 = vmatprep.subr.bf16.mxu0 0
      %2377 = vmatpush1.bf16.msra.mxu0 0
      %2378 = vmatprep.subr.bf16.mxu0 0
      %2379 = vmatpush1.bf16.msra.mxu0 0
      %2380 = vmatprep.subr.bf16.mxu0 0
      %2381 = vmatpush1.bf16.msra.mxu0 0
      %2382 = vmatprep.subr.bf16.mxu0 0
      %2383 = vmatpush1.bf16.msra.mxu0 0
      %2384 = vmatprep.subr.bf16.mxu0 0
      %2385 = vmatpush1.bf16.msra.mxu0 0
      %2386 = vmatprep.subr.bf16.mxu0 0
      %2387 = vmatpush1.bf16.msra.mxu0 0
      %2388 = vmatprep.subr.bf16.mxu0 0
      %2389 = vmatpush1.bf16.msra.mxu0 0
      %2390 = vmatprep.mubr.bf16.mxu0 0
      %2391 = vmatmul.mubr.bf16.gmra.mrb[0].mxu0 %v2294
      %v2392 = vpop.f32.mrb[0].mxu0
      %v2393 = vadd.f32 0.0, %v2392
      %v2394 = vpop.f32.mrb[0].mxu0
      %v2395 = vpop.f32.mrb[0].mxu0
      %v2396 = vadd.f32 0.0, %v2395
      %v2397 = vpop.f32.mrb[0].mxu0
      %2398 = vmatprep.mubr.bf16.mxu0 0
      %2399 = vmatmul.mubr.bf16.gmra.mrb[0].mxu0 %v2295
      %v2400 = vpop.f32.mrb[0].mxu0
      %v2401 = vadd.f32 0.0, %v2400
      %v2402 = vpop.f32.mrb[0].mxu0
      %v2403 = vpop.f32.mrb[0].mxu0
      %v2404 = vadd.f32 0.0, %v2403
      %v2405 = vpop.f32.mrb[0].mxu0
      %2406 = vmatprep.mubr.bf16.mxu0 0
      %2407 = vmatmul.mubr.bf16.gmra.mrb[0].mxu0 %v2296
      %v2408 = vpop.f32.mrb[0].mxu0
      %v2409 = vadd.f32 0.0, %v2408
      %v2410 = vpop.f32.mrb[0].mxu0
      %v2411 = vpop.f32.mrb[0].mxu0
      %v2412 = vadd.f32 0.0, %v2411
      %v2413 = vpop.f32.mrb[0].mxu0
      %2414 = vmatprep.mubr.bf16.mxu0 0
      %2415 = vmatmul.mubr.bf16.gmra.mrb[0].mxu0 %v2297
      %v2416 = vpop.f32.mrb[0].mxu0
      %v2417 = vadd.f32 0.0, %v2416
      %v2418 = vpop.f32.mrb[0].mxu0
      %v2419 = vpop.f32.mrb[0].mxu0
      %v2420 = vadd.f32 0.0, %v2419
      %v2421 = vpop.f32.mrb[0].mxu0
      %2422 = vmatprep.mubr.bf16.mxu0 0
      %2423 = vmatmul.mubr.bf16.gmra.mrb[0].mxu0 %v2298
      %v2424 = vpop.f32.mrb[0].mxu0
      %v2425 = vadd.f32 0.0, %v2424
      %v2426 = vpop.f32.mrb[0].mxu0
      %v2427 = vpop.f32.mrb[0].mxu0
      %v2428 = vadd.f32 0.0, %v2427
      %v2429 = vpop.f32.mrb[0].mxu0
      %2430 = vmatprep.mubr.bf16.mxu0 0
      %2431 = vmatmul.mubr.bf16.gmra.mrb[0].mxu0 %v2299
      %v2432 = vpop.f32.mrb[0].mxu0
      %v2433 = vadd.f32 0.0, %v2432
      %v2434 = vpop.f32.mrb[0].mxu0
      %v2435 = vpop.f32.mrb[0].mxu0
      %v2436 = vadd.f32 0.0, %v2435
      %v2437 = vpop.f32.mrb[0].mxu0
      %2438 = vmatprep.mubr.bf16.mxu0 0
      %2439 = vmatmul.mubr.bf16.gmra.mrb[0].mxu0 %v2300
      %v2440 = vpop.f32.mrb[0].mxu0
      %v2441 = vadd.f32 0.0, %v2440
      %v2442 = vpop.f32.mrb[0].mxu0
      %v2443 = vpop.f32.mrb[0].mxu0
      %v2444 = vadd.f32 0.0, %v2443
      %v2445 = vpop.f32.mrb[0].mxu0
      %2446 = vmatprep.mubr.bf16.mxu0 0
      %2447 = vmatmul.mubr.bf16.gmra.mrb[0].mxu0 %v2301
      %v2448 = vpop.f32.mrb[0].mxu0
      %v2449 = vadd.f32 0.0, %v2448
      %v2450 = vpop.f32.mrb[0].mxu0
      %v2451 = vpop.f32.mrb[0].mxu0
      %v2452 = vadd.f32 0.0, %v2451
      %v2453 = vpop.f32.mrb[0].mxu0
      %2454 = vdwg.mxu0
      %v2455 = vadd.f32 %v2184, %v2393
      %v2456 = vadd.f32 %v2187, %v2396
      %v2457 = vadd.f32 %v2192, %v2401
      %v2458 = vadd.f32 %v2195, %v2404
      %v2459 = vadd.f32 %v2200, %v2409
      %v2460 = vadd.f32 %v2203, %v2412
      %v2461 = vadd.f32 %v2208, %v2417
      %v2462 = vadd.f32 %v2211, %v2420
      %v2463 = vadd.f32 %v2216, %v2425
      %v2464 = vadd.f32 %v2219, %v2428
      %v2465 = vadd.f32 %v2224, %v2433
      %v2466 = vadd.f32 %v2227, %v2436
      %v2467 = vadd.f32 %v2232, %v2441
      %v2468 = vadd.f32 %v2235, %v2444
      %v2469 = vadd.f32 %v2240, %v2449
      %v2470 = vadd.f32 %v2243, %v2452
      %v2471 = vld [vmem:[%s4 + $0xc0] sm:$0xf]
      %v2472 = vld [vmem:[%s4 + $0xc4] sm:$0xf]
      %v2473 = vld [vmem:[%s4 + $0xc8] sm:$0xf]
      %v2474 = vld [vmem:[%s4 + $0xcc] sm:$0xf]
      %v2475 = vld [vmem:[%s4 + $0xd0] sm:$0xf]
      %v2476 = vld [vmem:[%s4 + $0xd4] sm:$0xf]
      %v2477 = vld [vmem:[%s4 + $0xd8] sm:$0xf]
      %v2478 = vld [vmem:[%s4 + $0xdc] sm:$0xf]
      %v2479 = vld [vmem:[%s4 + $0xe0] sm:$0xf]
      %v2480 = vld [vmem:[%s4 + $0xe4] sm:$0xf]
      %v2481 = vld [vmem:[%s4 + $0xe8] sm:$0xf]
      %v2482 = vld [vmem:[%s4 + $0xec] sm:$0xf]
      %v2483 = vld [vmem:[%s4 + $0xf0] sm:$0xf]
      %v2484 = vld [vmem:[%s4 + $0xf4] sm:$0xf]
      %v2485 = vld [vmem:[%s4 + $0xf8] sm:$0xf]
      %v2486 = vld [vmem:[%s4 + $0xfc] sm:$0xf]
      %v2503 = vunpack.c.l.b16 %v2471
      %v2504 = vunpack.c.l.b16 %v2472
      %v2505 = vunpack.c.l.b16 %v2473
      %v2506 = vunpack.c.l.b16 %v2474
      %v2507 = vunpack.c.l.b16 %v2475
      %v2508 = vunpack.c.l.b16 %v2476
      %v2509 = vunpack.c.l.b16 %v2477
      %v2510 = vunpack.c.l.b16 %v2478
      %v2511 = vunpack.c.l.b16 %v2479
      %v2512 = vunpack.c.l.b16 %v2480
      %v2513 = vunpack.c.l.b16 %v2481
      %v2514 = vunpack.c.l.b16 %v2482
      %v2515 = vunpack.c.l.b16 %v2483
      %v2516 = vunpack.c.l.b16 %v2484
      %v2517 = vunpack.c.l.b16 %v2485
      %v2518 = vunpack.c.l.b16 %v2486
      %v2519 = vpack.c.b16 %v2504, %v2503
      %v2520 = vpack.c.b16 %v2506, %v2505
      %v2521 = vpack.c.b16 %v2508, %v2507
      %v2522 = vpack.c.b16 %v2510, %v2509
      %v2523 = vpack.c.b16 %v2512, %v2511
      %v2524 = vpack.c.b16 %v2514, %v2513
      %v2525 = vpack.c.b16 %v2516, %v2515
      %v2526 = vpack.c.b16 %v2518, %v2517
      %2535 = vrot.lane.b32.xlu0 %v1876, 117
      %v2536 = vpop.permute.xlu0 %2535
      %2537 = vrot.lane.b32.xlu0 %v1877, 117
      %v2538 = vpop.permute.xlu0 %2537
      %2539 = vrot.lane.b32.xlu0 %v1878, 117
      %v2540 = vpop.permute.xlu0 %2539
      %2541 = vrot.lane.b32.xlu0 %v1879, 117
      %v2542 = vpop.permute.xlu0 %2541
      %2543 = vrot.lane.b32.xlu0 %v1880, 117
      %v2544 = vpop.permute.xlu0 %2543
      %2545 = vrot.lane.b32.xlu0 %v1881, 117
      %v2546 = vpop.permute.xlu0 %2545
      %2547 = vrot.lane.b32.xlu0 %v1882, 117
      %v2548 = vpop.permute.xlu0 %2547
      %2549 = vrot.lane.b32.xlu0 %v1883, 117
      %v2550 = vpop.permute.xlu0 %2549
      %2551 = vrot.lane.b32.xlu0 %v1884, 117
      %v2552 = vpop.permute.xlu0 %2551
      %2553 = vrot.lane.b32.xlu0 %v1885, 117
      %v2554 = vpop.permute.xlu0 %2553
      %2555 = vrot.lane.b32.xlu0 %v1886, 117
      %v2556 = vpop.permute.xlu0 %2555
      %2557 = vrot.lane.b32.xlu0 %v1887, 117
      %v2558 = vpop.permute.xlu0 %2557
      %2559 = vrot.lane.b32.xlu0 %v1888, 117
      %v2560 = vpop.permute.xlu0 %2559
      %2561 = vrot.lane.b32.xlu0 %v1889, 117
      %v2562 = vpop.permute.xlu0 %2561
      %2563 = vrot.lane.b32.xlu0 %v1890, 117
      %v2564 = vpop.permute.xlu0 %2563
      %2565 = vrot.lane.b32.xlu0 %v1891, 117
      %v2566 = vpop.permute.xlu0 %2565
      %v2567 = vsel %vm1639, %v2536, %v2538
      %v2568 = vsel %vm1639, %v2540, %v2542
      %v2569 = vsel %vm1639, %v2544, %v2546
      %v2570 = vsel %vm1639, %v2548, %v2550
      %v2571 = vsel %vm1639, %v2552, %v2554
      %v2572 = vsel %vm1639, %v2556, %v2558
      %v2573 = vsel %vm1639, %v2560, %v2562
      %v2574 = vsel %vm1639, %v2564, %v2566
      %2583 = vmatprep.subr.bf16.mxu0 0
      %2584 = vmatpush1.bf16.msra.mxu0 %v2567
      %2585 = vmatprep.subr.bf16.mxu0 0
      %2586 = vmatpush1.bf16.msra.mxu0 %v2568
      %2587 = vmatprep.subr.bf16.mxu0 0
      %2588 = vmatpush1.bf16.msra.mxu0 %v2569
      %2589 = vmatprep.subr.bf16.mxu0 0
      %2590 = vmatpush1.bf16.msra.mxu0 %v2570
      %2591 = vmatprep.subr.bf16.mxu0 0
      %2592 = vmatpush1.bf16.msra.mxu0 %v2571
      %2593 = vmatprep.subr.bf16.mxu0 0
      %2594 = vmatpush1.bf16.msra.mxu0 %v2572
      %2595 = vmatprep.subr.bf16.mxu0 0
      %2596 = vmatpush1.bf16.msra.mxu0 %v2573
      %2597 = vmatprep.subr.bf16.mxu0 0
      %2598 = vmatpush1.bf16.msra.mxu0 %v2574
      %2599 = vmatprep.subr.bf16.mxu0 0
      %2600 = vmatpush1.bf16.msra.mxu0 0
      %2601 = vmatprep.subr.bf16.mxu0 0
      %2602 = vmatpush1.bf16.msra.mxu0 0
      %2603 = vmatprep.subr.bf16.mxu0 0
      %2604 = vmatpush1.bf16.msra.mxu0 0
      %2605 = vmatprep.subr.bf16.mxu0 0
      %2606 = vmatpush1.bf16.msra.mxu0 0
      %2607 = vmatprep.subr.bf16.mxu0 0
      %2608 = vmatpush1.bf16.msra.mxu0 0
      %2609 = vmatprep.subr.bf16.mxu0 0
      %2610 = vmatpush1.bf16.msra.mxu0 0
      %2611 = vmatprep.subr.bf16.mxu0 0
      %2612 = vmatpush1.bf16.msra.mxu0 0
      %2613 = vmatprep.subr.bf16.mxu0 0
      %2614 = vmatpush1.bf16.msra.mxu0 0
      %2615 = vmatprep.mubr.bf16.mxu0 0
      %2616 = vmatmul.mubr.bf16.gmra.mrb[0].mxu0 %v2519
      %v2617 = vpop.f32.mrb[0].mxu0
      %v2618 = vadd.f32 0.0, %v2617
      %v2619 = vpop.f32.mrb[0].mxu0
      %v2620 = vpop.f32.mrb[0].mxu0
      %v2621 = vadd.f32 0.0, %v2620
      %v2622 = vpop.f32.mrb[0].mxu0
      %2623 = vmatprep.mubr.bf16.mxu0 0
      %2624 = vmatmul.mubr.bf16.gmra.mrb[0].mxu0 %v2520
      %v2625 = vpop.f32.mrb[0].mxu0
      %v2626 = vadd.f32 0.0, %v2625
      %v2627 = vpop.f32.mrb[0].mxu0
      %v2628 = vpop.f32.mrb[0].mxu0
      %v2629 = vadd.f32 0.0, %v2628
      %v2630 = vpop.f32.mrb[0].mxu0
      %2631 = vmatprep.mubr.bf16.mxu0 0
      %2632 = vmatmul.mubr.bf16.gmra.mrb[0].mxu0 %v2521
      %v2633 = vpop.f32.mrb[0].mxu0
      %v2634 = vadd.f32 0.0, %v2633
      %v2635 = vpop.f32.mrb[0].mxu0
      %v2636 = vpop.f32.mrb[0].mxu0
      %v2637 = vadd.f32 0.0, %v2636
      %v2638 = vpop.f32.mrb[0].mxu0
      %2639 = vmatprep.mubr.bf16.mxu0 0
      %2640 = vmatmul.mubr.bf16.gmra.mrb[0].mxu0 %v2522
      %v2641 = vpop.f32.mrb[0].mxu0
      %v2642 = vadd.f32 0.0, %v2641
      %v2643 = vpop.f32.mrb[0].mxu0
      %v2644 = vpop.f32.mrb[0].mxu0
      %v2645 = vadd.f32 0.0, %v2644
      %v2646 = vpop.f32.mrb[0].mxu0
      %2647 = vmatprep.mubr.bf16.mxu0 0
      %2648 = vmatmul.mubr.bf16.gmra.mrb[0].mxu0 %v2523
      %v2649 = vpop.f32.mrb[0].mxu0
      %v2650 = vadd.f32 0.0, %v2649
      %v2651 = vpop.f32.mrb[0].mxu0
      %v2652 = vpop.f32.mrb[0].mxu0
      %v2653 = vadd.f32 0.0, %v2652
      %v2654 = vpop.f32.mrb[0].mxu0
      %2655 = vmatprep.mubr.bf16.mxu0 0
      %2656 = vmatmul.mubr.bf16.gmra.mrb[0].mxu0 %v2524
      %v2657 = vpop.f32.mrb[0].mxu0
      %v2658 = vadd.f32 0.0, %v2657
      %v2659 = vpop.f32.mrb[0].mxu0
      %v2660 = vpop.f32.mrb[0].mxu0
      %v2661 = vadd.f32 0.0, %v2660
      %v2662 = vpop.f32.mrb[0].mxu0
      %2663 = vmatprep.mubr.bf16.mxu0 0
      %2664 = vmatmul.mubr.bf16.gmra.mrb[0].mxu0 %v2525
      %v2665 = vpop.f32.mrb[0].mxu0
      %v2666 = vadd.f32 0.0, %v2665
      %v2667 = vpop.f32.mrb[0].mxu0
      %v2668 = vpop.f32.mrb[0].mxu0
      %v2669 = vadd.f32 0.0, %v2668
      %v2670 = vpop.f32.mrb[0].mxu0
      %2671 = vmatprep.mubr.bf16.mxu0 0
      %2672 = vmatmul.mubr.bf16.gmra.mrb[0].mxu0 %v2526
      %v2673 = vpop.f32.mrb[0].mxu0
      %v2674 = vadd.f32 0.0, %v2673
      %v2675 = vpop.f32.mrb[0].mxu0
      %v2676 = vpop.f32.mrb[0].mxu0
      %v2677 = vadd.f32 0.0, %v2676
      %v2678 = vpop.f32.mrb[0].mxu0
      %2679 = vdwg.mxu0
      %v2680 = vadd.f32 %v2455, %v2618
      %v2681 = vadd.f32 %v2456, %v2621
      %v2682 = vadd.f32 %v2457, %v2626
      %v2683 = vadd.f32 %v2458, %v2629
      %v2684 = vadd.f32 %v2459, %v2634
      %v2685 = vadd.f32 %v2460, %v2637
      %v2686 = vadd.f32 %v2461, %v2642
      %v2687 = vadd.f32 %v2462, %v2645
      %v2688 = vadd.f32 %v2463, %v2650
      %v2689 = vadd.f32 %v2464, %v2653
      %v2690 = vadd.f32 %v2465, %v2658
      %v2691 = vadd.f32 %v2466, %v2661
      %v2692 = vadd.f32 %v2467, %v2666
      %v2693 = vadd.f32 %v2468, %v2669
      %v2694 = vadd.f32 %v2469, %v2674
      %v2695 = vadd.f32 %v2470, %v2677
      %v2696 = vld [vmem:[%s5] sm:$0xff]
      %v2697 = vld [vmem:[%s5 + $0x8] sm:$0xff]
      %v2698 = vld [vmem:[%s5 + $0x10] sm:$0xff]
      %v2699 = vld [vmem:[%s5 + $0x18] sm:$0xff]
      %v2700 = vld [vmem:[%s5 + $0x20] sm:$0xff]
      %v2701 = vld [vmem:[%s5 + $0x28] sm:$0xff]
      %v2702 = vld [vmem:[%s5 + $0x30] sm:$0xff]
      %v2703 = vld [vmem:[%s5 + $0x38] sm:$0xff]
      %v2704 = vld [vmem:[%s5 + $0x40] sm:$0xff]
      %v2705 = vld [vmem:[%s5 + $0x48] sm:$0xff]
      %v2706 = vld [vmem:[%s5 + $0x50] sm:$0xff]
      %v2707 = vld [vmem:[%s5 + $0x58] sm:$0xff]
      %v2708 = vld [vmem:[%s5 + $0x60] sm:$0xff]
      %v2709 = vld [vmem:[%s5 + $0x68] sm:$0xff]
      %v2710 = vld [vmem:[%s5 + $0x70] sm:$0xff]
      %v2711 = vld [vmem:[%s5 + $0x78] sm:$0xff]
      %2713 = vset.pattern.permute.xlu0 0
      %2714 = vperm.xlu0 %2713, %v2696
      %v2715 = vpop.permute.xlu0 %2714
      %2718 = vset.pattern.permute.xlu0 0
      %2719 = vperm.xlu0 %2718, %v2697
      %v2720 = vpop.permute.xlu0 %2719
      %2723 = vset.pattern.permute.xlu0 0
      %2724 = vperm.xlu0 %2723, %v2698
      %v2725 = vpop.permute.xlu0 %2724
      %2728 = vset.pattern.permute.xlu0 0
      %2729 = vperm.xlu0 %2728, %v2699
      %v2730 = vpop.permute.xlu0 %2729
      %2733 = vset.pattern.permute.xlu0 0
      %2734 = vperm.xlu0 %2733, %v2700
      %v2735 = vpop.permute.xlu0 %2734
      %2738 = vset.pattern.permute.xlu0 0
      %2739 = vperm.xlu0 %2738, %v2701
      %v2740 = vpop.permute.xlu0 %2739
      %2743 = vset.pattern.permute.xlu0 0
      %2744 = vperm.xlu0 %2743, %v2702
      %v2745 = vpop.permute.xlu0 %2744
      %2748 = vset.pattern.permute.xlu0 0
      %2749 = vperm.xlu0 %2748, %v2703
      %v2750 = vpop.permute.xlu0 %2749
      %2753 = vset.pattern.permute.xlu0 0
      %2754 = vperm.xlu0 %2753, %v2704
      %v2755 = vpop.permute.xlu0 %2754
      %2758 = vset.pattern.permute.xlu0 0
      %2759 = vperm.xlu0 %2758, %v2705
      %v2760 = vpop.permute.xlu0 %2759
      %2763 = vset.pattern.permute.xlu0 0
      %2764 = vperm.xlu0 %2763, %v2706
      %v2765 = vpop.permute.xlu0 %2764
      %2768 = vset.pattern.permute.xlu0 0
      %2769 = vperm.xlu0 %2768, %v2707
      %v2770 = vpop.permute.xlu0 %2769
      %2773 = vset.pattern.permute.xlu0 0
      %2774 = vperm.xlu0 %2773, %v2708
      %v2775 = vpop.permute.xlu0 %2774
      %2778 = vset.pattern.permute.xlu0 0
      %2779 = vperm.xlu0 %2778, %v2709
      %v2780 = vpop.permute.xlu0 %2779
      %2783 = vset.pattern.permute.xlu0 0
      %2784 = vperm.xlu0 %2783, %v2710
      %v2785 = vpop.permute.xlu0 %2784
      %2788 = vset.pattern.permute.xlu0 0
      %2789 = vperm.xlu0 %2788, %v2711
      %v2790 = vpop.permute.xlu0 %2789
      %v2792 = vadd.f32 %v2680, %v2715
      %v2793 = vadd.f32 %v2681, %v2720
      %v2794 = vadd.f32 %v2682, %v2725
      %v2795 = vadd.f32 %v2683, %v2730
      %v2796 = vadd.f32 %v2684, %v2735
      %v2797 = vadd.f32 %v2685, %v2740
      %v2798 = vadd.f32 %v2686, %v2745
      %v2799 = vadd.f32 %v2687, %v2750
      %v2800 = vadd.f32 %v2688, %v2755
      %v2801 = vadd.f32 %v2689, %v2760
      %v2802 = vadd.f32 %v2690, %v2765
      %v2803 = vadd.f32 %v2691, %v2770
      %v2804 = vadd.f32 %v2692, %v2775
      %v2805 = vadd.f32 %v2693, %v2780
      %v2806 = vadd.f32 %v2694, %v2785
      %v2807 = vadd.f32 %v2695, %v2790
      %v2808 = vxor.u32 %v2792, 2147483648
      %v2809 = vxor.u32 %v2793, 2147483648
      %v2810 = vxor.u32 %v2794, 2147483648
      %v2811 = vxor.u32 %v2795, 2147483648
      %v2812 = vxor.u32 %v2796, 2147483648
      %v2813 = vxor.u32 %v2797, 2147483648
      %v2814 = vxor.u32 %v2798, 2147483648
      %v2815 = vxor.u32 %v2799, 2147483648
      %v2816 = vxor.u32 %v2800, 2147483648
      %v2817 = vxor.u32 %v2801, 2147483648
      %v2818 = vxor.u32 %v2802, 2147483648
      %v2819 = vxor.u32 %v2803, 2147483648
      %v2820 = vxor.u32 %v2804, 2147483648
      %v2821 = vxor.u32 %v2805, 2147483648
      %v2822 = vxor.u32 %v2806, 2147483648
      %v2823 = vxor.u32 %v2807, 2147483648
      %v2824 = vmul.f32 %v2808, 1.442695
      %v2825 = vpow.pop %v2824
      %v2826 = vmul.f32 %v2809, 1.442695
      %v2827 = vpow.pop %v2826
      %v2828 = vmul.f32 %v2810, 1.442695
      %v2829 = vpow.pop %v2828
      %v2830 = vmul.f32 %v2811, 1.442695
      %v2831 = vpow.pop %v2830
      %v2832 = vmul.f32 %v2812, 1.442695
      %v2833 = vpow.pop %v2832
      %v2834 = vmul.f32 %v2813, 1.442695
      %v2835 = vpow.pop %v2834
      %v2836 = vmul.f32 %v2814, 1.442695
      %v2837 = vpow.pop %v2836
      %v2838 = vmul.f32 %v2815, 1.442695
      %v2839 = vpow.pop %v2838
      %v2840 = vmul.f32 %v2816, 1.442695
      %v2841 = vpow.pop %v2840
      %v2842 = vmul.f32 %v2817, 1.442695
      %v2843 = vpow.pop %v2842
      %v2844 = vmul.f32 %v2818, 1.442695
      %v2845 = vpow.pop %v2844
      %v2846 = vmul.f32 %v2819, 1.442695
      %v2847 = vpow.pop %v2846
      %v2848 = vmul.f32 %v2820, 1.442695
      %v2849 = vpow.pop %v2848
      %v2850 = vmul.f32 %v2821, 1.442695
      %v2851 = vpow.pop %v2850
      %v2852 = vmul.f32 %v2822, 1.442695
      %v2853 = vpow.pop %v2852
      %v2854 = vmul.f32 %v2823, 1.442695
      %v2855 = vpow.pop %v2854
      %v2856 = vadd.f32 %v2825, 1.0
      %v2857 = vadd.f32 %v2827, 1.0
      %v2858 = vadd.f32 %v2829, 1.0
      %v2859 = vadd.f32 %v2831, 1.0
      %v2860 = vadd.f32 %v2833, 1.0
      %v2861 = vadd.f32 %v2835, 1.0
      %v2862 = vadd.f32 %v2837, 1.0
      %v2863 = vadd.f32 %v2839, 1.0
      %v2864 = vadd.f32 %v2841, 1.0
      %v2865 = vadd.f32 %v2843, 1.0
      %v2866 = vadd.f32 %v2845, 1.0
      %v2867 = vadd.f32 %v2847, 1.0
      %v2868 = vadd.f32 %v2849, 1.0
      %v2869 = vadd.f32 %v2851, 1.0
      %v2870 = vadd.f32 %v2853, 1.0
      %v2871 = vadd.f32 %v2855, 1.0
      %v2872 = vrcp.pop %v2856
      %v2873 = vmul.f32 1.0, %v2872
      %v2874 = vrcp.pop %v2857
      %v2875 = vmul.f32 1.0, %v2874
      %v2876 = vrcp.pop %v2858
      %v2877 = vmul.f32 1.0, %v2876
      %v2878 = vrcp.pop %v2859
      %v2879 = vmul.f32 1.0, %v2878
      %v2880 = vrcp.pop %v2860
      %v2881 = vmul.f32 1.0, %v2880
      %v2882 = vrcp.pop %v2861
      %v2883 = vmul.f32 1.0, %v2882
      %v2884 = vrcp.pop %v2862
      %v2885 = vmul.f32 1.0, %v2884
      %v2886 = vrcp.pop %v2863
      %v2887 = vmul.f32 1.0, %v2886
      %v2888 = vrcp.pop %v2864
      %v2889 = vmul.f32 1.0, %v2888
      %v2890 = vrcp.pop %v2865
      %v2891 = vmul.f32 1.0, %v2890
      %v2892 = vrcp.pop %v2866
      %v2893 = vmul.f32 1.0, %v2892
      %v2894 = vrcp.pop %v2867
      %v2895 = vmul.f32 1.0, %v2894
      %v2896 = vrcp.pop %v2868
      %v2897 = vmul.f32 1.0, %v2896
      %v2898 = vrcp.pop %v2869
      %v2899 = vmul.f32 1.0, %v2898
      %v2900 = vrcp.pop %v2870
      %v2901 = vmul.f32 1.0, %v2900
      %v2902 = vrcp.pop %v2871
      %v2903 = vmul.f32 1.0, %v2902
      %v2904 = vmul.f32 %v2792, %v2873
      %v2905 = vmul.f32 %v2793, %v2875
      %v2906 = vmul.f32 %v2794, %v2877
      %v2907 = vmul.f32 %v2795, %v2879
      %v2908 = vmul.f32 %v2796, %v2881
      %v2909 = vmul.f32 %v2797, %v2883
      %v2910 = vmul.f32 %v2798, %v2885
      %v2911 = vmul.f32 %v2799, %v2887
      %v2912 = vmul.f32 %v2800, %v2889
      %v2913 = vmul.f32 %v2801, %v2891
      %v2914 = vmul.f32 %v2802, %v2893
      %v2915 = vmul.f32 %v2803, %v2895
      %v2916 = vmul.f32 %v2804, %v2897
      %v2917 = vmul.f32 %v2805, %v2899
      %v2918 = vmul.f32 %v2806, %v2901
      %v2919 = vmul.f32 %v2807, %v2903
      %v2920 = vpack.c.bf16 %v2905, %v2904
      %v2921 = vpack.c.bf16 %v2907, %v2906
      %v2922 = vpack.c.bf16 %v2909, %v2908
      %v2923 = vpack.c.bf16 %v2911, %v2910
      %v2924 = vpack.c.bf16 %v2913, %v2912
      %v2925 = vpack.c.bf16 %v2915, %v2914
      %v2926 = vpack.c.bf16 %v2917, %v2916
      %v2927 = vpack.c.bf16 %v2919, %v2918
      %v2936 = vunpack.c.l.b16 %v2920
      %v2937 = vunpack.c.h.b16 %v2920
      %v2938 = vunpack.c.l.b16 %v2921
      %v2939 = vunpack.c.h.b16 %v2921
      %v2940 = vunpack.c.l.b16 %v2922
      %v2941 = vunpack.c.h.b16 %v2922
      %v2942 = vunpack.c.l.b16 %v2923
      %v2943 = vunpack.c.h.b16 %v2923
      %v2944 = vunpack.c.l.b16 %v2924
      %v2945 = vunpack.c.h.b16 %v2924
      %v2946 = vunpack.c.l.b16 %v2925
      %v2947 = vunpack.c.h.b16 %v2925
      %v2948 = vunpack.c.l.b16 %v2926
      %v2949 = vunpack.c.h.b16 %v2926
      %v2950 = vunpack.c.l.b16 %v2927
      %v2951 = vunpack.c.h.b16 %v2927
      %v2952 = vpack.c.b16 %v2936, %v2936
      %v2953 = vpack.c.b16 %v2937, %v2937
      %v2954 = vpack.c.b16 %v2938, %v2938
      %v2955 = vpack.c.b16 %v2939, %v2939
      %v2956 = vpack.c.b16 %v2940, %v2940
      %v2957 = vpack.c.b16 %v2941, %v2941
      %v2958 = vpack.c.b16 %v2942, %v2942
      %v2959 = vpack.c.b16 %v2943, %v2943
      %v2960 = vpack.c.b16 %v2944, %v2944
      %v2961 = vpack.c.b16 %v2945, %v2945
      %v2962 = vpack.c.b16 %v2946, %v2946
      %v2963 = vpack.c.b16 %v2947, %v2947
      %v2964 = vpack.c.b16 %v2948, %v2948
      %v2965 = vpack.c.b16 %v2949, %v2949
      %v2966 = vpack.c.b16 %v2950, %v2950
      %v2967 = vpack.c.b16 %v2951, %v2951
      %2984 = vst [vmem:[%s251] sm:$0xf] %v2952
      %2985 = vst [vmem:[%s251 + $0x4] sm:$0xf] %v2953
      %2986 = vst [vmem:[%s251 + $0x8] sm:$0xf] %v2954
      %2987 = vst [vmem:[%s251 + $0xc] sm:$0xf] %v2955
      %2988 = vst [vmem:[%s251 + $0x10] sm:$0xf] %v2956
      %2989 = vst [vmem:[%s251 + $0x14] sm:$0xf] %v2957
      %2990 = vst [vmem:[%s251 + $0x18] sm:$0xf] %v2958
      %2991 = vst [vmem:[%s251 + $0x1c] sm:$0xf] %v2959
      %2992 = vst [vmem:[%s251 + $0x20] sm:$0xf] %v2960
      %2993 = vst [vmem:[%s251 + $0x24] sm:$0xf] %v2961
      %2994 = vst [vmem:[%s251 + $0x28] sm:$0xf] %v2962
      %2995 = vst [vmem:[%s251 + $0x2c] sm:$0xf] %v2963
      %2996 = vst [vmem:[%s251 + $0x30] sm:$0xf] %v2964
      %2997 = vst [vmem:[%s251 + $0x34] sm:$0xf] %v2965
      %2998 = vst [vmem:[%s251 + $0x38] sm:$0xf] %v2966
      %2999 = vst [vmem:[%s251 + $0x3c] sm:$0xf] %v2967
      %p3000 = scmp.lt.s32.totalorder %s17, 1
      %s3001 = scalar_select %p3000, %s17, 1
      %s3002 = smul.addr %s3001, 16
      %s3003 = smul.addr %s3002, 4
      %s3004 = scalar_lea.vmem %s6, %s3003
      // Predicated region
      $region45: #{gnn_model_forward.2} parent=43 // pred_check
        %p3005 = pneg %p166
      $region46: #{gnn_model_forward.2} parent=43 // pred_check_branch
        %3007 = sbr.rel (%p3005) target = $region48
      $region47: #{gnn_model_forward.2} parent=43 // pred_region
        _
      $region48: #{gnn_model_forward.2} parent=43 // pred_fallthru
        _
    $region44: #{gnn_model_forward.2} parent=5 // pred_fallthru
      _
    %p3008 = scmp.le.s32.totalorder 2, %s12
    // Predicated region
    $region49: #{gnn_model_forward.2} parent=5 // pred_check
      %p3009 = pneg %p3008
    $region50: #{gnn_model_forward.2} parent=5 // pred_check_branch
      %3011 = sbr.rel (%p3009) target = $region52
    $region51: #{gnn_model_forward.2} parent=5 // pred_region
      %s3012 = ssub.s32 %s12, 2
      // Predicated region
      $region53: #{gnn_model_forward.2} parent=51 // pred_check
        %p3013 = pneg %p172
      $region54: #{gnn_model_forward.2} parent=51 // pred_check_branch
        %3015 = sbr.rel (%p3013) target = $region56
      $region55: #{gnn_model_forward.2} parent=51 // pred_region
        %p3016 = scmp.lt.s32.totalorder %s18, 1
        %s3017 = scalar_select %p3016, %s18, 1
        %s3018 = smul.addr %s3017, 16
        %s3019 = smul.addr %s3018, 4
        %s3020 = scalar_lea.vmem %s6, %s3019
      $region56: #{gnn_model_forward.2} parent=51 // pred_fallthru
        _
    $region52: #{gnn_model_forward.2} parent=5 // pred_fallthru
      _
  $region6: #{gnn_model_forward.2} parent=0 // loop_footer
    %s16 = sadd.s32 1, %s12
  $region7: #{gnn_model_forward.2} parent=0 // loop_footer_branch
    %11 = sbr.rel target = $region3
  $region8: #{gnn_model_forward.2} parent=0 // loop_exit
    _

</llo_original>
